<compile_context>
chip_gen: v7x
topology: tpu7x:2x2x1
jax: 0.10.0
libtpu: 0.0.40
codegen_flags: <defaults>
</compile_context>

<pallas_src>
import jax
import jax.numpy as jnp
from jax.experimental import pallas as pl
from jax.experimental.pallas import tpu as pltpu


# ----------------------------------------------------------------------------
# Kernel
# ----------------------------------------------------------------------------
def stock_block_kernel(
    x_ref, adjbd_ref, h0_ref, wih_ref, whh_ref, bx_ref, bh_ref,
    wg_ref, w1_ref, b1_ref, bn_scale_ref, bn_shift_ref, w2_ref, b2_ref,
    out_ref, hout_ref,
):
    """Single invocation, everything in VMEM.

    Layouts (P = step_len padded to a multiple of 128):
      x_ref      : (L*B, P)   time-major rows (row = l*B + b), lane-dense
      adjbd_ref  : (L*B, L*B) kron(adj, I_B)
      h0_ref     : (NL, B, P)
      wih/whh    : (NL, P, 3P)  fused gates r|z|n, each gate 128-aligned
      bx_ref     : (NL, 3P)     b_ih(+b_hh for r,z) fused bias
      bh_ref     : (NL, 3P)     zeros for r,z; b_hh_n for n
      wg_ref     : (B, P, P)    per-batch gcn weight
      w1/w2      : (P, P), b1/b2 : (1, P), bn_scale/shift : (L, 1)
      out_ref    : (B*L, P)   batch-major rows (row = b*L + l)
      hout_ref   : (NL*B, P)
    """
    NL, B, P = h0_ref.shape
    LB = x_ref.shape[0]
    L = LB // B
    P2 = 2 * P
    f32 = jnp.float32

    # ---- graph propagation: adj @ x for the whole batch in one matmul ------
    seq = jnp.dot(adjbd_ref[...], x_ref[...], preferred_element_type=f32)  # (L*B, P)

    # ---- stacked GRU (batch_first; time axis == leads) ----------------------
    outs = []
    for l in range(NL):                      # static unroll over layers
        w_ih = wih_ref[l]                    # (P, 3P)
        w_hh = whh_ref[l]                    # (P, 3P)
        b_x = bx_ref[l:l + 1, :]             # (1, 3P)
        b_h = bh_ref[l:l + 1, :]             # (1, 3P)

        # Hoisted fused input projection: one matmul per layer for all gates,
        # all time steps, all batches.
        gx = jnp.dot(seq, w_ih, preferred_element_type=f32) + b_x   # (L*B, 3P)

        h = h0_ref[l]                        # (B, P)
        outs = []
        for t in range(L):                   # true sequential recurrence
            # One fused recurrence matmul per step (was 3).
            gh = jnp.dot(h, w_hh, preferred_element_type=f32) + b_h  # (B, 3P)
            gxt = gx[t * B:(t + 1) * B, :]                            # (B, 3P)
            # r and z on the contiguous 2-gate slab in one shot.
            rz = jax.nn.sigmoid(gxt[:, :P2] + gh[:, :P2])
            r = rz[:, :P]
            z = rz[:, P:P2]
            n = jnp.tanh(gxt[:, P2:] + r * gh[:, P2:])
            h = (1.0 - z) * n + z * h
            outs.append(h)                   # accumulate in registers

        hout_ref[l * B:(l + 1) * B, :] = h   # final hidden state of layer l
        if l + 1 < NL:
            seq = jnp.concatenate(outs, axis=0)   # time-major input of next layer

    # ---- post-GRU: gcn (per-batch weight) + block_out MLP, per batch --------
    for b in range(B):
        # Gather batch b's output sequence (rows = leads) from the registers.
        sb = jnp.concatenate([o[b:b + 1, :] for o in outs], axis=0)   # (L, P)
        gcn = jnp.dot(sb, wg_ref[b], preferred_element_type=f32)      # (L, P)
        # Linear -> LeakyReLU(0.01) -> BatchNorm1d(leads, eval) -> Dropout(id)
        # -> Linear
        y = jnp.dot(gcn, w1_ref[...], preferred_element_type=f32) + b1_ref[...]
        y = jnp.where(y > 0, y, 0.01 * y)
        y = y * bn_scale_ref[...] + bn_shift_ref[...]
        y = jnp.dot(y, w2_ref[...], preferred_element_type=f32) + b2_ref[...]
        out_ref[b * L:(b + 1) * L, :] = y    # (8,128)-aligned lane-dense write


# ----------------------------------------------------------------------------
# Host-side packing (build once, cache, keep out of the per-call path)
# ----------------------------------------------------------------------------
def _pad_last(a, width):
    a = a.astype(jnp.float32)
    pad = width - a.shape[-1]
    if pad == 0:
        return a
    cfg = [(0, 0)] * (a.ndim - 1) + [(0, pad)]
    return jnp.pad(a, cfg)


def pack_params(params, batch, leads, step_len, num_layers):
    B, L, S, NL = batch, leads, step_len, num_layers
    P = ((S + 127) // 128) * 128
    f32 = jnp.float32

    w_ih = params["w_ih"].astype(f32)        # (NL, 3, S, S) in x @ W layout, r|z|n
    w_hh = params["w_hh"].astype(f32)
    b_ih = params["b_ih"].astype(f32)        # (NL, 3, S)
    b_hh = params["b_hh"].astype(f32)

    def fuse_w(w):                            # (NL, 3, S, S) -> (NL, P, 3P)
        wp = jnp.pad(w, ((0, 0), (0, 0), (0, P - S), (0, P - S)))
        return jnp.concatenate([wp[:, 0], wp[:, 1], wp[:, 2]], axis=-1)

    # Bias folding: b_hh_r / b_hh_z go with the hoisted input projection; the
    # n-gate hidden bias must stay inside r * (h @ W_hn + b_hn).
    bx = jnp.concatenate(
        [_pad_last(b_ih[:, 0] + b_hh[:, 0], P),
         _pad_last(b_ih[:, 1] + b_hh[:, 1], P),
         _pad_last(b_ih[:, 2], P)], axis=-1)                      # (NL, 3P)
    bh = jnp.concatenate(
        [jnp.zeros((NL, 2 * P), f32), _pad_last(b_hh[:, 2], P)], axis=-1)

    # Fold eval-mode BatchNorm1d(leads) into one scale/shift per lead.
    bn_scale = (params["bn_gamma"].astype(f32)
                * jax.lax.rsqrt(params["bn_var"].astype(f32) + 1e-5))
    bn_shift = params["bn_beta"].astype(f32) - params["bn_mean"].astype(f32) * bn_scale

    return {
        "P": P,
        "wih": fuse_w(w_ih), "whh": fuse_w(w_hh), "bx": bx, "bh": bh,
        "wg": jnp.pad(params["weight"].astype(f32),
                      ((0, 0), (0, P - S), (0, P - S))),          # (B, P, P)
        "w1": jnp.pad(params["w1"].astype(f32), ((0, P - S), (0, P - S))),
        "b1": _pad_last(params["b1"], P).reshape(1, P),
        "w2": jnp.pad(params["w2"].astype(f32), ((0, P - S), (0, P - S))),
        "b2": _pad_last(params["b2"], P).reshape(1, P),
        "bn_scale": bn_scale.reshape(L, 1),
        "bn_shift": bn_shift.reshape(L, 1),
    }


# ----------------------------------------------------------------------------
# Wrapper
# ----------------------------------------------------------------------------
def stock_block_forward(x, adj, hidden_in, packed):
    """x: (B, L, S), adj: (L, L), hidden_in: (NL, B, S) -> (block_out, hidden)."""
    B, L, S = x.shape
    NL = hidden_in.shape[0]
    P = packed["P"]
    f32 = jnp.float32

    # Time-major activation rows (row = l*B + b); features padded to P lanes.
    x_tm = _pad_last(jnp.transpose(x, (1, 0, 2)).reshape(L * B, S), P)
    h0 = _pad_last(hidden_in, P)                                   # (NL, B, P)
    adj_bd = jnp.kron(adj.astype(f32), jnp.eye(B, dtype=f32))      # (L*B, L*B), tiny

    out_bm, hout = pl.pallas_call(
        stock_block_kernel,
        out_shape=(
            jax.ShapeDtypeStruct((B * L, P), f32),    # block_out, batch-major rows
            jax.ShapeDtypeStruct((NL * B, P), f32),   # final hidden per layer
        ),
        compiler_params=pltpu.CompilerParams(
            vmem_limit_bytes=32 * 1024 * 1024),       # explicit, fits every chip
    )(
        x_tm, adj_bd, h0,
        packed["wih"], packed["whh"], packed["bx"], packed["bh"],
        packed["wg"], packed["w1"], packed["b1"],
        packed["bn_scale"], packed["bn_shift"], packed["w2"], packed["b2"],
    )

    block_out = out_bm[:, :S].reshape(B, L, S)     # strip lane padding
    hidden = hout[:, :S].reshape(NL, B, S)
    return block_out, hidden


# ----------------------------------------------------------------------------
# Pure-JAX reference (mirrors the PyTorch forward) for a correctness check
# ----------------------------------------------------------------------------
def reference_forward(x, adj, hidden_in, params):
    B, L, S = x.shape
    NL = hidden_in.shape[0]
    seq = jnp.einsum("lm,bms->bls", adj, x)                       # adj @ x
    hidden = []
    for l in range(NL):
        h = hidden_in[l]                                          # (B, S)
        outs = []
        for t in range(L):
            xt = seq[:, t, :]
            r = jax.nn.sigmoid(xt @ params["w_ih"][l, 0] + params["b_ih"][l, 0]
                               + h @ params["w_hh"][l, 0] + params["b_hh"][l, 0])
            z = jax.nn.sigmoid(xt @ params["w_ih"][l, 1] + params["b_ih"][l, 1]
                               + h @ params["w_hh"][l, 1] + params["b_hh"][l, 1])
            n = jnp.tanh(xt @ params["w_ih"][l, 2] + params["b_ih"][l, 2]
                         + r * (h @ params["w_hh"][l, 2] + params["b_hh"][l, 2]))
            h = (1.0 - z) * n + z * h
            outs.append(h)
        seq = jnp.stack(outs, axis=1)                             # (B, L, S)
        hidden.append(h)
    hidden = jnp.stack(hidden, axis=0)                            # (NL, B, S)
    gcn = jnp.einsum("bls,bst->blt", seq, params["weight"])
    y = gcn @ params["w1"] + params["b1"]
    y = jnp.where(y > 0, y, 0.01 * y)
    scale = params["bn_gamma"] * jax.lax.rsqrt(params["bn_var"] + 1e-5)
    shift = params["bn_beta"] - params["bn_mean"] * scale
    y = y * scale[None, :, None] + shift[None, :, None]
    y = y @ params["w2"] + params["b2"]
    return y, hidden


# ----------------------------------------------------------------------------
# Synthetic parameters (x @ W layout, GRU gates stored per gate in r|z|n order)
# ----------------------------------------------------------------------------
def init_params(key, batch, leads, step_len, num_layers):
    S, L, NL, B = step_len, leads, num_layers, batch
    ks = jax.random.split(key, 12)
    scale = 1.0 / jnp.sqrt(jnp.float32(S))
    u = lambda k, shape: jax.random.uniform(k, shape, jnp.float32, -scale, scale)
    return {
        "weight": u(ks[0], (B, S, S)),            # nn.Parameter(batch, step, step)
        "w_ih": u(ks[1], (NL, 3, S, S)),          # GRU input weights (r|z|n)
        "w_hh": u(ks[2], (NL, 3, S, S)),          # GRU hidden weights (r|z|n)
        "b_ih": u(ks[3], (NL, 3, S)),
        "b_hh": u(ks[4], (NL, 3, S)),
        "w1": u(ks[5], (S, S)),                   # block_out Linear 1
        "b1": u(ks[6], (S,)),
        "bn_gamma": jax.random.uniform(ks[7], (L,), jnp.float32, 0.5, 1.5),
        "bn_beta": u(ks[8], (L,)),
        "bn_mean": u(ks[9], (L,)),
        "bn_var": jax.random.uniform(ks[10], (L,), jnp.float32, 0.5, 1.5),
        "w2": u(ks[11], (S, S)),                  # block_out Linear 2
        "b2": jnp.zeros((S,), jnp.float32),
    }


if __name__ == "__main__":
    # x: (batch, leads, step_len), adj: (leads, leads),
    # hidden_in: (gru_num_layers, batch, step_len)
    batch, leads, step_len, num_layers = 2, 8, 16, 2

    key = jax.random.PRNGKey(0)
    kx, kadj, kh, kp = jax.random.split(key, 4)

    x = jax.random.normal(kx, (batch, leads, step_len), jnp.float32)
    adj = jax.random.normal(kadj, (leads, leads), jnp.float32)
    hidden_in = jax.random.normal(kh, (num_layers, batch, step_len), jnp.float32)
    params = init_params(kp, batch, leads, step_len, num_layers)

    packed = pack_params(params, batch, leads, step_len, num_layers)  # once, cacheable
    block_out, hidden = stock_block_forward(x, adj, hidden_in, packed)
    jax.block_until_ready((block_out, hidden))

    ref_out, ref_hidden = reference_forward(x, adj, hidden_in, params)

    assert block_out.shape == (batch, leads, step_len)
    assert hidden.shape == (num_layers, batch, step_len)
    assert bool(jnp.all(jnp.isfinite(block_out))) and bool(jnp.all(jnp.isfinite(hidden)))
    assert bool(jnp.allclose(block_out, ref_out, rtol=1e-4, atol=1e-4))
    assert bool(jnp.allclose(hidden, ref_hidden, rtol=1e-4, atol=1e-4))
    print("KERNEL_OK")
</pallas_src>

<mosaic_0001>
module attributes {stable_mosaic.version = 11 : i64} {
  func.func @stock_block_kernel(%arg0: memref<16x128xf32, #tpu.memory_space<vmem>>, %arg1: memref<16x16xf32, #tpu.memory_space<vmem>>, %arg2: memref<2x2x128xf32, #tpu.memory_space<vmem>>, %arg3: memref<2x128x384xf32, #tpu.memory_space<vmem>>, %arg4: memref<2x128x384xf32, #tpu.memory_space<vmem>>, %arg5: memref<2x384xf32, #tpu.memory_space<vmem>>, %arg6: memref<2x384xf32, #tpu.memory_space<vmem>>, %arg7: memref<2x128x128xf32, #tpu.memory_space<vmem>>, %arg8: memref<128x128xf32, #tpu.memory_space<vmem>>, %arg9: memref<1x128xf32, #tpu.memory_space<vmem>>, %arg10: memref<8x1xf32, #tpu.memory_space<vmem>>, %arg11: memref<8x1xf32, #tpu.memory_space<vmem>>, %arg12: memref<128x128xf32, #tpu.memory_space<vmem>>, %arg13: memref<1x128xf32, #tpu.memory_space<vmem>>, %arg14: memref<16x128xf32, #tpu.memory_space<vmem>>, %arg15: memref<4x128xf32, #tpu.memory_space<vmem>>) attributes {dimension_semantics = [], scalar_prefetch = 0 : i64, scratch_operands = 0 : i64, tpu.core_type = #tpu.core_type<tc>} {
    %c0 = arith.constant 0 : index
    %c0_0 = arith.constant 0 : index
    %0 = vector.load %arg1[%c0, %c0_0] : memref<16x16xf32, #tpu.memory_space<vmem>>, vector<16x16xf32>
    %c0_1 = arith.constant 0 : index
    %c0_2 = arith.constant 0 : index
    %1 = vector.load %arg0[%c0_1, %c0_2] : memref<16x128xf32, #tpu.memory_space<vmem>>, vector<16x128xf32>
    %cst = arith.constant dense<0.000000e+00> : vector<16x128xf32>
    %2 = tpu.matmul %0, %1, %cst {dimension_numbers = #tpu.dot_dimension_numbers<[1], [0], [0], [1], [0, 0, 1, 1], [], []>} : vector<16x16xf32>, vector<16x128xf32>, vector<16x128xf32> -> vector<16x128xf32>
    %c0_3 = arith.constant 0 : index
    %c0_4 = arith.constant 0 : index
    %c0_5 = arith.constant 0 : index
    %3 = vector.load %arg3[%c0_3, %c0_4, %c0_5] : memref<2x128x384xf32, #tpu.memory_space<vmem>>, vector<1x128x384xf32>
    %4 = vector.shape_cast %3 : vector<1x128x384xf32> to vector<128x384xf32>
    %c0_6 = arith.constant 0 : index
    %c0_7 = arith.constant 0 : index
    %c0_8 = arith.constant 0 : index
    %5 = vector.load %arg4[%c0_6, %c0_7, %c0_8] : memref<2x128x384xf32, #tpu.memory_space<vmem>>, vector<1x128x384xf32>
    %6 = vector.shape_cast %5 : vector<1x128x384xf32> to vector<128x384xf32>
    %c0_9 = arith.constant 0 : index
    %c0_10 = arith.constant 0 : index
    %7 = vector.load %arg5[%c0_9, %c0_10] : memref<2x384xf32, #tpu.memory_space<vmem>>, vector<1x384xf32>
    %c0_11 = arith.constant 0 : index
    %c0_12 = arith.constant 0 : index
    %8 = vector.load %arg6[%c0_11, %c0_12] : memref<2x384xf32, #tpu.memory_space<vmem>>, vector<1x384xf32>
    %cst_13 = arith.constant dense<0.000000e+00> : vector<16x384xf32>
    %9 = tpu.matmul %2, %4, %cst_13 {dimension_numbers = #tpu.dot_dimension_numbers<[1], [0], [0], [1], [0, 0, 1, 1], [], []>} : vector<16x128xf32>, vector<128x384xf32>, vector<16x384xf32> -> vector<16x384xf32>
    %10 = vector.broadcast %7 : vector<1x384xf32> to vector<16x384xf32>
    %11 = arith.addf %9, %10 : vector<16x384xf32>
    %c0_14 = arith.constant 0 : index
    %c0_15 = arith.constant 0 : index
    %c0_16 = arith.constant 0 : index
    %12 = vector.load %arg2[%c0_14, %c0_15, %c0_16] : memref<2x2x128xf32, #tpu.memory_space<vmem>>, vector<1x2x128xf32>
    %13 = vector.shape_cast %12 : vector<1x2x128xf32> to vector<2x128xf32>
    %cst_17 = arith.constant dense<0.000000e+00> : vector<2x384xf32>
    %14 = tpu.matmul %13, %6, %cst_17 {dimension_numbers = #tpu.dot_dimension_numbers<[1], [0], [0], [1], [0, 0, 1, 1], [], []>} : vector<2x128xf32>, vector<128x384xf32>, vector<2x384xf32> -> vector<2x384xf32>
    %15 = vector.broadcast %8 : vector<1x384xf32> to vector<2x384xf32>
    %16 = arith.addf %14, %15 : vector<2x384xf32>
    %17 = vector.extract_strided_slice %11 {offsets = [0, 0], sizes = [2, 384], strides = [1, 1]} : vector<16x384xf32> to vector<2x384xf32>
    %18 = vector.extract_strided_slice %17 {offsets = [0, 0], sizes = [2, 256], strides = [1, 1]} : vector<2x384xf32> to vector<2x256xf32>
    %19 = vector.extract_strided_slice %16 {offsets = [0, 0], sizes = [2, 256], strides = [1, 1]} : vector<2x384xf32> to vector<2x256xf32>
    %20 = arith.addf %18, %19 : vector<2x256xf32>
    %21 = arith.negf %20 : vector<2x256xf32>
    %22 = math.exp %21 : vector<2x256xf32>
    %cst_18 = arith.constant 1.000000e+00 : f32
    %23 = vector.broadcast %cst_18 : f32 to vector<2x256xf32>
    %24 = arith.addf %23, %22 : vector<2x256xf32>
    %25 = arith.divf %23, %24 : vector<2x256xf32>
    %26 = vector.extract_strided_slice %25 {offsets = [0, 0], sizes = [2, 128], strides = [1, 1]} : vector<2x256xf32> to vector<2x128xf32>
    %27 = vector.extract_strided_slice %25 {offsets = [0, 128], sizes = [2, 128], strides = [1, 1]} : vector<2x256xf32> to vector<2x128xf32>
    %28 = vector.extract_strided_slice %17 {offsets = [0, 256], sizes = [2, 128], strides = [1, 1]} : vector<2x384xf32> to vector<2x128xf32>
    %29 = vector.extract_strided_slice %16 {offsets = [0, 256], sizes = [2, 128], strides = [1, 1]} : vector<2x384xf32> to vector<2x128xf32>
    %30 = arith.mulf %26, %29 : vector<2x128xf32>
    %31 = arith.addf %28, %30 : vector<2x128xf32>
    %32 = math.tanh %31 : vector<2x128xf32>
    %cst_19 = arith.constant 1.000000e+00 : f32
    %33 = vector.broadcast %cst_19 : f32 to vector<2x128xf32>
    %34 = arith.subf %33, %27 : vector<2x128xf32>
    %35 = arith.mulf %34, %32 : vector<2x128xf32>
    %36 = arith.mulf %27, %13 : vector<2x128xf32>
    %37 = arith.addf %35, %36 : vector<2x128xf32>
    %cst_20 = arith.constant dense<0.000000e+00> : vector<2x384xf32>
    %38 = tpu.matmul %37, %6, %cst_20 {dimension_numbers = #tpu.dot_dimension_numbers<[1], [0], [0], [1], [0, 0, 1, 1], [], []>} : vector<2x128xf32>, vector<128x384xf32>, vector<2x384xf32> -> vector<2x384xf32>
    %39 = vector.broadcast %8 : vector<1x384xf32> to vector<2x384xf32>
    %40 = arith.addf %38, %39 : vector<2x384xf32>
    %41 = vector.extract_strided_slice %11 {offsets = [2, 0], sizes = [2, 384], strides = [1, 1]} : vector<16x384xf32> to vector<2x384xf32>
    %42 = vector.extract_strided_slice %41 {offsets = [0, 0], sizes = [2, 256], strides = [1, 1]} : vector<2x384xf32> to vector<2x256xf32>
    %43 = vector.extract_strided_slice %40 {offsets = [0, 0], sizes = [2, 256], strides = [1, 1]} : vector<2x384xf32> to vector<2x256xf32>
    %44 = arith.addf %42, %43 : vector<2x256xf32>
    %45 = arith.negf %44 : vector<2x256xf32>
    %46 = math.exp %45 : vector<2x256xf32>
    %cst_21 = arith.constant 1.000000e+00 : f32
    %47 = vector.broadcast %cst_21 : f32 to vector<2x256xf32>
    %48 = arith.addf %47, %46 : vector<2x256xf32>
    %49 = arith.divf %47, %48 : vector<2x256xf32>
    %50 = vector.extract_strided_slice %49 {offsets = [0, 0], sizes = [2, 128], strides = [1, 1]} : vector<2x256xf32> to vector<2x128xf32>
    %51 = vector.extract_strided_slice %49 {offsets = [0, 128], sizes = [2, 128], strides = [1, 1]} : vector<2x256xf32> to vector<2x128xf32>
    %52 = vector.extract_strided_slice %41 {offsets = [0, 256], sizes = [2, 128], strides = [1, 1]} : vector<2x384xf32> to vector<2x128xf32>
    %53 = vector.extract_strided_slice %40 {offsets = [0, 256], sizes = [2, 128], strides = [1, 1]} : vector<2x384xf32> to vector<2x128xf32>
    %54 = arith.mulf %50, %53 : vector<2x128xf32>
    %55 = arith.addf %52, %54 : vector<2x128xf32>
    %56 = math.tanh %55 : vector<2x128xf32>
    %cst_22 = arith.constant 1.000000e+00 : f32
    %57 = vector.broadcast %cst_22 : f32 to vector<2x128xf32>
    %58 = arith.subf %57, %51 : vector<2x128xf32>
    %59 = arith.mulf %58, %56 : vector<2x128xf32>
    %60 = arith.mulf %51, %37 : vector<2x128xf32>
    %61 = arith.addf %59, %60 : vector<2x128xf32>
    %cst_23 = arith.constant dense<0.000000e+00> : vector<2x384xf32>
    %62 = tpu.matmul %61, %6, %cst_23 {dimension_numbers = #tpu.dot_dimension_numbers<[1], [0], [0], [1], [0, 0, 1, 1], [], []>} : vector<2x128xf32>, vector<128x384xf32>, vector<2x384xf32> -> vector<2x384xf32>
    %63 = vector.broadcast %8 : vector<1x384xf32> to vector<2x384xf32>
    %64 = arith.addf %62, %63 : vector<2x384xf32>
    %65 = vector.extract_strided_slice %11 {offsets = [4, 0], sizes = [2, 384], strides = [1, 1]} : vector<16x384xf32> to vector<2x384xf32>
    %66 = vector.extract_strided_slice %65 {offsets = [0, 0], sizes = [2, 256], strides = [1, 1]} : vector<2x384xf32> to vector<2x256xf32>
    %67 = vector.extract_strided_slice %64 {offsets = [0, 0], sizes = [2, 256], strides = [1, 1]} : vector<2x384xf32> to vector<2x256xf32>
    %68 = arith.addf %66, %67 : vector<2x256xf32>
    %69 = arith.negf %68 : vector<2x256xf32>
    %70 = math.exp %69 : vector<2x256xf32>
    %cst_24 = arith.constant 1.000000e+00 : f32
    %71 = vector.broadcast %cst_24 : f32 to vector<2x256xf32>
    %72 = arith.addf %71, %70 : vector<2x256xf32>
    %73 = arith.divf %71, %72 : vector<2x256xf32>
    %74 = vector.extract_strided_slice %73 {offsets = [0, 0], sizes = [2, 128], strides = [1, 1]} : vector<2x256xf32> to vector<2x128xf32>
    %75 = vector.extract_strided_slice %73 {offsets = [0, 128], sizes = [2, 128], strides = [1, 1]} : vector<2x256xf32> to vector<2x128xf32>
    %76 = vector.extract_strided_slice %65 {offsets = [0, 256], sizes = [2, 128], strides = [1, 1]} : vector<2x384xf32> to vector<2x128xf32>
    %77 = vector.extract_strided_slice %64 {offsets = [0, 256], sizes = [2, 128], strides = [1, 1]} : vector<2x384xf32> to vector<2x128xf32>
    %78 = arith.mulf %74, %77 : vector<2x128xf32>
    %79 = arith.addf %76, %78 : vector<2x128xf32>
    %80 = math.tanh %79 : vector<2x128xf32>
    %cst_25 = arith.constant 1.000000e+00 : f32
    %81 = vector.broadcast %cst_25 : f32 to vector<2x128xf32>
    %82 = arith.subf %81, %75 : vector<2x128xf32>
    %83 = arith.mulf %82, %80 : vector<2x128xf32>
    %84 = arith.mulf %75, %61 : vector<2x128xf32>
    %85 = arith.addf %83, %84 : vector<2x128xf32>
    %cst_26 = arith.constant dense<0.000000e+00> : vector<2x384xf32>
    %86 = tpu.matmul %85, %6, %cst_26 {dimension_numbers = #tpu.dot_dimension_numbers<[1], [0], [0], [1], [0, 0, 1, 1], [], []>} : vector<2x128xf32>, vector<128x384xf32>, vector<2x384xf32> -> vector<2x384xf32>
    %87 = vector.broadcast %8 : vector<1x384xf32> to vector<2x384xf32>
    %88 = arith.addf %86, %87 : vector<2x384xf32>
    %89 = vector.extract_strided_slice %11 {offsets = [6, 0], sizes = [2, 384], strides = [1, 1]} : vector<16x384xf32> to vector<2x384xf32>
    %90 = vector.extract_strided_slice %89 {offsets = [0, 0], sizes = [2, 256], strides = [1, 1]} : vector<2x384xf32> to vector<2x256xf32>
    %91 = vector.extract_strided_slice %88 {offsets = [0, 0], sizes = [2, 256], strides = [1, 1]} : vector<2x384xf32> to vector<2x256xf32>
    %92 = arith.addf %90, %91 : vector<2x256xf32>
    %93 = arith.negf %92 : vector<2x256xf32>
    %94 = math.exp %93 : vector<2x256xf32>
    %cst_27 = arith.constant 1.000000e+00 : f32
    %95 = vector.broadcast %cst_27 : f32 to vector<2x256xf32>
    %96 = arith.addf %95, %94 : vector<2x256xf32>
    %97 = arith.divf %95, %96 : vector<2x256xf32>
    %98 = vector.extract_strided_slice %97 {offsets = [0, 0], sizes = [2, 128], strides = [1, 1]} : vector<2x256xf32> to vector<2x128xf32>
    %99 = vector.extract_strided_slice %97 {offsets = [0, 128], sizes = [2, 128], strides = [1, 1]} : vector<2x256xf32> to vector<2x128xf32>
    %100 = vector.extract_strided_slice %89 {offsets = [0, 256], sizes = [2, 128], strides = [1, 1]} : vector<2x384xf32> to vector<2x128xf32>
    %101 = vector.extract_strided_slice %88 {offsets = [0, 256], sizes = [2, 128], strides = [1, 1]} : vector<2x384xf32> to vector<2x128xf32>
    %102 = arith.mulf %98, %101 : vector<2x128xf32>
    %103 = arith.addf %100, %102 : vector<2x128xf32>
    %104 = math.tanh %103 : vector<2x128xf32>
    %cst_28 = arith.constant 1.000000e+00 : f32
    %105 = vector.broadcast %cst_28 : f32 to vector<2x128xf32>
    %106 = arith.subf %105, %99 : vector<2x128xf32>
    %107 = arith.mulf %106, %104 : vector<2x128xf32>
    %108 = arith.mulf %99, %85 : vector<2x128xf32>
    %109 = arith.addf %107, %108 : vector<2x128xf32>
    %cst_29 = arith.constant dense<0.000000e+00> : vector<2x384xf32>
    %110 = tpu.matmul %109, %6, %cst_29 {dimension_numbers = #tpu.dot_dimension_numbers<[1], [0], [0], [1], [0, 0, 1, 1], [], []>} : vector<2x128xf32>, vector<128x384xf32>, vector<2x384xf32> -> vector<2x384xf32>
    %111 = vector.broadcast %8 : vector<1x384xf32> to vector<2x384xf32>
    %112 = arith.addf %110, %111 : vector<2x384xf32>
    %113 = vector.extract_strided_slice %11 {offsets = [8, 0], sizes = [2, 384], strides = [1, 1]} : vector<16x384xf32> to vector<2x384xf32>
    %114 = vector.extract_strided_slice %113 {offsets = [0, 0], sizes = [2, 256], strides = [1, 1]} : vector<2x384xf32> to vector<2x256xf32>
    %115 = vector.extract_strided_slice %112 {offsets = [0, 0], sizes = [2, 256], strides = [1, 1]} : vector<2x384xf32> to vector<2x256xf32>
    %116 = arith.addf %114, %115 : vector<2x256xf32>
    %117 = arith.negf %116 : vector<2x256xf32>
    %118 = math.exp %117 : vector<2x256xf32>
    %cst_30 = arith.constant 1.000000e+00 : f32
    %119 = vector.broadcast %cst_30 : f32 to vector<2x256xf32>
    %120 = arith.addf %119, %118 : vector<2x256xf32>
    %121 = arith.divf %119, %120 : vector<2x256xf32>
    %122 = vector.extract_strided_slice %121 {offsets = [0, 0], sizes = [2, 128], strides = [1, 1]} : vector<2x256xf32> to vector<2x128xf32>
    %123 = vector.extract_strided_slice %121 {offsets = [0, 128], sizes = [2, 128], strides = [1, 1]} : vector<2x256xf32> to vector<2x128xf32>
    %124 = vector.extract_strided_slice %113 {offsets = [0, 256], sizes = [2, 128], strides = [1, 1]} : vector<2x384xf32> to vector<2x128xf32>
    %125 = vector.extract_strided_slice %112 {offsets = [0, 256], sizes = [2, 128], strides = [1, 1]} : vector<2x384xf32> to vector<2x128xf32>
    %126 = arith.mulf %122, %125 : vector<2x128xf32>
    %127 = arith.addf %124, %126 : vector<2x128xf32>
    %128 = math.tanh %127 : vector<2x128xf32>
    %cst_31 = arith.constant 1.000000e+00 : f32
    %129 = vector.broadcast %cst_31 : f32 to vector<2x128xf32>
    %130 = arith.subf %129, %123 : vector<2x128xf32>
    %131 = arith.mulf %130, %128 : vector<2x128xf32>
    %132 = arith.mulf %123, %109 : vector<2x128xf32>
    %133 = arith.addf %131, %132 : vector<2x128xf32>
    %cst_32 = arith.constant dense<0.000000e+00> : vector<2x384xf32>
    %134 = tpu.matmul %133, %6, %cst_32 {dimension_numbers = #tpu.dot_dimension_numbers<[1], [0], [0], [1], [0, 0, 1, 1], [], []>} : vector<2x128xf32>, vector<128x384xf32>, vector<2x384xf32> -> vector<2x384xf32>
    %135 = vector.broadcast %8 : vector<1x384xf32> to vector<2x384xf32>
    %136 = arith.addf %134, %135 : vector<2x384xf32>
    %137 = vector.extract_strided_slice %11 {offsets = [10, 0], sizes = [2, 384], strides = [1, 1]} : vector<16x384xf32> to vector<2x384xf32>
    %138 = vector.extract_strided_slice %137 {offsets = [0, 0], sizes = [2, 256], strides = [1, 1]} : vector<2x384xf32> to vector<2x256xf32>
    %139 = vector.extract_strided_slice %136 {offsets = [0, 0], sizes = [2, 256], strides = [1, 1]} : vector<2x384xf32> to vector<2x256xf32>
    %140 = arith.addf %138, %139 : vector<2x256xf32>
    %141 = arith.negf %140 : vector<2x256xf32>
    %142 = math.exp %141 : vector<2x256xf32>
    %cst_33 = arith.constant 1.000000e+00 : f32
    %143 = vector.broadcast %cst_33 : f32 to vector<2x256xf32>
    %144 = arith.addf %143, %142 : vector<2x256xf32>
    %145 = arith.divf %143, %144 : vector<2x256xf32>
    %146 = vector.extract_strided_slice %145 {offsets = [0, 0], sizes = [2, 128], strides = [1, 1]} : vector<2x256xf32> to vector<2x128xf32>
    %147 = vector.extract_strided_slice %145 {offsets = [0, 128], sizes = [2, 128], strides = [1, 1]} : vector<2x256xf32> to vector<2x128xf32>
    %148 = vector.extract_strided_slice %137 {offsets = [0, 256], sizes = [2, 128], strides = [1, 1]} : vector<2x384xf32> to vector<2x128xf32>
    %149 = vector.extract_strided_slice %136 {offsets = [0, 256], sizes = [2, 128], strides = [1, 1]} : vector<2x384xf32> to vector<2x128xf32>
    %150 = arith.mulf %146, %149 : vector<2x128xf32>
    %151 = arith.addf %148, %150 : vector<2x128xf32>
    %152 = math.tanh %151 : vector<2x128xf32>
    %cst_34 = arith.constant 1.000000e+00 : f32
    %153 = vector.broadcast %cst_34 : f32 to vector<2x128xf32>
    %154 = arith.subf %153, %147 : vector<2x128xf32>
    %155 = arith.mulf %154, %152 : vector<2x128xf32>
    %156 = arith.mulf %147, %133 : vector<2x128xf32>
    %157 = arith.addf %155, %156 : vector<2x128xf32>
    %cst_35 = arith.constant dense<0.000000e+00> : vector<2x384xf32>
    %158 = tpu.matmul %157, %6, %cst_35 {dimension_numbers = #tpu.dot_dimension_numbers<[1], [0], [0], [1], [0, 0, 1, 1], [], []>} : vector<2x128xf32>, vector<128x384xf32>, vector<2x384xf32> -> vector<2x384xf32>
    %159 = vector.broadcast %8 : vector<1x384xf32> to vector<2x384xf32>
    %160 = arith.addf %158, %159 : vector<2x384xf32>
    %161 = vector.extract_strided_slice %11 {offsets = [12, 0], sizes = [2, 384], strides = [1, 1]} : vector<16x384xf32> to vector<2x384xf32>
    %162 = vector.extract_strided_slice %161 {offsets = [0, 0], sizes = [2, 256], strides = [1, 1]} : vector<2x384xf32> to vector<2x256xf32>
    %163 = vector.extract_strided_slice %160 {offsets = [0, 0], sizes = [2, 256], strides = [1, 1]} : vector<2x384xf32> to vector<2x256xf32>
    %164 = arith.addf %162, %163 : vector<2x256xf32>
    %165 = arith.negf %164 : vector<2x256xf32>
    %166 = math.exp %165 : vector<2x256xf32>
    %cst_36 = arith.constant 1.000000e+00 : f32
    %167 = vector.broadcast %cst_36 : f32 to vector<2x256xf32>
    %168 = arith.addf %167, %166 : vector<2x256xf32>
    %169 = arith.divf %167, %168 : vector<2x256xf32>
    %170 = vector.extract_strided_slice %169 {offsets = [0, 0], sizes = [2, 128], strides = [1, 1]} : vector<2x256xf32> to vector<2x128xf32>
    %171 = vector.extract_strided_slice %169 {offsets = [0, 128], sizes = [2, 128], strides = [1, 1]} : vector<2x256xf32> to vector<2x128xf32>
    %172 = vector.extract_strided_slice %161 {offsets = [0, 256], sizes = [2, 128], strides = [1, 1]} : vector<2x384xf32> to vector<2x128xf32>
    %173 = vector.extract_strided_slice %160 {offsets = [0, 256], sizes = [2, 128], strides = [1, 1]} : vector<2x384xf32> to vector<2x128xf32>
    %174 = arith.mulf %170, %173 : vector<2x128xf32>
    %175 = arith.addf %172, %174 : vector<2x128xf32>
    %176 = math.tanh %175 : vector<2x128xf32>
    %cst_37 = arith.constant 1.000000e+00 : f32
    %177 = vector.broadcast %cst_37 : f32 to vector<2x128xf32>
    %178 = arith.subf %177, %171 : vector<2x128xf32>
    %179 = arith.mulf %178, %176 : vector<2x128xf32>
    %180 = arith.mulf %171, %157 : vector<2x128xf32>
    %181 = arith.addf %179, %180 : vector<2x128xf32>
    %cst_38 = arith.constant dense<0.000000e+00> : vector<2x384xf32>
    %182 = tpu.matmul %181, %6, %cst_38 {dimension_numbers = #tpu.dot_dimension_numbers<[1], [0], [0], [1], [0, 0, 1, 1], [], []>} : vector<2x128xf32>, vector<128x384xf32>, vector<2x384xf32> -> vector<2x384xf32>
    %183 = vector.broadcast %8 : vector<1x384xf32> to vector<2x384xf32>
    %184 = arith.addf %182, %183 : vector<2x384xf32>
    %185 = vector.extract_strided_slice %11 {offsets = [14, 0], sizes = [2, 384], strides = [1, 1]} : vector<16x384xf32> to vector<2x384xf32>
    %186 = vector.extract_strided_slice %185 {offsets = [0, 0], sizes = [2, 256], strides = [1, 1]} : vector<2x384xf32> to vector<2x256xf32>
    %187 = vector.extract_strided_slice %184 {offsets = [0, 0], sizes = [2, 256], strides = [1, 1]} : vector<2x384xf32> to vector<2x256xf32>
    %188 = arith.addf %186, %187 : vector<2x256xf32>
    %189 = arith.negf %188 : vector<2x256xf32>
    %190 = math.exp %189 : vector<2x256xf32>
    %cst_39 = arith.constant 1.000000e+00 : f32
    %191 = vector.broadcast %cst_39 : f32 to vector<2x256xf32>
    %192 = arith.addf %191, %190 : vector<2x256xf32>
    %193 = arith.divf %191, %192 : vector<2x256xf32>
    %194 = vector.extract_strided_slice %193 {offsets = [0, 0], sizes = [2, 128], strides = [1, 1]} : vector<2x256xf32> to vector<2x128xf32>
    %195 = vector.extract_strided_slice %193 {offsets = [0, 128], sizes = [2, 128], strides = [1, 1]} : vector<2x256xf32> to vector<2x128xf32>
    %196 = vector.extract_strided_slice %185 {offsets = [0, 256], sizes = [2, 128], strides = [1, 1]} : vector<2x384xf32> to vector<2x128xf32>
    %197 = vector.extract_strided_slice %184 {offsets = [0, 256], sizes = [2, 128], strides = [1, 1]} : vector<2x384xf32> to vector<2x128xf32>
    %198 = arith.mulf %194, %197 : vector<2x128xf32>
    %199 = arith.addf %196, %198 : vector<2x128xf32>
    %200 = math.tanh %199 : vector<2x128xf32>
    %cst_40 = arith.constant 1.000000e+00 : f32
    %201 = vector.broadcast %cst_40 : f32 to vector<2x128xf32>
    %202 = arith.subf %201, %195 : vector<2x128xf32>
    %203 = arith.mulf %202, %200 : vector<2x128xf32>
    %204 = arith.mulf %195, %181 : vector<2x128xf32>
    %205 = arith.addf %203, %204 : vector<2x128xf32>
    %c0_41 = arith.constant 0 : index
    %c0_42 = arith.constant 0 : index
    %206 = vector.load %arg15[%c0_41, %c0_42] : memref<4x128xf32, #tpu.memory_space<vmem>>, vector<2x128xf32>
    tpu.vector_store %arg15[%c0_41, %c0_42], %205 {strides = array<i32>} : memref<4x128xf32, #tpu.memory_space<vmem>>, vector<2x128xf32>,
    %207 = tpu.concatenate %37, %61, %85, %109, %133, %157, %181, %205 in 0 : vector<2x128xf32>, vector<2x128xf32>, vector<2x128xf32>, vector<2x128xf32>, vector<2x128xf32>, vector<2x128xf32>, vector<2x128xf32>, vector<2x128xf32> -> vector<16x128xf32>
    %c1 = arith.constant 1 : index
    %c0_43 = arith.constant 0 : index
    %c0_44 = arith.constant 0 : index
    %208 = vector.load %arg3[%c1, %c0_43, %c0_44] : memref<2x128x384xf32, #tpu.memory_space<vmem>>, vector<1x128x384xf32>
    %209 = vector.shape_cast %208 : vector<1x128x384xf32> to vector<128x384xf32>
    %c1_45 = arith.constant 1 : index
    %c0_46 = arith.constant 0 : index
    %c0_47 = arith.constant 0 : index
    %210 = vector.load %arg4[%c1_45, %c0_46, %c0_47] : memref<2x128x384xf32, #tpu.memory_space<vmem>>, vector<1x128x384xf32>
    %211 = vector.shape_cast %210 : vector<1x128x384xf32> to vector<128x384xf32>
    %c1_48 = arith.constant 1 : index
    %c0_49 = arith.constant 0 : index
    %212 = vector.load %arg5[%c1_48, %c0_49] : memref<2x384xf32, #tpu.memory_space<vmem>>, vector<1x384xf32>
    %c1_50 = arith.constant 1 : index
    %c0_51 = arith.constant 0 : index
    %213 = vector.load %arg6[%c1_50, %c0_51] : memref<2x384xf32, #tpu.memory_space<vmem>>, vector<1x384xf32>
    %cst_52 = arith.constant dense<0.000000e+00> : vector<16x384xf32>
    %214 = tpu.matmul %207, %209, %cst_52 {dimension_numbers = #tpu.dot_dimension_numbers<[1], [0], [0], [1], [0, 0, 1, 1], [], []>} : vector<16x128xf32>, vector<128x384xf32>, vector<16x384xf32> -> vector<16x384xf32>
    %215 = vector.broadcast %212 : vector<1x384xf32> to vector<16x384xf32>
    %216 = arith.addf %214, %215 : vector<16x384xf32>
    %c1_53 = arith.constant 1 : index
    %c0_54 = arith.constant 0 : index
    %c0_55 = arith.constant 0 : index
    %217 = vector.load %arg2[%c1_53, %c0_54, %c0_55] : memref<2x2x128xf32, #tpu.memory_space<vmem>>, vector<1x2x128xf32>
    %218 = vector.shape_cast %217 : vector<1x2x128xf32> to vector<2x128xf32>
    %cst_56 = arith.constant dense<0.000000e+00> : vector<2x384xf32>
    %219 = tpu.matmul %218, %211, %cst_56 {dimension_numbers = #tpu.dot_dimension_numbers<[1], [0], [0], [1], [0, 0, 1, 1], [], []>} : vector<2x128xf32>, vector<128x384xf32>, vector<2x384xf32> -> vector<2x384xf32>
    %220 = vector.broadcast %213 : vector<1x384xf32> to vector<2x384xf32>
    %221 = arith.addf %219, %220 : vector<2x384xf32>
    %222 = vector.extract_strided_slice %216 {offsets = [0, 0], sizes = [2, 384], strides = [1, 1]} : vector<16x384xf32> to vector<2x384xf32>
    %223 = vector.extract_strided_slice %222 {offsets = [0, 0], sizes = [2, 256], strides = [1, 1]} : vector<2x384xf32> to vector<2x256xf32>
    %224 = vector.extract_strided_slice %221 {offsets = [0, 0], sizes = [2, 256], strides = [1, 1]} : vector<2x384xf32> to vector<2x256xf32>
    %225 = arith.addf %223, %224 : vector<2x256xf32>
    %226 = arith.negf %225 : vector<2x256xf32>
    %227 = math.exp %226 : vector<2x256xf32>
    %cst_57 = arith.constant 1.000000e+00 : f32
    %228 = vector.broadcast %cst_57 : f32 to vector<2x256xf32>
    %229 = arith.addf %228, %227 : vector<2x256xf32>
    %230 = arith.divf %228, %229 : vector<2x256xf32>
    %231 = vector.extract_strided_slice %230 {offsets = [0, 0], sizes = [2, 128], strides = [1, 1]} : vector<2x256xf32> to vector<2x128xf32>
    %232 = vector.extract_strided_slice %230 {offsets = [0, 128], sizes = [2, 128], strides = [1, 1]} : vector<2x256xf32> to vector<2x128xf32>
    %233 = vector.extract_strided_slice %222 {offsets = [0, 256], sizes = [2, 128], strides = [1, 1]} : vector<2x384xf32> to vector<2x128xf32>
    %234 = vector.extract_strided_slice %221 {offsets = [0, 256], sizes = [2, 128], strides = [1, 1]} : vector<2x384xf32> to vector<2x128xf32>
    %235 = arith.mulf %231, %234 : vector<2x128xf32>
    %236 = arith.addf %233, %235 : vector<2x128xf32>
    %237 = math.tanh %236 : vector<2x128xf32>
    %cst_58 = arith.constant 1.000000e+00 : f32
    %238 = vector.broadcast %cst_58 : f32 to vector<2x128xf32>
    %239 = arith.subf %238, %232 : vector<2x128xf32>
    %240 = arith.mulf %239, %237 : vector<2x128xf32>
    %241 = arith.mulf %232, %218 : vector<2x128xf32>
    %242 = arith.addf %240, %241 : vector<2x128xf32>
    %cst_59 = arith.constant dense<0.000000e+00> : vector<2x384xf32>
    %243 = tpu.matmul %242, %211, %cst_59 {dimension_numbers = #tpu.dot_dimension_numbers<[1], [0], [0], [1], [0, 0, 1, 1], [], []>} : vector<2x128xf32>, vector<128x384xf32>, vector<2x384xf32> -> vector<2x384xf32>
    %244 = vector.broadcast %213 : vector<1x384xf32> to vector<2x384xf32>
    %245 = arith.addf %243, %244 : vector<2x384xf32>
    %246 = vector.extract_strided_slice %216 {offsets = [2, 0], sizes = [2, 384], strides = [1, 1]} : vector<16x384xf32> to vector<2x384xf32>
    %247 = vector.extract_strided_slice %246 {offsets = [0, 0], sizes = [2, 256], strides = [1, 1]} : vector<2x384xf32> to vector<2x256xf32>
    %248 = vector.extract_strided_slice %245 {offsets = [0, 0], sizes = [2, 256], strides = [1, 1]} : vector<2x384xf32> to vector<2x256xf32>
    %249 = arith.addf %247, %248 : vector<2x256xf32>
    %250 = arith.negf %249 : vector<2x256xf32>
    %251 = math.exp %250 : vector<2x256xf32>
    %cst_60 = arith.constant 1.000000e+00 : f32
    %252 = vector.broadcast %cst_60 : f32 to vector<2x256xf32>
    %253 = arith.addf %252, %251 : vector<2x256xf32>
    %254 = arith.divf %252, %253 : vector<2x256xf32>
    %255 = vector.extract_strided_slice %254 {offsets = [0, 0], sizes = [2, 128], strides = [1, 1]} : vector<2x256xf32> to vector<2x128xf32>
    %256 = vector.extract_strided_slice %254 {offsets = [0, 128], sizes = [2, 128], strides = [1, 1]} : vector<2x256xf32> to vector<2x128xf32>
    %257 = vector.extract_strided_slice %246 {offsets = [0, 256], sizes = [2, 128], strides = [1, 1]} : vector<2x384xf32> to vector<2x128xf32>
    %258 = vector.extract_strided_slice %245 {offsets = [0, 256], sizes = [2, 128], strides = [1, 1]} : vector<2x384xf32> to vector<2x128xf32>
    %259 = arith.mulf %255, %258 : vector<2x128xf32>
    %260 = arith.addf %257, %259 : vector<2x128xf32>
    %261 = math.tanh %260 : vector<2x128xf32>
    %cst_61 = arith.constant 1.000000e+00 : f32
    %262 = vector.broadcast %cst_61 : f32 to vector<2x128xf32>
    %263 = arith.subf %262, %256 : vector<2x128xf32>
    %264 = arith.mulf %263, %261 : vector<2x128xf32>
    %265 = arith.mulf %256, %242 : vector<2x128xf32>
    %266 = arith.addf %264, %265 : vector<2x128xf32>
    %cst_62 = arith.constant dense<0.000000e+00> : vector<2x384xf32>
    %267 = tpu.matmul %266, %211, %cst_62 {dimension_numbers = #tpu.dot_dimension_numbers<[1], [0], [0], [1], [0, 0, 1, 1], [], []>} : vector<2x128xf32>, vector<128x384xf32>, vector<2x384xf32> -> vector<2x384xf32>
    %268 = vector.broadcast %213 : vector<1x384xf32> to vector<2x384xf32>
    %269 = arith.addf %267, %268 : vector<2x384xf32>
    %270 = vector.extract_strided_slice %216 {offsets = [4, 0], sizes = [2, 384], strides = [1, 1]} : vector<16x384xf32> to vector<2x384xf32>
    %271 = vector.extract_strided_slice %270 {offsets = [0, 0], sizes = [2, 256], strides = [1, 1]} : vector<2x384xf32> to vector<2x256xf32>
    %272 = vector.extract_strided_slice %269 {offsets = [0, 0], sizes = [2, 256], strides = [1, 1]} : vector<2x384xf32> to vector<2x256xf32>
    %273 = arith.addf %271, %272 : vector<2x256xf32>
    %274 = arith.negf %273 : vector<2x256xf32>
    %275 = math.exp %274 : vector<2x256xf32>
    %cst_63 = arith.constant 1.000000e+00 : f32
    %276 = vector.broadcast %cst_63 : f32 to vector<2x256xf32>
    %277 = arith.addf %276, %275 : vector<2x256xf32>
    %278 = arith.divf %276, %277 : vector<2x256xf32>
    %279 = vector.extract_strided_slice %278 {offsets = [0, 0], sizes = [2, 128], strides = [1, 1]} : vector<2x256xf32> to vector<2x128xf32>
    %280 = vector.extract_strided_slice %278 {offsets = [0, 128], sizes = [2, 128], strides = [1, 1]} : vector<2x256xf32> to vector<2x128xf32>
    %281 = vector.extract_strided_slice %270 {offsets = [0, 256], sizes = [2, 128], strides = [1, 1]} : vector<2x384xf32> to vector<2x128xf32>
    %282 = vector.extract_strided_slice %269 {offsets = [0, 256], sizes = [2, 128], strides = [1, 1]} : vector<2x384xf32> to vector<2x128xf32>
    %283 = arith.mulf %279, %282 : vector<2x128xf32>
    %284 = arith.addf %281, %283 : vector<2x128xf32>
    %285 = math.tanh %284 : vector<2x128xf32>
    %cst_64 = arith.constant 1.000000e+00 : f32
    %286 = vector.broadcast %cst_64 : f32 to vector<2x128xf32>
    %287 = arith.subf %286, %280 : vector<2x128xf32>
    %288 = arith.mulf %287, %285 : vector<2x128xf32>
    %289 = arith.mulf %280, %266 : vector<2x128xf32>
    %290 = arith.addf %288, %289 : vector<2x128xf32>
    %cst_65 = arith.constant dense<0.000000e+00> : vector<2x384xf32>
    %291 = tpu.matmul %290, %211, %cst_65 {dimension_numbers = #tpu.dot_dimension_numbers<[1], [0], [0], [1], [0, 0, 1, 1], [], []>} : vector<2x128xf32>, vector<128x384xf32>, vector<2x384xf32> -> vector<2x384xf32>
    %292 = vector.broadcast %213 : vector<1x384xf32> to vector<2x384xf32>
    %293 = arith.addf %291, %292 : vector<2x384xf32>
    %294 = vector.extract_strided_slice %216 {offsets = [6, 0], sizes = [2, 384], strides = [1, 1]} : vector<16x384xf32> to vector<2x384xf32>
    %295 = vector.extract_strided_slice %294 {offsets = [0, 0], sizes = [2, 256], strides = [1, 1]} : vector<2x384xf32> to vector<2x256xf32>
    %296 = vector.extract_strided_slice %293 {offsets = [0, 0], sizes = [2, 256], strides = [1, 1]} : vector<2x384xf32> to vector<2x256xf32>
    %297 = arith.addf %295, %296 : vector<2x256xf32>
    %298 = arith.negf %297 : vector<2x256xf32>
    %299 = math.exp %298 : vector<2x256xf32>
    %cst_66 = arith.constant 1.000000e+00 : f32
    %300 = vector.broadcast %cst_66 : f32 to vector<2x256xf32>
    %301 = arith.addf %300, %299 : vector<2x256xf32>
    %302 = arith.divf %300, %301 : vector<2x256xf32>
    %303 = vector.extract_strided_slice %302 {offsets = [0, 0], sizes = [2, 128], strides = [1, 1]} : vector<2x256xf32> to vector<2x128xf32>
    %304 = vector.extract_strided_slice %302 {offsets = [0, 128], sizes = [2, 128], strides = [1, 1]} : vector<2x256xf32> to vector<2x128xf32>
    %305 = vector.extract_strided_slice %294 {offsets = [0, 256], sizes = [2, 128], strides = [1, 1]} : vector<2x384xf32> to vector<2x128xf32>
    %306 = vector.extract_strided_slice %293 {offsets = [0, 256], sizes = [2, 128], strides = [1, 1]} : vector<2x384xf32> to vector<2x128xf32>
    %307 = arith.mulf %303, %306 : vector<2x128xf32>
    %308 = arith.addf %305, %307 : vector<2x128xf32>
    %309 = math.tanh %308 : vector<2x128xf32>
    %cst_67 = arith.constant 1.000000e+00 : f32
    %310 = vector.broadcast %cst_67 : f32 to vector<2x128xf32>
    %311 = arith.subf %310, %304 : vector<2x128xf32>
    %312 = arith.mulf %311, %309 : vector<2x128xf32>
    %313 = arith.mulf %304, %290 : vector<2x128xf32>
    %314 = arith.addf %312, %313 : vector<2x128xf32>
    %cst_68 = arith.constant dense<0.000000e+00> : vector<2x384xf32>
    %315 = tpu.matmul %314, %211, %cst_68 {dimension_numbers = #tpu.dot_dimension_numbers<[1], [0], [0], [1], [0, 0, 1, 1], [], []>} : vector<2x128xf32>, vector<128x384xf32>, vector<2x384xf32> -> vector<2x384xf32>
    %316 = vector.broadcast %213 : vector<1x384xf32> to vector<2x384xf32>
    %317 = arith.addf %315, %316 : vector<2x384xf32>
    %318 = vector.extract_strided_slice %216 {offsets = [8, 0], sizes = [2, 384], strides = [1, 1]} : vector<16x384xf32> to vector<2x384xf32>
    %319 = vector.extract_strided_slice %318 {offsets = [0, 0], sizes = [2, 256], strides = [1, 1]} : vector<2x384xf32> to vector<2x256xf32>
    %320 = vector.extract_strided_slice %317 {offsets = [0, 0], sizes = [2, 256], strides = [1, 1]} : vector<2x384xf32> to vector<2x256xf32>
    %321 = arith.addf %319, %320 : vector<2x256xf32>
    %322 = arith.negf %321 : vector<2x256xf32>
    %323 = math.exp %322 : vector<2x256xf32>
    %cst_69 = arith.constant 1.000000e+00 : f32
    %324 = vector.broadcast %cst_69 : f32 to vector<2x256xf32>
    %325 = arith.addf %324, %323 : vector<2x256xf32>
    %326 = arith.divf %324, %325 : vector<2x256xf32>
    %327 = vector.extract_strided_slice %326 {offsets = [0, 0], sizes = [2, 128], strides = [1, 1]} : vector<2x256xf32> to vector<2x128xf32>
    %328 = vector.extract_strided_slice %326 {offsets = [0, 128], sizes = [2, 128], strides = [1, 1]} : vector<2x256xf32> to vector<2x128xf32>
    %329 = vector.extract_strided_slice %318 {offsets = [0, 256], sizes = [2, 128], strides = [1, 1]} : vector<2x384xf32> to vector<2x128xf32>
    %330 = vector.extract_strided_slice %317 {offsets = [0, 256], sizes = [2, 128], strides = [1, 1]} : vector<2x384xf32> to vector<2x128xf32>
    %331 = arith.mulf %327, %330 : vector<2x128xf32>
    %332 = arith.addf %329, %331 : vector<2x128xf32>
    %333 = math.tanh %332 : vector<2x128xf32>
    %cst_70 = arith.constant 1.000000e+00 : f32
    %334 = vector.broadcast %cst_70 : f32 to vector<2x128xf32>
    %335 = arith.subf %334, %328 : vector<2x128xf32>
    %336 = arith.mulf %335, %333 : vector<2x128xf32>
    %337 = arith.mulf %328, %314 : vector<2x128xf32>
    %338 = arith.addf %336, %337 : vector<2x128xf32>
    %cst_71 = arith.constant dense<0.000000e+00> : vector<2x384xf32>
    %339 = tpu.matmul %338, %211, %cst_71 {dimension_numbers = #tpu.dot_dimension_numbers<[1], [0], [0], [1], [0, 0, 1, 1], [], []>} : vector<2x128xf32>, vector<128x384xf32>, vector<2x384xf32> -> vector<2x384xf32>
    %340 = vector.broadcast %213 : vector<1x384xf32> to vector<2x384xf32>
    %341 = arith.addf %339, %340 : vector<2x384xf32>
    %342 = vector.extract_strided_slice %216 {offsets = [10, 0], sizes = [2, 384], strides = [1, 1]} : vector<16x384xf32> to vector<2x384xf32>
    %343 = vector.extract_strided_slice %342 {offsets = [0, 0], sizes = [2, 256], strides = [1, 1]} : vector<2x384xf32> to vector<2x256xf32>
    %344 = vector.extract_strided_slice %341 {offsets = [0, 0], sizes = [2, 256], strides = [1, 1]} : vector<2x384xf32> to vector<2x256xf32>
    %345 = arith.addf %343, %344 : vector<2x256xf32>
    %346 = arith.negf %345 : vector<2x256xf32>
    %347 = math.exp %346 : vector<2x256xf32>
    %cst_72 = arith.constant 1.000000e+00 : f32
    %348 = vector.broadcast %cst_72 : f32 to vector<2x256xf32>
    %349 = arith.addf %348, %347 : vector<2x256xf32>
    %350 = arith.divf %348, %349 : vector<2x256xf32>
    %351 = vector.extract_strided_slice %350 {offsets = [0, 0], sizes = [2, 128], strides = [1, 1]} : vector<2x256xf32> to vector<2x128xf32>
    %352 = vector.extract_strided_slice %350 {offsets = [0, 128], sizes = [2, 128], strides = [1, 1]} : vector<2x256xf32> to vector<2x128xf32>
    %353 = vector.extract_strided_slice %342 {offsets = [0, 256], sizes = [2, 128], strides = [1, 1]} : vector<2x384xf32> to vector<2x128xf32>
    %354 = vector.extract_strided_slice %341 {offsets = [0, 256], sizes = [2, 128], strides = [1, 1]} : vector<2x384xf32> to vector<2x128xf32>
    %355 = arith.mulf %351, %354 : vector<2x128xf32>
    %356 = arith.addf %353, %355 : vector<2x128xf32>
    %357 = math.tanh %356 : vector<2x128xf32>
    %cst_73 = arith.constant 1.000000e+00 : f32
    %358 = vector.broadcast %cst_73 : f32 to vector<2x128xf32>
    %359 = arith.subf %358, %352 : vector<2x128xf32>
    %360 = arith.mulf %359, %357 : vector<2x128xf32>
    %361 = arith.mulf %352, %338 : vector<2x128xf32>
    %362 = arith.addf %360, %361 : vector<2x128xf32>
    %cst_74 = arith.constant dense<0.000000e+00> : vector<2x384xf32>
    %363 = tpu.matmul %362, %211, %cst_74 {dimension_numbers = #tpu.dot_dimension_numbers<[1], [0], [0], [1], [0, 0, 1, 1], [], []>} : vector<2x128xf32>, vector<128x384xf32>, vector<2x384xf32> -> vector<2x384xf32>
    %364 = vector.broadcast %213 : vector<1x384xf32> to vector<2x384xf32>
    %365 = arith.addf %363, %364 : vector<2x384xf32>
    %366 = vector.extract_strided_slice %216 {offsets = [12, 0], sizes = [2, 384], strides = [1, 1]} : vector<16x384xf32> to vector<2x384xf32>
    %367 = vector.extract_strided_slice %366 {offsets = [0, 0], sizes = [2, 256], strides = [1, 1]} : vector<2x384xf32> to vector<2x256xf32>
    %368 = vector.extract_strided_slice %365 {offsets = [0, 0], sizes = [2, 256], strides = [1, 1]} : vector<2x384xf32> to vector<2x256xf32>
    %369 = arith.addf %367, %368 : vector<2x256xf32>
    %370 = arith.negf %369 : vector<2x256xf32>
    %371 = math.exp %370 : vector<2x256xf32>
    %cst_75 = arith.constant 1.000000e+00 : f32
    %372 = vector.broadcast %cst_75 : f32 to vector<2x256xf32>
    %373 = arith.addf %372, %371 : vector<2x256xf32>
    %374 = arith.divf %372, %373 : vector<2x256xf32>
    %375 = vector.extract_strided_slice %374 {offsets = [0, 0], sizes = [2, 128], strides = [1, 1]} : vector<2x256xf32> to vector<2x128xf32>
    %376 = vector.extract_strided_slice %374 {offsets = [0, 128], sizes = [2, 128], strides = [1, 1]} : vector<2x256xf32> to vector<2x128xf32>
    %377 = vector.extract_strided_slice %366 {offsets = [0, 256], sizes = [2, 128], strides = [1, 1]} : vector<2x384xf32> to vector<2x128xf32>
    %378 = vector.extract_strided_slice %365 {offsets = [0, 256], sizes = [2, 128], strides = [1, 1]} : vector<2x384xf32> to vector<2x128xf32>
    %379 = arith.mulf %375, %378 : vector<2x128xf32>
    %380 = arith.addf %377, %379 : vector<2x128xf32>
    %381 = math.tanh %380 : vector<2x128xf32>
    %cst_76 = arith.constant 1.000000e+00 : f32
    %382 = vector.broadcast %cst_76 : f32 to vector<2x128xf32>
    %383 = arith.subf %382, %376 : vector<2x128xf32>
    %384 = arith.mulf %383, %381 : vector<2x128xf32>
    %385 = arith.mulf %376, %362 : vector<2x128xf32>
    %386 = arith.addf %384, %385 : vector<2x128xf32>
    %cst_77 = arith.constant dense<0.000000e+00> : vector<2x384xf32>
    %387 = tpu.matmul %386, %211, %cst_77 {dimension_numbers = #tpu.dot_dimension_numbers<[1], [0], [0], [1], [0, 0, 1, 1], [], []>} : vector<2x128xf32>, vector<128x384xf32>, vector<2x384xf32> -> vector<2x384xf32>
    %388 = vector.broadcast %213 : vector<1x384xf32> to vector<2x384xf32>
    %389 = arith.addf %387, %388 : vector<2x384xf32>
    %390 = vector.extract_strided_slice %216 {offsets = [14, 0], sizes = [2, 384], strides = [1, 1]} : vector<16x384xf32> to vector<2x384xf32>
    %391 = vector.extract_strided_slice %390 {offsets = [0, 0], sizes = [2, 256], strides = [1, 1]} : vector<2x384xf32> to vector<2x256xf32>
    %392 = vector.extract_strided_slice %389 {offsets = [0, 0], sizes = [2, 256], strides = [1, 1]} : vector<2x384xf32> to vector<2x256xf32>
    %393 = arith.addf %391, %392 : vector<2x256xf32>
    %394 = arith.negf %393 : vector<2x256xf32>
    %395 = math.exp %394 : vector<2x256xf32>
    %cst_78 = arith.constant 1.000000e+00 : f32
    %396 = vector.broadcast %cst_78 : f32 to vector<2x256xf32>
    %397 = arith.addf %396, %395 : vector<2x256xf32>
    %398 = arith.divf %396, %397 : vector<2x256xf32>
    %399 = vector.extract_strided_slice %398 {offsets = [0, 0], sizes = [2, 128], strides = [1, 1]} : vector<2x256xf32> to vector<2x128xf32>
    %400 = vector.extract_strided_slice %398 {offsets = [0, 128], sizes = [2, 128], strides = [1, 1]} : vector<2x256xf32> to vector<2x128xf32>
    %401 = vector.extract_strided_slice %390 {offsets = [0, 256], sizes = [2, 128], strides = [1, 1]} : vector<2x384xf32> to vector<2x128xf32>
    %402 = vector.extract_strided_slice %389 {offsets = [0, 256], sizes = [2, 128], strides = [1, 1]} : vector<2x384xf32> to vector<2x128xf32>
    %403 = arith.mulf %399, %402 : vector<2x128xf32>
    %404 = arith.addf %401, %403 : vector<2x128xf32>
    %405 = math.tanh %404 : vector<2x128xf32>
    %cst_79 = arith.constant 1.000000e+00 : f32
    %406 = vector.broadcast %cst_79 : f32 to vector<2x128xf32>
    %407 = arith.subf %406, %400 : vector<2x128xf32>
    %408 = arith.mulf %407, %405 : vector<2x128xf32>
    %409 = arith.mulf %400, %386 : vector<2x128xf32>
    %410 = arith.addf %408, %409 : vector<2x128xf32>
    %c2 = arith.constant 2 : index
    %c0_80 = arith.constant 0 : index
    %411 = vector.load %arg15[%c2, %c0_80] : memref<4x128xf32, #tpu.memory_space<vmem>>, vector<2x128xf32>
    tpu.vector_store %arg15[%c2, %c0_80], %410 {strides = array<i32>} : memref<4x128xf32, #tpu.memory_space<vmem>>, vector<2x128xf32>,
    %412 = vector.extract_strided_slice %242 {offsets = [0, 0], sizes = [1, 128], strides = [1, 1]} : vector<2x128xf32> to vector<1x128xf32>
    %413 = vector.extract_strided_slice %266 {offsets = [0, 0], sizes = [1, 128], strides = [1, 1]} : vector<2x128xf32> to vector<1x128xf32>
    %414 = vector.extract_strided_slice %290 {offsets = [0, 0], sizes = [1, 128], strides = [1, 1]} : vector<2x128xf32> to vector<1x128xf32>
    %415 = vector.extract_strided_slice %314 {offsets = [0, 0], sizes = [1, 128], strides = [1, 1]} : vector<2x128xf32> to vector<1x128xf32>
    %416 = vector.extract_strided_slice %338 {offsets = [0, 0], sizes = [1, 128], strides = [1, 1]} : vector<2x128xf32> to vector<1x128xf32>
    %417 = vector.extract_strided_slice %362 {offsets = [0, 0], sizes = [1, 128], strides = [1, 1]} : vector<2x128xf32> to vector<1x128xf32>
    %418 = vector.extract_strided_slice %386 {offsets = [0, 0], sizes = [1, 128], strides = [1, 1]} : vector<2x128xf32> to vector<1x128xf32>
    %419 = vector.extract_strided_slice %410 {offsets = [0, 0], sizes = [1, 128], strides = [1, 1]} : vector<2x128xf32> to vector<1x128xf32>
    %420 = tpu.concatenate %412, %413, %414, %415, %416, %417, %418, %419 in 0 : vector<1x128xf32>, vector<1x128xf32>, vector<1x128xf32>, vector<1x128xf32>, vector<1x128xf32>, vector<1x128xf32>, vector<1x128xf32>, vector<1x128xf32> -> vector<8x128xf32>
    %c0_81 = arith.constant 0 : index
    %c0_82 = arith.constant 0 : index
    %c0_83 = arith.constant 0 : index
    %421 = vector.load %arg7[%c0_81, %c0_82, %c0_83] : memref<2x128x128xf32, #tpu.memory_space<vmem>>, vector<1x128x128xf32>
    %422 = vector.shape_cast %421 : vector<1x128x128xf32> to vector<128x128xf32>
    %cst_84 = arith.constant dense<0.000000e+00> : vector<8x128xf32>
    %423 = tpu.matmul %420, %422, %cst_84 {dimension_numbers = #tpu.dot_dimension_numbers<[1], [0], [0], [1], [0, 0, 1, 1], [], []>} : vector<8x128xf32>, vector<128x128xf32>, vector<8x128xf32> -> vector<8x128xf32>
    %c0_85 = arith.constant 0 : index
    %c0_86 = arith.constant 0 : index
    %424 = vector.load %arg8[%c0_85, %c0_86] : memref<128x128xf32, #tpu.memory_space<vmem>>, vector<128x128xf32>
    %cst_87 = arith.constant dense<0.000000e+00> : vector<8x128xf32>
    %425 = tpu.matmul %423, %424, %cst_87 {dimension_numbers = #tpu.dot_dimension_numbers<[1], [0], [0], [1], [0, 0, 1, 1], [], []>} : vector<8x128xf32>, vector<128x128xf32>, vector<8x128xf32> -> vector<8x128xf32>
    %c0_88 = arith.constant 0 : index
    %c0_89 = arith.constant 0 : index
    %426 = vector.load %arg9[%c0_88, %c0_89] : memref<1x128xf32, #tpu.memory_space<vmem>>, vector<1x128xf32>
    %427 = vector.broadcast %426 : vector<1x128xf32> to vector<8x128xf32>
    %428 = arith.addf %425, %427 : vector<8x128xf32>
    %cst_90 = arith.constant 0.000000e+00 : f32
    %429 = vector.broadcast %cst_90 : f32 to vector<8x128xf32>
    %430 = arith.cmpf ogt, %428, %429 : vector<8x128xf32>
    %cst_91 = arith.constant 0.00999999977 : f32
    %431 = vector.broadcast %cst_91 : f32 to vector<8x128xf32>
    %432 = arith.mulf %431, %428 : vector<8x128xf32>
    %433 = arith.select %430, %428, %432 : vector<8x128xi1>, vector<8x128xf32>
    %c0_92 = arith.constant 0 : index
    %c0_93 = arith.constant 0 : index
    %434 = vector.load %arg10[%c0_92, %c0_93] : memref<8x1xf32, #tpu.memory_space<vmem>>, vector<8x1xf32>
    %435 = vector.broadcast %434 : vector<8x1xf32> to vector<8x128xf32>
    %436 = arith.mulf %433, %435 : vector<8x128xf32>
    %c0_94 = arith.constant 0 : index
    %c0_95 = arith.constant 0 : index
    %437 = vector.load %arg11[%c0_94, %c0_95] : memref<8x1xf32, #tpu.memory_space<vmem>>, vector<8x1xf32>
    %438 = vector.broadcast %437 : vector<8x1xf32> to vector<8x128xf32>
    %439 = arith.addf %436, %438 : vector<8x128xf32>
    %c0_96 = arith.constant 0 : index
    %c0_97 = arith.constant 0 : index
    %440 = vector.load %arg12[%c0_96, %c0_97] : memref<128x128xf32, #tpu.memory_space<vmem>>, vector<128x128xf32>
    %cst_98 = arith.constant dense<0.000000e+00> : vector<8x128xf32>
    %441 = tpu.matmul %439, %440, %cst_98 {dimension_numbers = #tpu.dot_dimension_numbers<[1], [0], [0], [1], [0, 0, 1, 1], [], []>} : vector<8x128xf32>, vector<128x128xf32>, vector<8x128xf32> -> vector<8x128xf32>
    %c0_99 = arith.constant 0 : index
    %c0_100 = arith.constant 0 : index
    %442 = vector.load %arg13[%c0_99, %c0_100] : memref<1x128xf32, #tpu.memory_space<vmem>>, vector<1x128xf32>
    %443 = vector.broadcast %442 : vector<1x128xf32> to vector<8x128xf32>
    %444 = arith.addf %441, %443 : vector<8x128xf32>
    %c0_101 = arith.constant 0 : index
    %c0_102 = arith.constant 0 : index
    %445 = vector.load %arg14[%c0_101, %c0_102] : memref<16x128xf32, #tpu.memory_space<vmem>>, vector<8x128xf32>
    tpu.vector_store %arg14[%c0_101, %c0_102], %444 {strides = array<i32>} : memref<16x128xf32, #tpu.memory_space<vmem>>, vector<8x128xf32>,
    %446 = vector.extract_strided_slice %242 {offsets = [1, 0], sizes = [1, 128], strides = [1, 1]} : vector<2x128xf32> to vector<1x128xf32>
    %447 = vector.extract_strided_slice %266 {offsets = [1, 0], sizes = [1, 128], strides = [1, 1]} : vector<2x128xf32> to vector<1x128xf32>
    %448 = vector.extract_strided_slice %290 {offsets = [1, 0], sizes = [1, 128], strides = [1, 1]} : vector<2x128xf32> to vector<1x128xf32>
    %449 = vector.extract_strided_slice %314 {offsets = [1, 0], sizes = [1, 128], strides = [1, 1]} : vector<2x128xf32> to vector<1x128xf32>
    %450 = vector.extract_strided_slice %338 {offsets = [1, 0], sizes = [1, 128], strides = [1, 1]} : vector<2x128xf32> to vector<1x128xf32>
    %451 = vector.extract_strided_slice %362 {offsets = [1, 0], sizes = [1, 128], strides = [1, 1]} : vector<2x128xf32> to vector<1x128xf32>
    %452 = vector.extract_strided_slice %386 {offsets = [1, 0], sizes = [1, 128], strides = [1, 1]} : vector<2x128xf32> to vector<1x128xf32>
    %453 = vector.extract_strided_slice %410 {offsets = [1, 0], sizes = [1, 128], strides = [1, 1]} : vector<2x128xf32> to vector<1x128xf32>
    %454 = tpu.concatenate %446, %447, %448, %449, %450, %451, %452, %453 in 0 : vector<1x128xf32>, vector<1x128xf32>, vector<1x128xf32>, vector<1x128xf32>, vector<1x128xf32>, vector<1x128xf32>, vector<1x128xf32>, vector<1x128xf32> -> vector<8x128xf32>
    %c1_103 = arith.constant 1 : index
    %c0_104 = arith.constant 0 : index
    %c0_105 = arith.constant 0 : index
    %455 = vector.load %arg7[%c1_103, %c0_104, %c0_105] : memref<2x128x128xf32, #tpu.memory_space<vmem>>, vector<1x128x128xf32>
    %456 = vector.shape_cast %455 : vector<1x128x128xf32> to vector<128x128xf32>
    %cst_106 = arith.constant dense<0.000000e+00> : vector<8x128xf32>
    %457 = tpu.matmul %454, %456, %cst_106 {dimension_numbers = #tpu.dot_dimension_numbers<[1], [0], [0], [1], [0, 0, 1, 1], [], []>} : vector<8x128xf32>, vector<128x128xf32>, vector<8x128xf32> -> vector<8x128xf32>
    %c0_107 = arith.constant 0 : index
    %c0_108 = arith.constant 0 : index
    %458 = vector.load %arg8[%c0_107, %c0_108] : memref<128x128xf32, #tpu.memory_space<vmem>>, vector<128x128xf32>
    %cst_109 = arith.constant dense<0.000000e+00> : vector<8x128xf32>
    %459 = tpu.matmul %457, %458, %cst_109 {dimension_numbers = #tpu.dot_dimension_numbers<[1], [0], [0], [1], [0, 0, 1, 1], [], []>} : vector<8x128xf32>, vector<128x128xf32>, vector<8x128xf32> -> vector<8x128xf32>
    %c0_110 = arith.constant 0 : index
    %c0_111 = arith.constant 0 : index
    %460 = vector.load %arg9[%c0_110, %c0_111] : memref<1x128xf32, #tpu.memory_space<vmem>>, vector<1x128xf32>
    %461 = vector.broadcast %460 : vector<1x128xf32> to vector<8x128xf32>
    %462 = arith.addf %459, %461 : vector<8x128xf32>
    %cst_112 = arith.constant 0.000000e+00 : f32
    %463 = vector.broadcast %cst_112 : f32 to vector<8x128xf32>
    %464 = arith.cmpf ogt, %462, %463 : vector<8x128xf32>
    %cst_113 = arith.constant 0.00999999977 : f32
    %465 = vector.broadcast %cst_113 : f32 to vector<8x128xf32>
    %466 = arith.mulf %465, %462 : vector<8x128xf32>
    %467 = arith.select %464, %462, %466 : vector<8x128xi1>, vector<8x128xf32>
    %c0_114 = arith.constant 0 : index
    %c0_115 = arith.constant 0 : index
    %468 = vector.load %arg10[%c0_114, %c0_115] : memref<8x1xf32, #tpu.memory_space<vmem>>, vector<8x1xf32>
    %469 = vector.broadcast %468 : vector<8x1xf32> to vector<8x128xf32>
    %470 = arith.mulf %467, %469 : vector<8x128xf32>
    %c0_116 = arith.constant 0 : index
    %c0_117 = arith.constant 0 : index
    %471 = vector.load %arg11[%c0_116, %c0_117] : memref<8x1xf32, #tpu.memory_space<vmem>>, vector<8x1xf32>
    %472 = vector.broadcast %471 : vector<8x1xf32> to vector<8x128xf32>
    %473 = arith.addf %470, %472 : vector<8x128xf32>
    %c0_118 = arith.constant 0 : index
    %c0_119 = arith.constant 0 : index
    %474 = vector.load %arg12[%c0_118, %c0_119] : memref<128x128xf32, #tpu.memory_space<vmem>>, vector<128x128xf32>
    %cst_120 = arith.constant dense<0.000000e+00> : vector<8x128xf32>
    %475 = tpu.matmul %473, %474, %cst_120 {dimension_numbers = #tpu.dot_dimension_numbers<[1], [0], [0], [1], [0, 0, 1, 1], [], []>} : vector<8x128xf32>, vector<128x128xf32>, vector<8x128xf32> -> vector<8x128xf32>
    %c0_121 = arith.constant 0 : index
    %c0_122 = arith.constant 0 : index
    %476 = vector.load %arg13[%c0_121, %c0_122] : memref<1x128xf32, #tpu.memory_space<vmem>>, vector<1x128xf32>
    %477 = vector.broadcast %476 : vector<1x128xf32> to vector<8x128xf32>
    %478 = arith.addf %475, %477 : vector<8x128xf32>
    %c8 = arith.constant 8 : index
    %c0_123 = arith.constant 0 : index
    %479 = vector.load %arg14[%c8, %c0_123] : memref<16x128xf32, #tpu.memory_space<vmem>>, vector<8x128xf32>
    tpu.vector_store %arg14[%c8, %c0_123], %478 {strides = array<i32>} : memref<16x128xf32, #tpu.memory_space<vmem>>, vector<8x128xf32>,
    return
  }
}

</mosaic_0001>

<llo_original>
// kernel: tpu_custom_call.1
$region0: #{tpu_custom_call.1}
  #allocation0 [shape = 'u32[]', space=smem, size = 0x4, offset = 0x4, fixed_abs, tag = 'smem constant byte address 0x4 - core index']
  #allocation1 [shape = 'u32[144,128]{1,0:T(1,128)}', space=vmem, size = 0x12000, scoped, tag = 'internal scratch']
  %s0 = inlined_call_operand.vmem [shape: f32[16,128], index: 0, kind: input, shape index: {}]
  %s1 = inlined_call_operand.hbm [shape: f32[16,16], index: 1, kind: input, shape index: {}]
  %s2 = inlined_call_operand.hbm [shape: f32[2,2,128], index: 2, kind: input, shape index: {}]
  %s3 = inlined_call_operand.hbm [shape: f32[2,128,384], index: 3, kind: input, shape index: {}]
  %s4 = inlined_call_operand.hbm [shape: f32[2,128,384], index: 4, kind: input, shape index: {}]
  %s5 = inlined_call_operand.vmem [shape: f32[2,384], index: 5, kind: input, shape index: {}]
  %s6 = inlined_call_operand.vmem [shape: f32[2,384], index: 6, kind: input, shape index: {}]
  %s7 = inlined_call_operand.hbm [shape: f32[2,128,128], index: 7, kind: input, shape index: {}]
  %s8 = inlined_call_operand.hbm [shape: f32[128,128], index: 8, kind: input, shape index: {}]
  %s9 = inlined_call_operand.vmem [shape: f32[1,128], index: 9, kind: input, shape index: {}]
  %s10 = inlined_call_operand.vmem [shape: f32[8,1], index: 10, kind: input, shape index: {}]
  %s11 = inlined_call_operand.vmem [shape: f32[8,1], index: 11, kind: input, shape index: {}]
  %s12 = inlined_call_operand.hbm [shape: f32[128,128], index: 12, kind: input, shape index: {}]
  %s13 = inlined_call_operand.vmem [shape: f32[1,128], index: 13, kind: input, shape index: {}]
  %s14 = inlined_call_operand.hbm [shape: f32[16,128], index: 14, kind: output, shape index: {0}]
  %s15 = inlined_call_operand.hbm [shape: f32[4,128], index: 15, kind: output, shape index: {1}]
  %16 = xla_tuple %s14, %s15
  %s17 = sld [smem:[#allocation0]]
  $region102: #{tpu_custom_call.1} parent=0
    _
  %s19 = ssub.s32 1, %s17
  %s20 = scalar_select 0, %s19, %s17
  $region1: #{tpu_custom_call.1} parent=0
    #allocation2 [shape = 'u8[8192]{0}', space=vmem, size = 0x2000, scoped, tag = 'input window, operand 1, single buffered']
    #allocation3 [shape = 's32[1]{0}', space=sflag, size = 0x4, scoped, tag = 'scoped memory for tpu_custom_call.1']
    #allocation4 [shape = 's32[1]{0}', space=sflag, size = 0x4, scoped, tag = 'scoped memory for tpu_custom_call.1']
    #allocation5 [shape = 'u8[2048]{0}', space=vmem, size = 0x800, scoped, tag = 'input window, operand 2, single buffered']
    #allocation6 [shape = 's32[1]{0}', space=sflag, size = 0x4, scoped, tag = 'scoped memory for tpu_custom_call.1']
    #allocation7 [shape = 'u8[393216]{0}', space=vmem, size = 0x60000, scoped, tag = 'input window, operand 3, single buffered']
    #allocation8 [shape = 'u8[393216]{0}', space=vmem, size = 0x60000, scoped, tag = 'input window, operand 4, single buffered']
    #allocation9 [shape = 's32[1]{0}', space=sflag, size = 0x4, scoped, tag = 'scoped memory for tpu_custom_call.1']
    #allocation10 [shape = 'u8[131072]{0}', space=vmem, size = 0x20000, scoped, tag = 'input window, operand 7, single buffered']
    #allocation11 [shape = 'u8[65536]{0}', space=vmem, size = 0x10000, scoped, tag = 'input window, operand 8, single buffered']
    #allocation12 [shape = 's32[1]{0}', space=sflag, size = 0x4, scoped, tag = 'scoped memory for tpu_custom_call.1']
    #allocation13 [shape = 'u8[65536]{0}', space=vmem, size = 0x10000, scoped, tag = 'input window, operand 12, single buffered']
    #allocation14 [shape = 'u8[8192]{0}', space=vmem, size = 0x2000, scoped, tag = 'output window, operand 0, single buffered']
    #allocation15 [shape = 'u8[2048]{0}', space=vmem, size = 0x800, scoped, tag = 'output window, operand 1, single buffered']
    #allocation16 [shape = 's32[1]{0}', space=sflag, size = 0x4, scoped, tag = 'scoped memory for tpu_custom_call.1']
    %21 = vsyncpa [#allocation3], 0
    %22 = vsyncpa [#allocation6], 0
    %23 = vsyncpa [#allocation9], 0
    %24 = vsyncpa [#allocation12], 0
    %25 = vsyncpa [#allocation4], 0
    %26 = vsyncpa [#allocation16], 0
    // Predicated region
    $region2: #{tpu_custom_call.1} parent=1 // pred_check
      _
    $region3: #{tpu_custom_call.1} parent=1 // pred_check_branch
      %28 = sbr.rel (0) target = $region5
    $region4: #{tpu_custom_call.1} parent=1 // pred_region
      _
    $region5: #{tpu_custom_call.1} parent=1 // pred_fallthru
      _
    // Predicated region
    $region6: #{tpu_custom_call.1} parent=1 // pred_check
      _
    $region7: #{tpu_custom_call.1} parent=1 // pred_check_branch
      %30 = sbr.rel (0) target = $region9
    $region8: #{tpu_custom_call.1} parent=1 // pred_region
      %s32 = ssub.s32 256, 256
      %33 = vsyncadd [#allocation3], %s32
      %s34 = sshll.u32 [#allocation2], 4
      %s35 = int_to_ptr.vmem [resolvable:$true] %s34
      %40 = dma.hbm_to_vmem [thread:$0]  %s1, 256, %s35, [#allocation3], 128, 128, 8
    $region9: #{tpu_custom_call.1} parent=1 // pred_fallthru
      _
    // Predicated region
    $region10: #{tpu_custom_call.1} parent=1 // pred_check
      _
    $region11: #{tpu_custom_call.1} parent=1 // pred_check_branch
      %42 = sbr.rel (0) target = $region13
    $region12: #{tpu_custom_call.1} parent=1 // pred_region
      %s44 = ssub.s32 64, 64
      %45 = vsyncadd [#allocation6], %s44
      %s46 = sshll.u32 [#allocation5], 4
      %s47 = int_to_ptr.vmem [resolvable:$true] %s46
      %52 = dma.hbm_to_vmem [thread:$0]  %s2, 64, %s47, [#allocation6], 32, 32, 2
    $region13: #{tpu_custom_call.1} parent=1 // pred_fallthru
      _
    // Predicated region
    $region14: #{tpu_custom_call.1} parent=1 // pred_check
      _
    $region15: #{tpu_custom_call.1} parent=1 // pred_check_branch
      %54 = sbr.rel (0) target = $region17
    $region16: #{tpu_custom_call.1} parent=1 // pred_region
      %s56 = ssub.s32 12288, 12288
      %57 = vsyncadd [#allocation6], %s56
      %s58 = sshll.u32 [#allocation7], 4
      %s59 = int_to_ptr.vmem [resolvable:$true] %s58
      %64 = dma.hbm_to_vmem [thread:$0]  %s3, 12288, %s59, [#allocation6], 384, 384, 24
    $region17: #{tpu_custom_call.1} parent=1 // pred_fallthru
      _
    // Predicated region
    $region18: #{tpu_custom_call.1} parent=1 // pred_check
      _
    $region19: #{tpu_custom_call.1} parent=1 // pred_check_branch
      %66 = sbr.rel (0) target = $region21
    $region20: #{tpu_custom_call.1} parent=1 // pred_region
      %s68 = ssub.s32 12288, 12288
      %69 = vsyncadd [#allocation9], %s68
      %s70 = sshll.u32 [#allocation8], 4
      %s71 = int_to_ptr.vmem [resolvable:$true] %s70
      %76 = dma.hbm_to_vmem [thread:$0]  %s4, 12288, %s71, [#allocation9], 384, 384, 24
    $region21: #{tpu_custom_call.1} parent=1 // pred_fallthru
      _
    // Predicated region
    $region22: #{tpu_custom_call.1} parent=1 // pred_check
      _
    $region23: #{tpu_custom_call.1} parent=1 // pred_check_branch
      %78 = sbr.rel (0) target = $region25
    $region24: #{tpu_custom_call.1} parent=1 // pred_region
      _
    $region25: #{tpu_custom_call.1} parent=1 // pred_fallthru
      _
    // Predicated region
    $region26: #{tpu_custom_call.1} parent=1 // pred_check
      _
    $region27: #{tpu_custom_call.1} parent=1 // pred_check_branch
      %80 = sbr.rel (0) target = $region29
    $region28: #{tpu_custom_call.1} parent=1 // pred_region
      _
    $region29: #{tpu_custom_call.1} parent=1 // pred_fallthru
      _
    // Predicated region
    $region30: #{tpu_custom_call.1} parent=1 // pred_check
      _
    $region31: #{tpu_custom_call.1} parent=1 // pred_check_branch
      %82 = sbr.rel (0) target = $region33
    $region32: #{tpu_custom_call.1} parent=1 // pred_region
      %s84 = ssub.s32 4096, 4096
      %85 = vsyncadd [#allocation9], %s84
      %s86 = sshll.u32 [#allocation10], 4
      %s87 = int_to_ptr.vmem [resolvable:$true] %s86
      %92 = dma.hbm_to_vmem [thread:$0]  %s7, 4096, %s87, [#allocation9], 128, 128, 8
    $region33: #{tpu_custom_call.1} parent=1 // pred_fallthru
      _
    // Predicated region
    $region34: #{tpu_custom_call.1} parent=1 // pred_check
      _
    $region35: #{tpu_custom_call.1} parent=1 // pred_check_branch
      %94 = sbr.rel (0) target = $region37
    $region36: #{tpu_custom_call.1} parent=1 // pred_region
      %s96 = ssub.s32 2048, 2048
      %97 = vsyncadd [#allocation12], %s96
      %s98 = sshll.u32 [#allocation11], 4
      %s99 = int_to_ptr.vmem [resolvable:$true] %s98
      %104 = dma.hbm_to_vmem [thread:$0]  %s8, 2048, %s99, [#allocation12], 128, 128, 8
    $region37: #{tpu_custom_call.1} parent=1 // pred_fallthru
      _
    // Predicated region
    $region38: #{tpu_custom_call.1} parent=1 // pred_check
      _
    $region39: #{tpu_custom_call.1} parent=1 // pred_check_branch
      %106 = sbr.rel (0) target = $region41
    $region40: #{tpu_custom_call.1} parent=1 // pred_region
      _
    $region41: #{tpu_custom_call.1} parent=1 // pred_fallthru
      _
    // Predicated region
    $region42: #{tpu_custom_call.1} parent=1 // pred_check
      _
    $region43: #{tpu_custom_call.1} parent=1 // pred_check_branch
      %108 = sbr.rel (0) target = $region45
    $region44: #{tpu_custom_call.1} parent=1 // pred_region
      _
    $region45: #{tpu_custom_call.1} parent=1 // pred_fallthru
      _
    // Predicated region
    $region46: #{tpu_custom_call.1} parent=1 // pred_check
      _
    $region47: #{tpu_custom_call.1} parent=1 // pred_check_branch
      %110 = sbr.rel (0) target = $region49
    $region48: #{tpu_custom_call.1} parent=1 // pred_region
      _
    $region49: #{tpu_custom_call.1} parent=1 // pred_fallthru
      _
    // Predicated region
    $region50: #{tpu_custom_call.1} parent=1 // pred_check
      _
    $region51: #{tpu_custom_call.1} parent=1 // pred_check_branch
      %112 = sbr.rel (0) target = $region53
    $region52: #{tpu_custom_call.1} parent=1 // pred_region
      %s114 = ssub.s32 2048, 2048
      %115 = vsyncadd [#allocation12], %s114
      %s116 = sshll.u32 [#allocation13], 4
      %s117 = int_to_ptr.vmem [resolvable:$true] %s116
      %122 = dma.hbm_to_vmem [thread:$0]  %s12, 2048, %s117, [#allocation12], 128, 128, 8
    $region53: #{tpu_custom_call.1} parent=1 // pred_fallthru
      _
    // Predicated region
    $region54: #{tpu_custom_call.1} parent=1 // pred_check
      _
    $region55: #{tpu_custom_call.1} parent=1 // pred_check_branch
      %124 = sbr.rel (0) target = $region57
    $region56: #{tpu_custom_call.1} parent=1 // pred_region
      _
    $region57: #{tpu_custom_call.1} parent=1 // pred_fallthru
      _
    // Predicated region
    $region58: #{tpu_custom_call.1} parent=1 // pred_check
      _
    $region59: #{tpu_custom_call.1} parent=1 // pred_check_branch
      %126 = sbr.rel (0) target = $region61
    $region60: #{tpu_custom_call.1} parent=1 // pred_region
      %127 = dma.done [#allocation3], 256
    $region61: #{tpu_custom_call.1} parent=1 // pred_fallthru
      _
    // Predicated region
    $region62: #{tpu_custom_call.1} parent=1 // pred_check
      _
    $region63: #{tpu_custom_call.1} parent=1 // pred_check_branch
      %129 = sbr.rel (0) target = $region65
    $region64: #{tpu_custom_call.1} parent=1 // pred_region
      %130 = dma.done [#allocation6], 64
    $region65: #{tpu_custom_call.1} parent=1 // pred_fallthru
      _
    // Predicated region
    $region66: #{tpu_custom_call.1} parent=1 // pred_check
      _
    $region67: #{tpu_custom_call.1} parent=1 // pred_check_branch
      %132 = sbr.rel (0) target = $region69
    $region68: #{tpu_custom_call.1} parent=1 // pred_region
      %133 = dma.done [#allocation6], 12288
    $region69: #{tpu_custom_call.1} parent=1 // pred_fallthru
      _
    // Predicated region
    $region70: #{tpu_custom_call.1} parent=1 // pred_check
      _
    $region71: #{tpu_custom_call.1} parent=1 // pred_check_branch
      %135 = sbr.rel (0) target = $region73
    $region72: #{tpu_custom_call.1} parent=1 // pred_region
      %136 = dma.done [#allocation9], 12288
    $region73: #{tpu_custom_call.1} parent=1 // pred_fallthru
      _
    // Predicated region
    $region74: #{tpu_custom_call.1} parent=1 // pred_check
      _
    $region75: #{tpu_custom_call.1} parent=1 // pred_check_branch
      %138 = sbr.rel (0) target = $region77
    $region76: #{tpu_custom_call.1} parent=1 // pred_region
      %139 = dma.done [#allocation9], 4096
    $region77: #{tpu_custom_call.1} parent=1 // pred_fallthru
      _
    // Predicated region
    $region78: #{tpu_custom_call.1} parent=1 // pred_check
      _
    $region79: #{tpu_custom_call.1} parent=1 // pred_check_branch
      %141 = sbr.rel (0) target = $region81
    $region80: #{tpu_custom_call.1} parent=1 // pred_region
      %142 = dma.done [#allocation12], 2048
    $region81: #{tpu_custom_call.1} parent=1 // pred_fallthru
      _
    // Predicated region
    $region82: #{tpu_custom_call.1} parent=1 // pred_check
      _
    $region83: #{tpu_custom_call.1} parent=1 // pred_check_branch
      %144 = sbr.rel (0) target = $region85
    $region84: #{tpu_custom_call.1} parent=1 // pred_region
      %145 = dma.done [#allocation12], 2048
    $region85: #{tpu_custom_call.1} parent=1 // pred_fallthru
      _
    %v146 = vld [vmem:[#allocation2] sm:$0xff]
    %v147 = vld [vmem:[#allocation2 + $0x8] sm:$0xff]
    %v148 = vld [vmem:[%s0] sm:$0xff]
    %v149 = vld [vmem:[%s0 + $0x8] sm:$0xff]
    %vm150 = vcmask 130048
    %v152 = vsel %vm150, %v146, 0
    %v155 = vsel %vm150, %v147, 0
    %157 = vmatprep.subr.mxu0 0.0
    %158 = vmatpush1.msra.mxu0 %v148
    %159 = vmatprep.subr.mxu0 0.0
    %160 = vmatpush1.msra.mxu0 %v149
    %161 = vmatprep.subr.mxu0 0.0
    %162 = vmatpush1.msra.mxu0 0.0
    %163 = vmatprep.subr.mxu0 0.0
    %164 = vmatpush1.msra.mxu0 0.0
    %165 = vmatprep.subr.mxu0 0.0
    %166 = vmatpush1.msra.mxu0 0.0
    %167 = vmatprep.subr.mxu0 0.0
    %168 = vmatpush1.msra.mxu0 0.0
    %169 = vmatprep.subr.mxu0 0.0
    %170 = vmatpush1.msra.mxu0 0.0
    %171 = vmatprep.subr.mxu0 0.0
    %172 = vmatpush1.msra.mxu0 0.0
    %173 = vmatprep.subr.mxu0 0.0
    %174 = vmatpush1.msra.mxu0 0.0
    %175 = vmatprep.subr.mxu0 0.0
    %176 = vmatpush1.msra.mxu0 0.0
    %177 = vmatprep.subr.mxu0 0.0
    %178 = vmatpush1.msra.mxu0 0.0
    %179 = vmatprep.subr.mxu0 0.0
    %180 = vmatpush1.msra.mxu0 0.0
    %181 = vmatprep.subr.mxu0 0.0
    %182 = vmatpush1.msra.mxu0 0.0
    %183 = vmatprep.subr.mxu0 0.0
    %184 = vmatpush1.msra.mxu0 0.0
    %185 = vmatprep.subr.mxu0 0.0
    %186 = vmatpush1.msra.mxu0 0.0
    %187 = vmatprep.subr.mxu0 0.0
    %188 = vmatpush1.msra.mxu0 0.0
    %189 = vmatprep.subr.mxu0 0.0
    %190 = vmatpush1.msra.mxu0 0.0
    %191 = vmatprep.subr.mxu0 0.0
    %192 = vmatpush1.msra.mxu0 0.0
    %193 = vmatprep.subr.mxu0 0.0
    %194 = vmatpush1.msra.mxu0 0.0
    %195 = vmatprep.subr.mxu0 0.0
    %196 = vmatpush1.msra.mxu0 0.0
    %197 = vmatprep.subr.mxu0 0.0
    %198 = vmatpush1.msra.mxu0 0.0
    %199 = vmatprep.subr.mxu0 0.0
    %200 = vmatpush1.msra.mxu0 0.0
    %201 = vmatprep.subr.mxu0 0.0
    %202 = vmatpush1.msra.mxu0 0.0
    %203 = vmatprep.subr.mxu0 0.0
    %204 = vmatpush1.msra.mxu0 0.0
    %205 = vmatprep.subr.mxu0 0.0
    %206 = vmatpush1.msra.mxu0 0.0
    %207 = vmatprep.subr.mxu0 0.0
    %208 = vmatpush1.msra.mxu0 0.0
    %209 = vmatprep.subr.mxu0 0.0
    %210 = vmatpush1.msra.mxu0 0.0
    %211 = vmatprep.subr.mxu0 0.0
    %212 = vmatpush1.msra.mxu0 0.0
    %213 = vmatprep.subr.mxu0 0.0
    %214 = vmatpush1.msra.mxu0 0.0
    %215 = vmatprep.subr.mxu0 0.0
    %216 = vmatpush1.msra.mxu0 0.0
    %217 = vmatprep.subr.mxu0 0.0
    %218 = vmatpush1.msra.mxu0 0.0
    %219 = vmatprep.subr.mxu0 0.0
    %220 = vmatpush1.msra.mxu0 0.0
    %221 = vmatprep.mubr.f32.mxu0 0.0
    %222 = vmatmul.mubr.f32.gmra.mrb[0].mxu0 %v152
    %v223 = vpop.f32.mrb[0].mxu0
    %v224 = vadd.f32 0.0, %v223
    %v225 = vpop.f32.mrb[0].mxu0
    %226 = vmatprep.mubr.f32.mxu0 0.0
    %227 = vmatmul.mubr.f32.gmra.mrb[0].mxu0 %v155
    %v228 = vpop.f32.mrb[0].mxu0
    %v229 = vadd.f32 0.0, %v228
    %v230 = vpop.f32.mrb[0].mxu0
    %231 = vdwg.mxu0
    %v232 = vld [vmem:[#allocation7] sm:$0xff]
    %v233 = vld [vmem:[#allocation7 + $0x8] sm:$0xff]
    %v234 = vld [vmem:[#allocation7 + $0x10] sm:$0xff]
    %v235 = vld [vmem:[#allocation7 + $0x18] sm:$0xff]
    %v236 = vld [vmem:[#allocation7 + $0x20] sm:$0xff]
    %v237 = vld [vmem:[#allocation7 + $0x28] sm:$0xff]
    %v238 = vld [vmem:[#allocation7 + $0x30] sm:$0xff]
    %v239 = vld [vmem:[#allocation7 + $0x38] sm:$0xff]
    %v240 = vld [vmem:[#allocation7 + $0x40] sm:$0xff]
    %v241 = vld [vmem:[#allocation7 + $0x48] sm:$0xff]
    %v242 = vld [vmem:[#allocation7 + $0x50] sm:$0xff]
    %v243 = vld [vmem:[#allocation7 + $0x58] sm:$0xff]
    %v244 = vld [vmem:[#allocation7 + $0x60] sm:$0xff]
    %v245 = vld [vmem:[#allocation7 + $0x68] sm:$0xff]
    %v246 = vld [vmem:[#allocation7 + $0x70] sm:$0xff]
    %v247 = vld [vmem:[#allocation7 + $0x78] sm:$0xff]
    %v248 = vld [vmem:[#allocation7 + $0x80] sm:$0xff]
    %v249 = vld [vmem:[#allocation7 + $0x88] sm:$0xff]
    %v250 = vld [vmem:[#allocation7 + $0x90] sm:$0xff]
    %v251 = vld [vmem:[#allocation7 + $0x98] sm:$0xff]
    %v252 = vld [vmem:[#allocation7 + $0xa0] sm:$0xff]
    %v253 = vld [vmem:[#allocation7 + $0xa8] sm:$0xff]
    %v254 = vld [vmem:[#allocation7 + $0xb0] sm:$0xff]
    %v255 = vld [vmem:[#allocation7 + $0xb8] sm:$0xff]
    %v256 = vld [vmem:[#allocation7 + $0xc0] sm:$0xff]
    %v257 = vld [vmem:[#allocation7 + $0xc8] sm:$0xff]
    %v258 = vld [vmem:[#allocation7 + $0xd0] sm:$0xff]
    %v259 = vld [vmem:[#allocation7 + $0xd8] sm:$0xff]
    %v260 = vld [vmem:[#allocation7 + $0xe0] sm:$0xff]
    %v261 = vld [vmem:[#allocation7 + $0xe8] sm:$0xff]
    %v262 = vld [vmem:[#allocation7 + $0xf0] sm:$0xff]
    %v263 = vld [vmem:[#allocation7 + $0xf8] sm:$0xff]
    %v264 = vld [vmem:[#allocation7 + $0x100] sm:$0xff]
    %v265 = vld [vmem:[#allocation7 + $0x108] sm:$0xff]
    %v266 = vld [vmem:[#allocation7 + $0x110] sm:$0xff]
    %v267 = vld [vmem:[#allocation7 + $0x118] sm:$0xff]
    %v268 = vld [vmem:[#allocation7 + $0x120] sm:$0xff]
    %v269 = vld [vmem:[#allocation7 + $0x128] sm:$0xff]
    %v270 = vld [vmem:[#allocation7 + $0x130] sm:$0xff]
    %v271 = vld [vmem:[#allocation7 + $0x138] sm:$0xff]
    %v272 = vld [vmem:[#allocation7 + $0x140] sm:$0xff]
    %v273 = vld [vmem:[#allocation7 + $0x148] sm:$0xff]
    %v274 = vld [vmem:[#allocation7 + $0x150] sm:$0xff]
    %v275 = vld [vmem:[#allocation7 + $0x158] sm:$0xff]
    %v276 = vld [vmem:[#allocation7 + $0x160] sm:$0xff]
    %v277 = vld [vmem:[#allocation7 + $0x168] sm:$0xff]
    %v278 = vld [vmem:[#allocation7 + $0x170] sm:$0xff]
    %v279 = vld [vmem:[#allocation7 + $0x178] sm:$0xff]
    %v280 = vld [vmem:[#allocation8] sm:$0xff]
    %v281 = vld [vmem:[#allocation8 + $0x8] sm:$0xff]
    %v282 = vld [vmem:[#allocation8 + $0x10] sm:$0xff]
    %v283 = vld [vmem:[#allocation8 + $0x18] sm:$0xff]
    %v284 = vld [vmem:[#allocation8 + $0x20] sm:$0xff]
    %v285 = vld [vmem:[#allocation8 + $0x28] sm:$0xff]
    %v286 = vld [vmem:[#allocation8 + $0x30] sm:$0xff]
    %v287 = vld [vmem:[#allocation8 + $0x38] sm:$0xff]
    %v288 = vld [vmem:[#allocation8 + $0x40] sm:$0xff]
    %v289 = vld [vmem:[#allocation8 + $0x48] sm:$0xff]
    %v290 = vld [vmem:[#allocation8 + $0x50] sm:$0xff]
    %v291 = vld [vmem:[#allocation8 + $0x58] sm:$0xff]
    %v292 = vld [vmem:[#allocation8 + $0x60] sm:$0xff]
    %v293 = vld [vmem:[#allocation8 + $0x68] sm:$0xff]
    %v294 = vld [vmem:[#allocation8 + $0x70] sm:$0xff]
    %v295 = vld [vmem:[#allocation8 + $0x78] sm:$0xff]
    %v296 = vld [vmem:[#allocation8 + $0x80] sm:$0xff]
    %v297 = vld [vmem:[#allocation8 + $0x88] sm:$0xff]
    %v298 = vld [vmem:[#allocation8 + $0x90] sm:$0xff]
    %v299 = vld [vmem:[#allocation8 + $0x98] sm:$0xff]
    %v300 = vld [vmem:[#allocation8 + $0xa0] sm:$0xff]
    %v301 = vld [vmem:[#allocation8 + $0xa8] sm:$0xff]
    %v302 = vld [vmem:[#allocation8 + $0xb0] sm:$0xff]
    %v303 = vld [vmem:[#allocation8 + $0xb8] sm:$0xff]
    %v304 = vld [vmem:[#allocation8 + $0xc0] sm:$0xff]
    %v305 = vld [vmem:[#allocation8 + $0xc8] sm:$0xff]
    %v306 = vld [vmem:[#allocation8 + $0xd0] sm:$0xff]
    %v307 = vld [vmem:[#allocation8 + $0xd8] sm:$0xff]
    %v308 = vld [vmem:[#allocation8 + $0xe0] sm:$0xff]
    %v309 = vld [vmem:[#allocation8 + $0xe8] sm:$0xff]
    %v310 = vld [vmem:[#allocation8 + $0xf0] sm:$0xff]
    %v311 = vld [vmem:[#allocation8 + $0xf8] sm:$0xff]
    %v312 = vld [vmem:[#allocation8 + $0x100] sm:$0xff]
    %v313 = vld [vmem:[#allocation8 + $0x108] sm:$0xff]
    %v314 = vld [vmem:[#allocation8 + $0x110] sm:$0xff]
    %v315 = vld [vmem:[#allocation8 + $0x118] sm:$0xff]
    %v316 = vld [vmem:[#allocation8 + $0x120] sm:$0xff]
    %v317 = vld [vmem:[#allocation8 + $0x128] sm:$0xff]
    %v318 = vld [vmem:[#allocation8 + $0x130] sm:$0xff]
    %v319 = vld [vmem:[#allocation8 + $0x138] sm:$0xff]
    %v320 = vld [vmem:[#allocation8 + $0x140] sm:$0xff]
    %v321 = vld [vmem:[#allocation8 + $0x148] sm:$0xff]
    %v322 = vld [vmem:[#allocation8 + $0x150] sm:$0xff]
    %v323 = vld [vmem:[#allocation8 + $0x158] sm:$0xff]
    %v324 = vld [vmem:[#allocation8 + $0x160] sm:$0xff]
    %v325 = vld [vmem:[#allocation8 + $0x168] sm:$0xff]
    %v326 = vld [vmem:[#allocation8 + $0x170] sm:$0xff]
    %v327 = vld [vmem:[#allocation8 + $0x178] sm:$0xff]
    %v328 = vld [vmem:[%s5] ss:$2 sm:$0x7]
    %v329 = vld [vmem:[%s6] ss:$2 sm:$0x7]
    %v331 = vlaneseq
    %v332 = vshrl.u32 %v331, 7
    %v333 = vsub.s32 0, %v332
    %v334 = vrot.slane %v328, %v333
    %v335 = vlaneseq
    %v336 = vshrl.u32 %v335, 7
    %v337 = vsub.s32 1, %v336
    %v338 = vrot.slane %v328, %v337
    %v339 = vlaneseq
    %v340 = vshrl.u32 %v339, 7
    %v341 = vsub.s32 2, %v340
    %v342 = vrot.slane %v328, %v341
    %346 = vmatprep.subr.mxu0 %v233
    %347 = vmatpush1.msra.mxu0 %v232
    %348 = vmatprep.subr.mxu0 %v236
    %349 = vmatpush1.msra.mxu0 %v235
    %350 = vmatprep.subr.mxu0 %v239
    %351 = vmatpush1.msra.mxu0 %v238
    %352 = vmatprep.subr.mxu0 %v242
    %353 = vmatpush1.msra.mxu0 %v241
    %354 = vmatprep.subr.mxu0 %v245
    %355 = vmatpush1.msra.mxu0 %v244
    %356 = vmatprep.subr.mxu0 %v248
    %357 = vmatpush1.msra.mxu0 %v247
    %358 = vmatprep.subr.mxu0 %v251
    %359 = vmatpush1.msra.mxu0 %v250
    %360 = vmatprep.subr.mxu0 %v254
    %361 = vmatpush1.msra.mxu0 %v253
    %362 = vmatprep.subr.mxu0 %v257
    %363 = vmatpush1.msra.mxu0 %v256
    %364 = vmatprep.subr.mxu0 %v260
    %365 = vmatpush1.msra.mxu0 %v259
    %366 = vmatprep.subr.mxu0 %v263
    %367 = vmatpush1.msra.mxu0 %v262
    %368 = vmatprep.subr.mxu0 %v266
    %369 = vmatpush1.msra.mxu0 %v265
    %370 = vmatprep.subr.mxu0 %v269
    %371 = vmatpush1.msra.mxu0 %v268
    %372 = vmatprep.subr.mxu0 %v272
    %373 = vmatpush1.msra.mxu0 %v271
    %374 = vmatprep.subr.mxu0 %v275
    %375 = vmatpush1.msra.mxu0 %v274
    %376 = vmatprep.subr.mxu0 %v278
    %377 = vmatpush1.msra.mxu0 %v277
    %378 = vmatprep.subr.mxu0 0.0
    %379 = vmatpush1.msra.mxu0 0.0
    %380 = vmatprep.subr.mxu0 0.0
    %381 = vmatpush1.msra.mxu0 0.0
    %382 = vmatprep.subr.mxu0 0.0
    %383 = vmatpush1.msra.mxu0 0.0
    %384 = vmatprep.subr.mxu0 0.0
    %385 = vmatpush1.msra.mxu0 0.0
    %386 = vmatprep.subr.mxu0 0.0
    %387 = vmatpush1.msra.mxu0 0.0
    %388 = vmatprep.subr.mxu0 0.0
    %389 = vmatpush1.msra.mxu0 0.0
    %390 = vmatprep.subr.mxu0 0.0
    %391 = vmatpush1.msra.mxu0 0.0
    %392 = vmatprep.subr.mxu0 0.0
    %393 = vmatpush1.msra.mxu0 0.0
    %394 = vmatprep.subr.mxu0 0.0
    %395 = vmatpush1.msra.mxu0 0.0
    %396 = vmatprep.subr.mxu0 0.0
    %397 = vmatpush1.msra.mxu0 0.0
    %398 = vmatprep.subr.mxu0 0.0
    %399 = vmatpush1.msra.mxu0 0.0
    %400 = vmatprep.subr.mxu0 0.0
    %401 = vmatpush1.msra.mxu0 0.0
    %402 = vmatprep.subr.mxu0 0.0
    %403 = vmatpush1.msra.mxu0 0.0
    %404 = vmatprep.subr.mxu0 0.0
    %405 = vmatpush1.msra.mxu0 0.0
    %406 = vmatprep.subr.mxu0 0.0
    %407 = vmatpush1.msra.mxu0 0.0
    %408 = vmatprep.subr.mxu0 0.0
    %409 = vmatpush1.msra.mxu0 0.0
    %410 = vmatprep.mubr.f32.mxu0 0.0
    %411 = vmatmul.mubr.f32.gmra.mrb[0].mxu0 %v224
    %v412 = vpop.f32.mrb[0].mxu0
    %v413 = vadd.f32 %v334, %v412
    %v414 = vpop.f32.mrb[0].mxu0
    %v415 = vadd.f32 %v338, %v414
    %416 = vmatprep.mubr.f32.mxu0 0.0
    %417 = vmatmul.mubr.f32.gmra.mrb[0].mxu0 %v229
    %v418 = vpop.f32.mrb[0].mxu0
    %v419 = vadd.f32 %v334, %v418
    %v420 = vpop.f32.mrb[0].mxu0
    %v421 = vadd.f32 %v338, %v420
    %422 = vdwg.mxu0
    %423 = vmatprep.subr.mxu0 0.0
    %424 = vmatpush1.msra.mxu0 %v234
    %425 = vmatprep.subr.mxu0 0.0
    %426 = vmatpush1.msra.mxu0 %v237
    %427 = vmatprep.subr.mxu0 0.0
    %428 = vmatpush1.msra.mxu0 %v240
    %429 = vmatprep.subr.mxu0 0.0
    %430 = vmatpush1.msra.mxu0 %v243
    %431 = vmatprep.subr.mxu0 0.0
    %432 = vmatpush1.msra.mxu0 %v246
    %433 = vmatprep.subr.mxu0 0.0
    %434 = vmatpush1.msra.mxu0 %v249
    %435 = vmatprep.subr.mxu0 0.0
    %436 = vmatpush1.msra.mxu0 %v252
    %437 = vmatprep.subr.mxu0 0.0
    %438 = vmatpush1.msra.mxu0 %v255
    %439 = vmatprep.subr.mxu0 0.0
    %440 = vmatpush1.msra.mxu0 %v258
    %441 = vmatprep.subr.mxu0 0.0
    %442 = vmatpush1.msra.mxu0 %v261
    %443 = vmatprep.subr.mxu0 0.0
    %444 = vmatpush1.msra.mxu0 %v264
    %445 = vmatprep.subr.mxu0 0.0
    %446 = vmatpush1.msra.mxu0 %v267
    %447 = vmatprep.subr.mxu0 0.0
    %448 = vmatpush1.msra.mxu0 %v270
    %449 = vmatprep.subr.mxu0 0.0
    %450 = vmatpush1.msra.mxu0 %v273
    %451 = vmatprep.subr.mxu0 0.0
    %452 = vmatpush1.msra.mxu0 %v276
    %453 = vmatprep.subr.mxu0 0.0
    %454 = vmatpush1.msra.mxu0 %v279
    %455 = vmatprep.subr.mxu0 0.0
    %456 = vmatpush1.msra.mxu0 0.0
    %457 = vmatprep.subr.mxu0 0.0
    %458 = vmatpush1.msra.mxu0 0.0
    %459 = vmatprep.subr.mxu0 0.0
    %460 = vmatpush1.msra.mxu0 0.0
    %461 = vmatprep.subr.mxu0 0.0
    %462 = vmatpush1.msra.mxu0 0.0
    %463 = vmatprep.subr.mxu0 0.0
    %464 = vmatpush1.msra.mxu0 0.0
    %465 = vmatprep.subr.mxu0 0.0
    %466 = vmatpush1.msra.mxu0 0.0
    %467 = vmatprep.subr.mxu0 0.0
    %468 = vmatpush1.msra.mxu0 0.0
    %469 = vmatprep.subr.mxu0 0.0
    %470 = vmatpush1.msra.mxu0 0.0
    %471 = vmatprep.subr.mxu0 0.0
    %472 = vmatpush1.msra.mxu0 0.0
    %473 = vmatprep.subr.mxu0 0.0
    %474 = vmatpush1.msra.mxu0 0.0
    %475 = vmatprep.subr.mxu0 0.0
    %476 = vmatpush1.msra.mxu0 0.0
    %477 = vmatprep.subr.mxu0 0.0
    %478 = vmatpush1.msra.mxu0 0.0
    %479 = vmatprep.subr.mxu0 0.0
    %480 = vmatpush1.msra.mxu0 0.0
    %481 = vmatprep.subr.mxu0 0.0
    %482 = vmatpush1.msra.mxu0 0.0
    %483 = vmatprep.subr.mxu0 0.0
    %484 = vmatpush1.msra.mxu0 0.0
    %485 = vmatprep.subr.mxu0 0.0
    %486 = vmatpush1.msra.mxu0 0.0
    %487 = vmatprep.mubr.f32.mxu0 0.0
    %488 = vmatmul.mubr.f32.gmra.mrb[0].mxu0 %v224
    %v489 = vpop.f32.mrb[0].mxu0
    %v490 = vadd.f32 %v342, %v489
    %v491 = vpop.f32.mrb[0].mxu0
    %492 = vmatprep.mubr.f32.mxu0 0.0
    %493 = vmatmul.mubr.f32.gmra.mrb[0].mxu0 %v229
    %v494 = vpop.f32.mrb[0].mxu0
    %v495 = vadd.f32 %v342, %v494
    %v496 = vpop.f32.mrb[0].mxu0
    %497 = vdwg.mxu0
    %v498 = vld [vmem:[#allocation5] sm:$0x3]
    %v500 = vlaneseq
    %v501 = vshrl.u32 %v500, 7
    %v502 = vsub.s32 0, %v501
    %v503 = vrot.slane %v329, %v502
    %v504 = vlaneseq
    %v505 = vshrl.u32 %v504, 7
    %v506 = vsub.s32 1, %v505
    %v507 = vrot.slane %v329, %v506
    %v508 = vlaneseq
    %v509 = vshrl.u32 %v508, 7
    %v510 = vsub.s32 2, %v509
    %v511 = vrot.slane %v329, %v510
    %515 = vmatprep.subr.mxu0 %v281
    %516 = vmatpush1.msra.mxu0 %v280
    %517 = vmatprep.subr.mxu0 %v284
    %518 = vmatpush1.msra.mxu0 %v283
    %519 = vmatprep.subr.mxu0 %v287
    %520 = vmatpush1.msra.mxu0 %v286
    %521 = vmatprep.subr.mxu0 %v290
    %522 = vmatpush1.msra.mxu0 %v289
    %523 = vmatprep.subr.mxu0 %v293
    %524 = vmatpush1.msra.mxu0 %v292
    %525 = vmatprep.subr.mxu0 %v296
    %526 = vmatpush1.msra.mxu0 %v295
    %527 = vmatprep.subr.mxu0 %v299
    %528 = vmatpush1.msra.mxu0 %v298
    %529 = vmatprep.subr.mxu0 %v302
    %530 = vmatpush1.msra.mxu0 %v301
    %531 = vmatprep.subr.mxu0 %v305
    %532 = vmatpush1.msra.mxu0 %v304
    %533 = vmatprep.subr.mxu0 %v308
    %534 = vmatpush1.msra.mxu0 %v307
    %535 = vmatprep.subr.mxu0 %v311
    %536 = vmatpush1.msra.mxu0 %v310
    %537 = vmatprep.subr.mxu0 %v314
    %538 = vmatpush1.msra.mxu0 %v313
    %539 = vmatprep.subr.mxu0 %v317
    %540 = vmatpush1.msra.mxu0 %v316
    %541 = vmatprep.subr.mxu0 %v320
    %542 = vmatpush1.msra.mxu0 %v319
    %543 = vmatprep.subr.mxu0 %v323
    %544 = vmatpush1.msra.mxu0 %v322
    %545 = vmatprep.subr.mxu0 %v326
    %546 = vmatpush1.msra.mxu0 %v325
    %547 = vmatprep.subr.mxu0 0.0
    %548 = vmatpush1.msra.mxu0 0.0
    %549 = vmatprep.subr.mxu0 0.0
    %550 = vmatpush1.msra.mxu0 0.0
    %551 = vmatprep.subr.mxu0 0.0
    %552 = vmatpush1.msra.mxu0 0.0
    %553 = vmatprep.subr.mxu0 0.0
    %554 = vmatpush1.msra.mxu0 0.0
    %555 = vmatprep.subr.mxu0 0.0
    %556 = vmatpush1.msra.mxu0 0.0
    %557 = vmatprep.subr.mxu0 0.0
    %558 = vmatpush1.msra.mxu0 0.0
    %559 = vmatprep.subr.mxu0 0.0
    %560 = vmatpush1.msra.mxu0 0.0
    %561 = vmatprep.subr.mxu0 0.0
    %562 = vmatpush1.msra.mxu0 0.0
    %563 = vmatprep.subr.mxu0 0.0
    %564 = vmatpush1.msra.mxu0 0.0
    %565 = vmatprep.subr.mxu0 0.0
    %566 = vmatpush1.msra.mxu0 0.0
    %567 = vmatprep.subr.mxu0 0.0
    %568 = vmatpush1.msra.mxu0 0.0
    %569 = vmatprep.subr.mxu0 0.0
    %570 = vmatpush1.msra.mxu0 0.0
    %571 = vmatprep.subr.mxu0 0.0
    %572 = vmatpush1.msra.mxu0 0.0
    %573 = vmatprep.subr.mxu0 0.0
    %574 = vmatpush1.msra.mxu0 0.0
    %575 = vmatprep.subr.mxu0 0.0
    %576 = vmatpush1.msra.mxu0 0.0
    %577 = vmatprep.subr.mxu0 0.0
    %578 = vmatpush1.msra.mxu0 0.0
    %579 = vmatprep.mubr.f32.mxu0 0.0
    %580 = vmatmul.mubr.f32.gmra.mrb[0].mxu0 %v498
    %v581 = vpop.f32.mrb[0].mxu0
    %v582 = vadd.f32 %v503, %v581
    %v583 = vpop.f32.mrb[0].mxu0
    %v584 = vadd.f32 %v507, %v583
    %585 = vdwg.mxu0
    %586 = vmatprep.subr.mxu0 0.0
    %587 = vmatpush1.msra.mxu0 %v282
    %588 = vmatprep.subr.mxu0 0.0
    %589 = vmatpush1.msra.mxu0 %v285
    %590 = vmatprep.subr.mxu0 0.0
    %591 = vmatpush1.msra.mxu0 %v288
    %592 = vmatprep.subr.mxu0 0.0
    %593 = vmatpush1.msra.mxu0 %v291
    %594 = vmatprep.subr.mxu0 0.0
    %595 = vmatpush1.msra.mxu0 %v294
    %596 = vmatprep.subr.mxu0 0.0
    %597 = vmatpush1.msra.mxu0 %v297
    %598 = vmatprep.subr.mxu0 0.0
    %599 = vmatpush1.msra.mxu0 %v300
    %600 = vmatprep.subr.mxu0 0.0
    %601 = vmatpush1.msra.mxu0 %v303
    %602 = vmatprep.subr.mxu0 0.0
    %603 = vmatpush1.msra.mxu0 %v306
    %604 = vmatprep.subr.mxu0 0.0
    %605 = vmatpush1.msra.mxu0 %v309
    %606 = vmatprep.subr.mxu0 0.0
    %607 = vmatpush1.msra.mxu0 %v312
    %608 = vmatprep.subr.mxu0 0.0
    %609 = vmatpush1.msra.mxu0 %v315
    %610 = vmatprep.subr.mxu0 0.0
    %611 = vmatpush1.msra.mxu0 %v318
    %612 = vmatprep.subr.mxu0 0.0
    %613 = vmatpush1.msra.mxu0 %v321
    %614 = vmatprep.subr.mxu0 0.0
    %615 = vmatpush1.msra.mxu0 %v324
    %616 = vmatprep.subr.mxu0 0.0
    %617 = vmatpush1.msra.mxu0 %v327
    %618 = vmatprep.subr.mxu0 0.0
    %619 = vmatpush1.msra.mxu0 0.0
    %620 = vmatprep.subr.mxu0 0.0
    %621 = vmatpush1.msra.mxu0 0.0
    %622 = vmatprep.subr.mxu0 0.0
    %623 = vmatpush1.msra.mxu0 0.0
    %624 = vmatprep.subr.mxu0 0.0
    %625 = vmatpush1.msra.mxu0 0.0
    %626 = vmatprep.subr.mxu0 0.0
    %627 = vmatpush1.msra.mxu0 0.0
    %628 = vmatprep.subr.mxu0 0.0
    %629 = vmatpush1.msra.mxu0 0.0
    %630 = vmatprep.subr.mxu0 0.0
    %631 = vmatpush1.msra.mxu0 0.0
    %632 = vmatprep.subr.mxu0 0.0
    %633 = vmatpush1.msra.mxu0 0.0
    %634 = vmatprep.subr.mxu0 0.0
    %635 = vmatpush1.msra.mxu0 0.0
    %636 = vmatprep.subr.mxu0 0.0
    %637 = vmatpush1.msra.mxu0 0.0
    %638 = vmatprep.subr.mxu0 0.0
    %639 = vmatpush1.msra.mxu0 0.0
    %640 = vmatprep.subr.mxu0 0.0
    %641 = vmatpush1.msra.mxu0 0.0
    %642 = vmatprep.subr.mxu0 0.0
    %643 = vmatpush1.msra.mxu0 0.0
    %644 = vmatprep.subr.mxu0 0.0
    %645 = vmatpush1.msra.mxu0 0.0
    %646 = vmatprep.subr.mxu0 0.0
    %647 = vmatpush1.msra.mxu0 0.0
    %648 = vmatprep.subr.mxu0 0.0
    %649 = vmatpush1.msra.mxu0 0.0
    %650 = vmatprep.mubr.f32.mxu0 0.0
    %651 = vmatmul.mubr.f32.gmra.mrb[0].mxu0 %v498
    %v652 = vpop.f32.mrb[0].mxu0
    %v653 = vadd.f32 %v511, %v652
    %v654 = vpop.f32.mrb[0].mxu0
    %655 = vdwg.mxu0
    %v656 = vadd.f32 %v413, %v582
    %v657 = vadd.f32 %v415, %v584
    %v658 = vxor.u32 %v656, 2147483648
    %v659 = vxor.u32 %v657, 2147483648
    %v660 = vmul.f32 %v658, 1.442695
    %v661 = vpow.pop %v660
    %v662 = vmul.f32 %v659, 1.442695
    %v663 = vpow.pop %v662
    %v664 = vadd.f32 %v661, 1.0
    %v665 = vadd.f32 %v663, 1.0
    %v666 = vrcp.pop %v664
    %v667 = vmul.f32 1.0, %v666
    %v668 = vrcp.pop %v665
    %v669 = vmul.f32 1.0, %v668
    %v670 = vmul.f32 %v667, %v653
    %v671 = vadd.f32 %v490, %v670
    %v672 = vtanh.pop %v671
    %v673 = vsub.f32 1.0, %v669
    %v674 = vmul.f32 %v673, %v672
    %v675 = vmul.f32 %v669, %v498
    %v676 = vadd.f32 %v674, %v675
    %677 = vmatprep.subr.mxu0 %v281
    %678 = vmatpush1.msra.mxu0 %v280
    %679 = vmatprep.subr.mxu0 %v284
    %680 = vmatpush1.msra.mxu0 %v283
    %681 = vmatprep.subr.mxu0 %v287
    %682 = vmatpush1.msra.mxu0 %v286
    %683 = vmatprep.subr.mxu0 %v290
    %684 = vmatpush1.msra.mxu0 %v289
    %685 = vmatprep.subr.mxu0 %v293
    %686 = vmatpush1.msra.mxu0 %v292
    %687 = vmatprep.subr.mxu0 %v296
    %688 = vmatpush1.msra.mxu0 %v295
    %689 = vmatprep.subr.mxu0 %v299
    %690 = vmatpush1.msra.mxu0 %v298
    %691 = vmatprep.subr.mxu0 %v302
    %692 = vmatpush1.msra.mxu0 %v301
    %693 = vmatprep.subr.mxu0 %v305
    %694 = vmatpush1.msra.mxu0 %v304
    %695 = vmatprep.subr.mxu0 %v308
    %696 = vmatpush1.msra.mxu0 %v307
    %697 = vmatprep.subr.mxu0 %v311
    %698 = vmatpush1.msra.mxu0 %v310
    %699 = vmatprep.subr.mxu0 %v314
    %700 = vmatpush1.msra.mxu0 %v313
    %701 = vmatprep.subr.mxu0 %v317
    %702 = vmatpush1.msra.mxu0 %v316
    %703 = vmatprep.subr.mxu0 %v320
    %704 = vmatpush1.msra.mxu0 %v319
    %705 = vmatprep.subr.mxu0 %v323
    %706 = vmatpush1.msra.mxu0 %v322
    %707 = vmatprep.subr.mxu0 %v326
    %708 = vmatpush1.msra.mxu0 %v325
    %709 = vmatprep.subr.mxu0 0.0
    %710 = vmatpush1.msra.mxu0 0.0
    %711 = vmatprep.subr.mxu0 0.0
    %712 = vmatpush1.msra.mxu0 0.0
    %713 = vmatprep.subr.mxu0 0.0
    %714 = vmatpush1.msra.mxu0 0.0
    %715 = vmatprep.subr.mxu0 0.0
    %716 = vmatpush1.msra.mxu0 0.0
    %717 = vmatprep.subr.mxu0 0.0
    %718 = vmatpush1.msra.mxu0 0.0
    %719 = vmatprep.subr.mxu0 0.0
    %720 = vmatpush1.msra.mxu0 0.0
    %721 = vmatprep.subr.mxu0 0.0
    %722 = vmatpush1.msra.mxu0 0.0
    %723 = vmatprep.subr.mxu0 0.0
    %724 = vmatpush1.msra.mxu0 0.0
    %725 = vmatprep.subr.mxu0 0.0
    %726 = vmatpush1.msra.mxu0 0.0
    %727 = vmatprep.subr.mxu0 0.0
    %728 = vmatpush1.msra.mxu0 0.0
    %729 = vmatprep.subr.mxu0 0.0
    %730 = vmatpush1.msra.mxu0 0.0
    %731 = vmatprep.subr.mxu0 0.0
    %732 = vmatpush1.msra.mxu0 0.0
    %733 = vmatprep.subr.mxu0 0.0
    %734 = vmatpush1.msra.mxu0 0.0
    %735 = vmatprep.subr.mxu0 0.0
    %736 = vmatpush1.msra.mxu0 0.0
    %737 = vmatprep.subr.mxu0 0.0
    %738 = vmatpush1.msra.mxu0 0.0
    %739 = vmatprep.subr.mxu0 0.0
    %740 = vmatpush1.msra.mxu0 0.0
    %741 = vmatprep.mubr.f32.mxu0 0.0
    %742 = vmatmul.mubr.f32.gmra.mrb[0].mxu0 %v676
    %v743 = vpop.f32.mrb[0].mxu0
    %v744 = vadd.f32 %v503, %v743
    %v745 = vpop.f32.mrb[0].mxu0
    %v746 = vadd.f32 %v507, %v745
    %747 = vdwg.mxu0
    %748 = vmatprep.subr.mxu0 0.0
    %749 = vmatpush1.msra.mxu0 %v282
    %750 = vmatprep.subr.mxu0 0.0
    %751 = vmatpush1.msra.mxu0 %v285
    %752 = vmatprep.subr.mxu0 0.0
    %753 = vmatpush1.msra.mxu0 %v288
    %754 = vmatprep.subr.mxu0 0.0
    %755 = vmatpush1.msra.mxu0 %v291
    %756 = vmatprep.subr.mxu0 0.0
    %757 = vmatpush1.msra.mxu0 %v294
    %758 = vmatprep.subr.mxu0 0.0
    %759 = vmatpush1.msra.mxu0 %v297
    %760 = vmatprep.subr.mxu0 0.0
    %761 = vmatpush1.msra.mxu0 %v300
    %762 = vmatprep.subr.mxu0 0.0
    %763 = vmatpush1.msra.mxu0 %v303
    %764 = vmatprep.subr.mxu0 0.0
    %765 = vmatpush1.msra.mxu0 %v306
    %766 = vmatprep.subr.mxu0 0.0
    %767 = vmatpush1.msra.mxu0 %v309
    %768 = vmatprep.subr.mxu0 0.0
    %769 = vmatpush1.msra.mxu0 %v312
    %770 = vmatprep.subr.mxu0 0.0
    %771 = vmatpush1.msra.mxu0 %v315
    %772 = vmatprep.subr.mxu0 0.0
    %773 = vmatpush1.msra.mxu0 %v318
    %774 = vmatprep.subr.mxu0 0.0
    %775 = vmatpush1.msra.mxu0 %v321
    %776 = vmatprep.subr.mxu0 0.0
    %777 = vmatpush1.msra.mxu0 %v324
    %778 = vmatprep.subr.mxu0 0.0
    %779 = vmatpush1.msra.mxu0 %v327
    %780 = vmatprep.subr.mxu0 0.0
    %781 = vmatpush1.msra.mxu0 0.0
    %782 = vmatprep.subr.mxu0 0.0
    %783 = vmatpush1.msra.mxu0 0.0
    %784 = vmatprep.subr.mxu0 0.0
    %785 = vmatpush1.msra.mxu0 0.0
    %786 = vmatprep.subr.mxu0 0.0
    %787 = vmatpush1.msra.mxu0 0.0
    %788 = vmatprep.subr.mxu0 0.0
    %789 = vmatpush1.msra.mxu0 0.0
    %790 = vmatprep.subr.mxu0 0.0
    %791 = vmatpush1.msra.mxu0 0.0
    %792 = vmatprep.subr.mxu0 0.0
    %793 = vmatpush1.msra.mxu0 0.0
    %794 = vmatprep.subr.mxu0 0.0
    %795 = vmatpush1.msra.mxu0 0.0
    %796 = vmatprep.subr.mxu0 0.0
    %797 = vmatpush1.msra.mxu0 0.0
    %798 = vmatprep.subr.mxu0 0.0
    %799 = vmatpush1.msra.mxu0 0.0
    %800 = vmatprep.subr.mxu0 0.0
    %801 = vmatpush1.msra.mxu0 0.0
    %802 = vmatprep.subr.mxu0 0.0
    %803 = vmatpush1.msra.mxu0 0.0
    %804 = vmatprep.subr.mxu0 0.0
    %805 = vmatpush1.msra.mxu0 0.0
    %806 = vmatprep.subr.mxu0 0.0
    %807 = vmatpush1.msra.mxu0 0.0
    %808 = vmatprep.subr.mxu0 0.0
    %809 = vmatpush1.msra.mxu0 0.0
    %810 = vmatprep.subr.mxu0 0.0
    %811 = vmatpush1.msra.mxu0 0.0
    %812 = vmatprep.mubr.f32.mxu0 0.0
    %813 = vmatmul.mubr.f32.gmra.mrb[0].mxu0 %v676
    %v814 = vpop.f32.mrb[0].mxu0
    %v815 = vadd.f32 %v511, %v814
    %v816 = vpop.f32.mrb[0].mxu0
    %817 = vdwg.mxu0
    %v820 = vrot.slane %v744, 6
    %v821 = vrot.slane %v746, 6
    %v824 = vadd.f32 %v413, %v820
    %v825 = vadd.f32 %v415, %v821
    %v826 = vxor.u32 %v824, 2147483648
    %v827 = vxor.u32 %v825, 2147483648
    %v828 = vmul.f32 %v826, 1.442695
    %v829 = vpow.pop %v828
    %v830 = vmul.f32 %v827, 1.442695
    %v831 = vpow.pop %v830
    %v832 = vadd.f32 %v829, 1.0
    %v833 = vadd.f32 %v831, 1.0
    %v834 = vrcp.pop %v832
    %v835 = vmul.f32 1.0, %v834
    %v836 = vrcp.pop %v833
    %v837 = vmul.f32 1.0, %v836
    %v839 = vrot.slane %v815, 6
    %v841 = vmul.f32 %v835, %v839
    %v842 = vadd.f32 %v490, %v841
    %v843 = vtanh.pop %v842
    %v844 = vsub.f32 1.0, %v837
    %v845 = vmul.f32 %v844, %v843
    %v847 = vrot.slane %v676, 6
    %v849 = vmul.f32 %v837, %v847
    %v850 = vadd.f32 %v845, %v849
    %v852 = vrot.slane %v850, 2
    %854 = vmatprep.subr.mxu0 %v281
    %855 = vmatpush1.msra.mxu0 %v280
    %856 = vmatprep.subr.mxu0 %v284
    %857 = vmatpush1.msra.mxu0 %v283
    %858 = vmatprep.subr.mxu0 %v287
    %859 = vmatpush1.msra.mxu0 %v286
    %860 = vmatprep.subr.mxu0 %v290
    %861 = vmatpush1.msra.mxu0 %v289
    %862 = vmatprep.subr.mxu0 %v293
    %863 = vmatpush1.msra.mxu0 %v292
    %864 = vmatprep.subr.mxu0 %v296
    %865 = vmatpush1.msra.mxu0 %v295
    %866 = vmatprep.subr.mxu0 %v299
    %867 = vmatpush1.msra.mxu0 %v298
    %868 = vmatprep.subr.mxu0 %v302
    %869 = vmatpush1.msra.mxu0 %v301
    %870 = vmatprep.subr.mxu0 %v305
    %871 = vmatpush1.msra.mxu0 %v304
    %872 = vmatprep.subr.mxu0 %v308
    %873 = vmatpush1.msra.mxu0 %v307
    %874 = vmatprep.subr.mxu0 %v311
    %875 = vmatpush1.msra.mxu0 %v310
    %876 = vmatprep.subr.mxu0 %v314
    %877 = vmatpush1.msra.mxu0 %v313
    %878 = vmatprep.subr.mxu0 %v317
    %879 = vmatpush1.msra.mxu0 %v316
    %880 = vmatprep.subr.mxu0 %v320
    %881 = vmatpush1.msra.mxu0 %v319
    %882 = vmatprep.subr.mxu0 %v323
    %883 = vmatpush1.msra.mxu0 %v322
    %884 = vmatprep.subr.mxu0 %v326
    %885 = vmatpush1.msra.mxu0 %v325
    %886 = vmatprep.subr.mxu0 0.0
    %887 = vmatpush1.msra.mxu0 0.0
    %888 = vmatprep.subr.mxu0 0.0
    %889 = vmatpush1.msra.mxu0 0.0
    %890 = vmatprep.subr.mxu0 0.0
    %891 = vmatpush1.msra.mxu0 0.0
    %892 = vmatprep.subr.mxu0 0.0
    %893 = vmatpush1.msra.mxu0 0.0
    %894 = vmatprep.subr.mxu0 0.0
    %895 = vmatpush1.msra.mxu0 0.0
    %896 = vmatprep.subr.mxu0 0.0
    %897 = vmatpush1.msra.mxu0 0.0
    %898 = vmatprep.subr.mxu0 0.0
    %899 = vmatpush1.msra.mxu0 0.0
    %900 = vmatprep.subr.mxu0 0.0
    %901 = vmatpush1.msra.mxu0 0.0
    %902 = vmatprep.subr.mxu0 0.0
    %903 = vmatpush1.msra.mxu0 0.0
    %904 = vmatprep.subr.mxu0 0.0
    %905 = vmatpush1.msra.mxu0 0.0
    %906 = vmatprep.subr.mxu0 0.0
    %907 = vmatpush1.msra.mxu0 0.0
    %908 = vmatprep.subr.mxu0 0.0
    %909 = vmatpush1.msra.mxu0 0.0
    %910 = vmatprep.subr.mxu0 0.0
    %911 = vmatpush1.msra.mxu0 0.0
    %912 = vmatprep.subr.mxu0 0.0
    %913 = vmatpush1.msra.mxu0 0.0
    %914 = vmatprep.subr.mxu0 0.0
    %915 = vmatpush1.msra.mxu0 0.0
    %916 = vmatprep.subr.mxu0 0.0
    %917 = vmatpush1.msra.mxu0 0.0
    %918 = vmatprep.mubr.f32.mxu0 0.0
    %919 = vmatmul.mubr.f32.gmra.mrb[0].mxu0 %v852
    %v920 = vpop.f32.mrb[0].mxu0
    %v921 = vadd.f32 %v503, %v920
    %v922 = vpop.f32.mrb[0].mxu0
    %v923 = vadd.f32 %v507, %v922
    %924 = vdwg.mxu0
    %925 = vmatprep.subr.mxu0 0.0
    %926 = vmatpush1.msra.mxu0 %v282
    %927 = vmatprep.subr.mxu0 0.0
    %928 = vmatpush1.msra.mxu0 %v285
    %929 = vmatprep.subr.mxu0 0.0
    %930 = vmatpush1.msra.mxu0 %v288
    %931 = vmatprep.subr.mxu0 0.0
    %932 = vmatpush1.msra.mxu0 %v291
    %933 = vmatprep.subr.mxu0 0.0
    %934 = vmatpush1.msra.mxu0 %v294
    %935 = vmatprep.subr.mxu0 0.0
    %936 = vmatpush1.msra.mxu0 %v297
    %937 = vmatprep.subr.mxu0 0.0
    %938 = vmatpush1.msra.mxu0 %v300
    %939 = vmatprep.subr.mxu0 0.0
    %940 = vmatpush1.msra.mxu0 %v303
    %941 = vmatprep.subr.mxu0 0.0
    %942 = vmatpush1.msra.mxu0 %v306
    %943 = vmatprep.subr.mxu0 0.0
    %944 = vmatpush1.msra.mxu0 %v309
    %945 = vmatprep.subr.mxu0 0.0
    %946 = vmatpush1.msra.mxu0 %v312
    %947 = vmatprep.subr.mxu0 0.0
    %948 = vmatpush1.msra.mxu0 %v315
    %949 = vmatprep.subr.mxu0 0.0
    %950 = vmatpush1.msra.mxu0 %v318
    %951 = vmatprep.subr.mxu0 0.0
    %952 = vmatpush1.msra.mxu0 %v321
    %953 = vmatprep.subr.mxu0 0.0
    %954 = vmatpush1.msra.mxu0 %v324
    %955 = vmatprep.subr.mxu0 0.0
    %956 = vmatpush1.msra.mxu0 %v327
    %957 = vmatprep.subr.mxu0 0.0
    %958 = vmatpush1.msra.mxu0 0.0
    %959 = vmatprep.subr.mxu0 0.0
    %960 = vmatpush1.msra.mxu0 0.0
    %961 = vmatprep.subr.mxu0 0.0
    %962 = vmatpush1.msra.mxu0 0.0
    %963 = vmatprep.subr.mxu0 0.0
    %964 = vmatpush1.msra.mxu0 0.0
    %965 = vmatprep.subr.mxu0 0.0
    %966 = vmatpush1.msra.mxu0 0.0
    %967 = vmatprep.subr.mxu0 0.0
    %968 = vmatpush1.msra.mxu0 0.0
    %969 = vmatprep.subr.mxu0 0.0
    %970 = vmatpush1.msra.mxu0 0.0
    %971 = vmatprep.subr.mxu0 0.0
    %972 = vmatpush1.msra.mxu0 0.0
    %973 = vmatprep.subr.mxu0 0.0
    %974 = vmatpush1.msra.mxu0 0.0
    %975 = vmatprep.subr.mxu0 0.0
    %976 = vmatpush1.msra.mxu0 0.0
    %977 = vmatprep.subr.mxu0 0.0
    %978 = vmatpush1.msra.mxu0 0.0
    %979 = vmatprep.subr.mxu0 0.0
    %980 = vmatpush1.msra.mxu0 0.0
    %981 = vmatprep.subr.mxu0 0.0
    %982 = vmatpush1.msra.mxu0 0.0
    %983 = vmatprep.subr.mxu0 0.0
    %984 = vmatpush1.msra.mxu0 0.0
    %985 = vmatprep.subr.mxu0 0.0
    %986 = vmatpush1.msra.mxu0 0.0
    %987 = vmatprep.subr.mxu0 0.0
    %988 = vmatpush1.msra.mxu0 0.0
    %989 = vmatprep.mubr.f32.mxu0 0.0
    %990 = vmatmul.mubr.f32.gmra.mrb[0].mxu0 %v852
    %v991 = vpop.f32.mrb[0].mxu0
    %v992 = vadd.f32 %v511, %v991
    %v993 = vpop.f32.mrb[0].mxu0
    %994 = vdwg.mxu0
    %v997 = vrot.slane %v921, 4
    %v998 = vrot.slane %v923, 4
    %v1001 = vadd.f32 %v413, %v997
    %v1002 = vadd.f32 %v415, %v998
    %v1003 = vxor.u32 %v1001, 2147483648
    %v1004 = vxor.u32 %v1002, 2147483648
    %v1005 = vmul.f32 %v1003, 1.442695
    %v1006 = vpow.pop %v1005
    %v1007 = vmul.f32 %v1004, 1.442695
    %v1008 = vpow.pop %v1007
    %v1009 = vadd.f32 %v1006, 1.0
    %v1010 = vadd.f32 %v1008, 1.0
    %v1011 = vrcp.pop %v1009
    %v1012 = vmul.f32 1.0, %v1011
    %v1013 = vrcp.pop %v1010
    %v1014 = vmul.f32 1.0, %v1013
    %v1016 = vrot.slane %v992, 4
    %v1018 = vmul.f32 %v1012, %v1016
    %v1019 = vadd.f32 %v490, %v1018
    %v1020 = vtanh.pop %v1019
    %v1021 = vsub.f32 1.0, %v1014
    %v1022 = vmul.f32 %v1021, %v1020
    %v1023 = vrot.slane %v850, 6
    %v1025 = vmul.f32 %v1014, %v1023
    %v1026 = vadd.f32 %v1022, %v1025
    %v1028 = vrot.slane %v1026, 4
    %1030 = vmatprep.subr.mxu0 %v281
    %1031 = vmatpush1.msra.mxu0 %v280
    %1032 = vmatprep.subr.mxu0 %v284
    %1033 = vmatpush1.msra.mxu0 %v283
    %1034 = vmatprep.subr.mxu0 %v287
    %1035 = vmatpush1.msra.mxu0 %v286
    %1036 = vmatprep.subr.mxu0 %v290
    %1037 = vmatpush1.msra.mxu0 %v289
    %1038 = vmatprep.subr.mxu0 %v293
    %1039 = vmatpush1.msra.mxu0 %v292
    %1040 = vmatprep.subr.mxu0 %v296
    %1041 = vmatpush1.msra.mxu0 %v295
    %1042 = vmatprep.subr.mxu0 %v299
    %1043 = vmatpush1.msra.mxu0 %v298
    %1044 = vmatprep.subr.mxu0 %v302
    %1045 = vmatpush1.msra.mxu0 %v301
    %1046 = vmatprep.subr.mxu0 %v305
    %1047 = vmatpush1.msra.mxu0 %v304
    %1048 = vmatprep.subr.mxu0 %v308
    %1049 = vmatpush1.msra.mxu0 %v307
    %1050 = vmatprep.subr.mxu0 %v311
    %1051 = vmatpush1.msra.mxu0 %v310
    %1052 = vmatprep.subr.mxu0 %v314
    %1053 = vmatpush1.msra.mxu0 %v313
    %1054 = vmatprep.subr.mxu0 %v317
    %1055 = vmatpush1.msra.mxu0 %v316
    %1056 = vmatprep.subr.mxu0 %v320
    %1057 = vmatpush1.msra.mxu0 %v319
    %1058 = vmatprep.subr.mxu0 %v323
    %1059 = vmatpush1.msra.mxu0 %v322
    %1060 = vmatprep.subr.mxu0 %v326
    %1061 = vmatpush1.msra.mxu0 %v325
    %1062 = vmatprep.subr.mxu0 0.0
    %1063 = vmatpush1.msra.mxu0 0.0
    %1064 = vmatprep.subr.mxu0 0.0
    %1065 = vmatpush1.msra.mxu0 0.0
    %1066 = vmatprep.subr.mxu0 0.0
    %1067 = vmatpush1.msra.mxu0 0.0
    %1068 = vmatprep.subr.mxu0 0.0
    %1069 = vmatpush1.msra.mxu0 0.0
    %1070 = vmatprep.subr.mxu0 0.0
    %1071 = vmatpush1.msra.mxu0 0.0
    %1072 = vmatprep.subr.mxu0 0.0
    %1073 = vmatpush1.msra.mxu0 0.0
    %1074 = vmatprep.subr.mxu0 0.0
    %1075 = vmatpush1.msra.mxu0 0.0
    %1076 = vmatprep.subr.mxu0 0.0
    %1077 = vmatpush1.msra.mxu0 0.0
    %1078 = vmatprep.subr.mxu0 0.0
    %1079 = vmatpush1.msra.mxu0 0.0
    %1080 = vmatprep.subr.mxu0 0.0
    %1081 = vmatpush1.msra.mxu0 0.0
    %1082 = vmatprep.subr.mxu0 0.0
    %1083 = vmatpush1.msra.mxu0 0.0
    %1084 = vmatprep.subr.mxu0 0.0
    %1085 = vmatpush1.msra.mxu0 0.0
    %1086 = vmatprep.subr.mxu0 0.0
    %1087 = vmatpush1.msra.mxu0 0.0
    %1088 = vmatprep.subr.mxu0 0.0
    %1089 = vmatpush1.msra.mxu0 0.0
    %1090 = vmatprep.subr.mxu0 0.0
    %1091 = vmatpush1.msra.mxu0 0.0
    %1092 = vmatprep.subr.mxu0 0.0
    %1093 = vmatpush1.msra.mxu0 0.0
    %1094 = vmatprep.mubr.f32.mxu0 0.0
    %1095 = vmatmul.mubr.f32.gmra.mrb[0].mxu0 %v1028
    %v1096 = vpop.f32.mrb[0].mxu0
    %v1097 = vadd.f32 %v503, %v1096
    %v1098 = vpop.f32.mrb[0].mxu0
    %v1099 = vadd.f32 %v507, %v1098
    %1100 = vdwg.mxu0
    %1101 = vmatprep.subr.mxu0 0.0
    %1102 = vmatpush1.msra.mxu0 %v282
    %1103 = vmatprep.subr.mxu0 0.0
    %1104 = vmatpush1.msra.mxu0 %v285
    %1105 = vmatprep.subr.mxu0 0.0
    %1106 = vmatpush1.msra.mxu0 %v288
    %1107 = vmatprep.subr.mxu0 0.0
    %1108 = vmatpush1.msra.mxu0 %v291
    %1109 = vmatprep.subr.mxu0 0.0
    %1110 = vmatpush1.msra.mxu0 %v294
    %1111 = vmatprep.subr.mxu0 0.0
    %1112 = vmatpush1.msra.mxu0 %v297
    %1113 = vmatprep.subr.mxu0 0.0
    %1114 = vmatpush1.msra.mxu0 %v300
    %1115 = vmatprep.subr.mxu0 0.0
    %1116 = vmatpush1.msra.mxu0 %v303
    %1117 = vmatprep.subr.mxu0 0.0
    %1118 = vmatpush1.msra.mxu0 %v306
    %1119 = vmatprep.subr.mxu0 0.0
    %1120 = vmatpush1.msra.mxu0 %v309
    %1121 = vmatprep.subr.mxu0 0.0
    %1122 = vmatpush1.msra.mxu0 %v312
    %1123 = vmatprep.subr.mxu0 0.0
    %1124 = vmatpush1.msra.mxu0 %v315
    %1125 = vmatprep.subr.mxu0 0.0
    %1126 = vmatpush1.msra.mxu0 %v318
    %1127 = vmatprep.subr.mxu0 0.0
    %1128 = vmatpush1.msra.mxu0 %v321
    %1129 = vmatprep.subr.mxu0 0.0
    %1130 = vmatpush1.msra.mxu0 %v324
    %1131 = vmatprep.subr.mxu0 0.0
    %1132 = vmatpush1.msra.mxu0 %v327
    %1133 = vmatprep.subr.mxu0 0.0
    %1134 = vmatpush1.msra.mxu0 0.0
    %1135 = vmatprep.subr.mxu0 0.0
    %1136 = vmatpush1.msra.mxu0 0.0
    %1137 = vmatprep.subr.mxu0 0.0
    %1138 = vmatpush1.msra.mxu0 0.0
    %1139 = vmatprep.subr.mxu0 0.0
    %1140 = vmatpush1.msra.mxu0 0.0
    %1141 = vmatprep.subr.mxu0 0.0
    %1142 = vmatpush1.msra.mxu0 0.0
    %1143 = vmatprep.subr.mxu0 0.0
    %1144 = vmatpush1.msra.mxu0 0.0
    %1145 = vmatprep.subr.mxu0 0.0
    %1146 = vmatpush1.msra.mxu0 0.0
    %1147 = vmatprep.subr.mxu0 0.0
    %1148 = vmatpush1.msra.mxu0 0.0
    %1149 = vmatprep.subr.mxu0 0.0
    %1150 = vmatpush1.msra.mxu0 0.0
    %1151 = vmatprep.subr.mxu0 0.0
    %1152 = vmatpush1.msra.mxu0 0.0
    %1153 = vmatprep.subr.mxu0 0.0
    %1154 = vmatpush1.msra.mxu0 0.0
    %1155 = vmatprep.subr.mxu0 0.0
    %1156 = vmatpush1.msra.mxu0 0.0
    %1157 = vmatprep.subr.mxu0 0.0
    %1158 = vmatpush1.msra.mxu0 0.0
    %1159 = vmatprep.subr.mxu0 0.0
    %1160 = vmatpush1.msra.mxu0 0.0
    %1161 = vmatprep.subr.mxu0 0.0
    %1162 = vmatpush1.msra.mxu0 0.0
    %1163 = vmatprep.subr.mxu0 0.0
    %1164 = vmatpush1.msra.mxu0 0.0
    %1165 = vmatprep.mubr.f32.mxu0 0.0
    %1166 = vmatmul.mubr.f32.gmra.mrb[0].mxu0 %v1028
    %v1167 = vpop.f32.mrb[0].mxu0
    %v1168 = vadd.f32 %v511, %v1167
    %v1169 = vpop.f32.mrb[0].mxu0
    %1170 = vdwg.mxu0
    %v1173 = vrot.slane %v1097, 2
    %v1174 = vrot.slane %v1099, 2
    %v1177 = vadd.f32 %v413, %v1173
    %v1178 = vadd.f32 %v415, %v1174
    %v1179 = vxor.u32 %v1177, 2147483648
    %v1180 = vxor.u32 %v1178, 2147483648
    %v1181 = vmul.f32 %v1179, 1.442695
    %v1182 = vpow.pop %v1181
    %v1183 = vmul.f32 %v1180, 1.442695
    %v1184 = vpow.pop %v1183
    %v1185 = vadd.f32 %v1182, 1.0
    %v1186 = vadd.f32 %v1184, 1.0
    %v1187 = vrcp.pop %v1185
    %v1188 = vmul.f32 1.0, %v1187
    %v1189 = vrcp.pop %v1186
    %v1190 = vmul.f32 1.0, %v1189
    %v1192 = vrot.slane %v1168, 2
    %v1194 = vmul.f32 %v1188, %v1192
    %v1195 = vadd.f32 %v490, %v1194
    %v1196 = vtanh.pop %v1195
    %v1197 = vsub.f32 1.0, %v1190
    %v1198 = vmul.f32 %v1197, %v1196
    %v1199 = vrot.slane %v1026, 6
    %v1201 = vmul.f32 %v1190, %v1199
    %v1202 = vadd.f32 %v1198, %v1201
    %v1204 = vrot.slane %v1202, 6
    %1206 = vmatprep.subr.mxu0 %v281
    %1207 = vmatpush1.msra.mxu0 %v280
    %1208 = vmatprep.subr.mxu0 %v284
    %1209 = vmatpush1.msra.mxu0 %v283
    %1210 = vmatprep.subr.mxu0 %v287
    %1211 = vmatpush1.msra.mxu0 %v286
    %1212 = vmatprep.subr.mxu0 %v290
    %1213 = vmatpush1.msra.mxu0 %v289
    %1214 = vmatprep.subr.mxu0 %v293
    %1215 = vmatpush1.msra.mxu0 %v292
    %1216 = vmatprep.subr.mxu0 %v296
    %1217 = vmatpush1.msra.mxu0 %v295
    %1218 = vmatprep.subr.mxu0 %v299
    %1219 = vmatpush1.msra.mxu0 %v298
    %1220 = vmatprep.subr.mxu0 %v302
    %1221 = vmatpush1.msra.mxu0 %v301
    %1222 = vmatprep.subr.mxu0 %v305
    %1223 = vmatpush1.msra.mxu0 %v304
    %1224 = vmatprep.subr.mxu0 %v308
    %1225 = vmatpush1.msra.mxu0 %v307
    %1226 = vmatprep.subr.mxu0 %v311
    %1227 = vmatpush1.msra.mxu0 %v310
    %1228 = vmatprep.subr.mxu0 %v314
    %1229 = vmatpush1.msra.mxu0 %v313
    %1230 = vmatprep.subr.mxu0 %v317
    %1231 = vmatpush1.msra.mxu0 %v316
    %1232 = vmatprep.subr.mxu0 %v320
    %1233 = vmatpush1.msra.mxu0 %v319
    %1234 = vmatprep.subr.mxu0 %v323
    %1235 = vmatpush1.msra.mxu0 %v322
    %1236 = vmatprep.subr.mxu0 %v326
    %1237 = vmatpush1.msra.mxu0 %v325
    %1238 = vmatprep.subr.mxu0 0.0
    %1239 = vmatpush1.msra.mxu0 0.0
    %1240 = vmatprep.subr.mxu0 0.0
    %1241 = vmatpush1.msra.mxu0 0.0
    %1242 = vmatprep.subr.mxu0 0.0
    %1243 = vmatpush1.msra.mxu0 0.0
    %1244 = vmatprep.subr.mxu0 0.0
    %1245 = vmatpush1.msra.mxu0 0.0
    %1246 = vmatprep.subr.mxu0 0.0
    %1247 = vmatpush1.msra.mxu0 0.0
    %1248 = vmatprep.subr.mxu0 0.0
    %1249 = vmatpush1.msra.mxu0 0.0
    %1250 = vmatprep.subr.mxu0 0.0
    %1251 = vmatpush1.msra.mxu0 0.0
    %1252 = vmatprep.subr.mxu0 0.0
    %1253 = vmatpush1.msra.mxu0 0.0
    %1254 = vmatprep.subr.mxu0 0.0
    %1255 = vmatpush1.msra.mxu0 0.0
    %1256 = vmatprep.subr.mxu0 0.0
    %1257 = vmatpush1.msra.mxu0 0.0
    %1258 = vmatprep.subr.mxu0 0.0
    %1259 = vmatpush1.msra.mxu0 0.0
    %1260 = vmatprep.subr.mxu0 0.0
    %1261 = vmatpush1.msra.mxu0 0.0
    %1262 = vmatprep.subr.mxu0 0.0
    %1263 = vmatpush1.msra.mxu0 0.0
    %1264 = vmatprep.subr.mxu0 0.0
    %1265 = vmatpush1.msra.mxu0 0.0
    %1266 = vmatprep.subr.mxu0 0.0
    %1267 = vmatpush1.msra.mxu0 0.0
    %1268 = vmatprep.subr.mxu0 0.0
    %1269 = vmatpush1.msra.mxu0 0.0
    %1270 = vmatprep.mubr.f32.mxu0 0.0
    %1271 = vmatmul.mubr.f32.gmra.mrb[0].mxu0 %v1204
    %v1272 = vpop.f32.mrb[0].mxu0
    %v1273 = vadd.f32 %v503, %v1272
    %v1274 = vpop.f32.mrb[0].mxu0
    %v1275 = vadd.f32 %v507, %v1274
    %1276 = vdwg.mxu0
    %1277 = vmatprep.subr.mxu0 0.0
    %1278 = vmatpush1.msra.mxu0 %v282
    %1279 = vmatprep.subr.mxu0 0.0
    %1280 = vmatpush1.msra.mxu0 %v285
    %1281 = vmatprep.subr.mxu0 0.0
    %1282 = vmatpush1.msra.mxu0 %v288
    %1283 = vmatprep.subr.mxu0 0.0
    %1284 = vmatpush1.msra.mxu0 %v291
    %1285 = vmatprep.subr.mxu0 0.0
    %1286 = vmatpush1.msra.mxu0 %v294
    %1287 = vmatprep.subr.mxu0 0.0
    %1288 = vmatpush1.msra.mxu0 %v297
    %1289 = vmatprep.subr.mxu0 0.0
    %1290 = vmatpush1.msra.mxu0 %v300
    %1291 = vmatprep.subr.mxu0 0.0
    %1292 = vmatpush1.msra.mxu0 %v303
    %1293 = vmatprep.subr.mxu0 0.0
    %1294 = vmatpush1.msra.mxu0 %v306
    %1295 = vmatprep.subr.mxu0 0.0
    %1296 = vmatpush1.msra.mxu0 %v309
    %1297 = vmatprep.subr.mxu0 0.0
    %1298 = vmatpush1.msra.mxu0 %v312
    %1299 = vmatprep.subr.mxu0 0.0
    %1300 = vmatpush1.msra.mxu0 %v315
    %1301 = vmatprep.subr.mxu0 0.0
    %1302 = vmatpush1.msra.mxu0 %v318
    %1303 = vmatprep.subr.mxu0 0.0
    %1304 = vmatpush1.msra.mxu0 %v321
    %1305 = vmatprep.subr.mxu0 0.0
    %1306 = vmatpush1.msra.mxu0 %v324
    %1307 = vmatprep.subr.mxu0 0.0
    %1308 = vmatpush1.msra.mxu0 %v327
    %1309 = vmatprep.subr.mxu0 0.0
    %1310 = vmatpush1.msra.mxu0 0.0
    %1311 = vmatprep.subr.mxu0 0.0
    %1312 = vmatpush1.msra.mxu0 0.0
    %1313 = vmatprep.subr.mxu0 0.0
    %1314 = vmatpush1.msra.mxu0 0.0
    %1315 = vmatprep.subr.mxu0 0.0
    %1316 = vmatpush1.msra.mxu0 0.0
    %1317 = vmatprep.subr.mxu0 0.0
    %1318 = vmatpush1.msra.mxu0 0.0
    %1319 = vmatprep.subr.mxu0 0.0
    %1320 = vmatpush1.msra.mxu0 0.0
    %1321 = vmatprep.subr.mxu0 0.0
    %1322 = vmatpush1.msra.mxu0 0.0
    %1323 = vmatprep.subr.mxu0 0.0
    %1324 = vmatpush1.msra.mxu0 0.0
    %1325 = vmatprep.subr.mxu0 0.0
    %1326 = vmatpush1.msra.mxu0 0.0
    %1327 = vmatprep.subr.mxu0 0.0
    %1328 = vmatpush1.msra.mxu0 0.0
    %1329 = vmatprep.subr.mxu0 0.0
    %1330 = vmatpush1.msra.mxu0 0.0
    %1331 = vmatprep.subr.mxu0 0.0
    %1332 = vmatpush1.msra.mxu0 0.0
    %1333 = vmatprep.subr.mxu0 0.0
    %1334 = vmatpush1.msra.mxu0 0.0
    %1335 = vmatprep.subr.mxu0 0.0
    %1336 = vmatpush1.msra.mxu0 0.0
    %1337 = vmatprep.subr.mxu0 0.0
    %1338 = vmatpush1.msra.mxu0 0.0
    %1339 = vmatprep.subr.mxu0 0.0
    %1340 = vmatpush1.msra.mxu0 0.0
    %1341 = vmatprep.mubr.f32.mxu0 0.0
    %1342 = vmatmul.mubr.f32.gmra.mrb[0].mxu0 %v1204
    %v1343 = vpop.f32.mrb[0].mxu0
    %v1344 = vadd.f32 %v511, %v1343
    %v1345 = vpop.f32.mrb[0].mxu0
    %1346 = vdwg.mxu0
    %v1347 = vadd.f32 %v419, %v1273
    %v1348 = vadd.f32 %v421, %v1275
    %v1349 = vxor.u32 %v1347, 2147483648
    %v1350 = vxor.u32 %v1348, 2147483648
    %v1351 = vmul.f32 %v1349, 1.442695
    %v1352 = vpow.pop %v1351
    %v1353 = vmul.f32 %v1350, 1.442695
    %v1354 = vpow.pop %v1353
    %v1355 = vadd.f32 %v1352, 1.0
    %v1356 = vadd.f32 %v1354, 1.0
    %v1357 = vrcp.pop %v1355
    %v1358 = vmul.f32 1.0, %v1357
    %v1359 = vrcp.pop %v1356
    %v1360 = vmul.f32 1.0, %v1359
    %v1361 = vmul.f32 %v1358, %v1344
    %v1362 = vadd.f32 %v495, %v1361
    %v1363 = vtanh.pop %v1362
    %v1364 = vsub.f32 1.0, %v1360
    %v1365 = vmul.f32 %v1364, %v1363
    %v1366 = vmul.f32 %v1360, %v1204
    %v1367 = vadd.f32 %v1365, %v1366
    %1368 = vmatprep.subr.mxu0 %v281
    %1369 = vmatpush1.msra.mxu0 %v280
    %1370 = vmatprep.subr.mxu0 %v284
    %1371 = vmatpush1.msra.mxu0 %v283
    %1372 = vmatprep.subr.mxu0 %v287
    %1373 = vmatpush1.msra.mxu0 %v286
    %1374 = vmatprep.subr.mxu0 %v290
    %1375 = vmatpush1.msra.mxu0 %v289
    %1376 = vmatprep.subr.mxu0 %v293
    %1377 = vmatpush1.msra.mxu0 %v292
    %1378 = vmatprep.subr.mxu0 %v296
    %1379 = vmatpush1.msra.mxu0 %v295
    %1380 = vmatprep.subr.mxu0 %v299
    %1381 = vmatpush1.msra.mxu0 %v298
    %1382 = vmatprep.subr.mxu0 %v302
    %1383 = vmatpush1.msra.mxu0 %v301
    %1384 = vmatprep.subr.mxu0 %v305
    %1385 = vmatpush1.msra.mxu0 %v304
    %1386 = vmatprep.subr.mxu0 %v308
    %1387 = vmatpush1.msra.mxu0 %v307
    %1388 = vmatprep.subr.mxu0 %v311
    %1389 = vmatpush1.msra.mxu0 %v310
    %1390 = vmatprep.subr.mxu0 %v314
    %1391 = vmatpush1.msra.mxu0 %v313
    %1392 = vmatprep.subr.mxu0 %v317
    %1393 = vmatpush1.msra.mxu0 %v316
    %1394 = vmatprep.subr.mxu0 %v320
    %1395 = vmatpush1.msra.mxu0 %v319
    %1396 = vmatprep.subr.mxu0 %v323
    %1397 = vmatpush1.msra.mxu0 %v322
    %1398 = vmatprep.subr.mxu0 %v326
    %1399 = vmatpush1.msra.mxu0 %v325
    %1400 = vmatprep.subr.mxu0 0.0
    %1401 = vmatpush1.msra.mxu0 0.0
    %1402 = vmatprep.subr.mxu0 0.0
    %1403 = vmatpush1.msra.mxu0 0.0
    %1404 = vmatprep.subr.mxu0 0.0
    %1405 = vmatpush1.msra.mxu0 0.0
    %1406 = vmatprep.subr.mxu0 0.0
    %1407 = vmatpush1.msra.mxu0 0.0
    %1408 = vmatprep.subr.mxu0 0.0
    %1409 = vmatpush1.msra.mxu0 0.0
    %1410 = vmatprep.subr.mxu0 0.0
    %1411 = vmatpush1.msra.mxu0 0.0
    %1412 = vmatprep.subr.mxu0 0.0
    %1413 = vmatpush1.msra.mxu0 0.0
    %1414 = vmatprep.subr.mxu0 0.0
    %1415 = vmatpush1.msra.mxu0 0.0
    %1416 = vmatprep.subr.mxu0 0.0
    %1417 = vmatpush1.msra.mxu0 0.0
    %1418 = vmatprep.subr.mxu0 0.0
    %1419 = vmatpush1.msra.mxu0 0.0
    %1420 = vmatprep.subr.mxu0 0.0
    %1421 = vmatpush1.msra.mxu0 0.0
    %1422 = vmatprep.subr.mxu0 0.0
    %1423 = vmatpush1.msra.mxu0 0.0
    %1424 = vmatprep.subr.mxu0 0.0
    %1425 = vmatpush1.msra.mxu0 0.0
    %1426 = vmatprep.subr.mxu0 0.0
    %1427 = vmatpush1.msra.mxu0 0.0
    %1428 = vmatprep.subr.mxu0 0.0
    %1429 = vmatpush1.msra.mxu0 0.0
    %1430 = vmatprep.subr.mxu0 0.0
    %1431 = vmatpush1.msra.mxu0 0.0
    %1432 = vmatprep.mubr.f32.mxu0 0.0
    %1433 = vmatmul.mubr.f32.gmra.mrb[0].mxu0 %v1367
    %v1434 = vpop.f32.mrb[0].mxu0
    %v1435 = vadd.f32 %v503, %v1434
    %v1436 = vpop.f32.mrb[0].mxu0
    %v1437 = vadd.f32 %v507, %v1436
    %1438 = vdwg.mxu0
    %1439 = vmatprep.subr.mxu0 0.0
    %1440 = vmatpush1.msra.mxu0 %v282
    %1441 = vmatprep.subr.mxu0 0.0
    %1442 = vmatpush1.msra.mxu0 %v285
    %1443 = vmatprep.subr.mxu0 0.0
    %1444 = vmatpush1.msra.mxu0 %v288
    %1445 = vmatprep.subr.mxu0 0.0
    %1446 = vmatpush1.msra.mxu0 %v291
    %1447 = vmatprep.subr.mxu0 0.0
    %1448 = vmatpush1.msra.mxu0 %v294
    %1449 = vmatprep.subr.mxu0 0.0
    %1450 = vmatpush1.msra.mxu0 %v297
    %1451 = vmatprep.subr.mxu0 0.0
    %1452 = vmatpush1.msra.mxu0 %v300
    %1453 = vmatprep.subr.mxu0 0.0
    %1454 = vmatpush1.msra.mxu0 %v303
    %1455 = vmatprep.subr.mxu0 0.0
    %1456 = vmatpush1.msra.mxu0 %v306
    %1457 = vmatprep.subr.mxu0 0.0
    %1458 = vmatpush1.msra.mxu0 %v309
    %1459 = vmatprep.subr.mxu0 0.0
    %1460 = vmatpush1.msra.mxu0 %v312
    %1461 = vmatprep.subr.mxu0 0.0
    %1462 = vmatpush1.msra.mxu0 %v315
    %1463 = vmatprep.subr.mxu0 0.0
    %1464 = vmatpush1.msra.mxu0 %v318
    %1465 = vmatprep.subr.mxu0 0.0
    %1466 = vmatpush1.msra.mxu0 %v321
    %1467 = vmatprep.subr.mxu0 0.0
    %1468 = vmatpush1.msra.mxu0 %v324
    %1469 = vmatprep.subr.mxu0 0.0
    %1470 = vmatpush1.msra.mxu0 %v327
    %1471 = vmatprep.subr.mxu0 0.0
    %1472 = vmatpush1.msra.mxu0 0.0
    %1473 = vmatprep.subr.mxu0 0.0
    %1474 = vmatpush1.msra.mxu0 0.0
    %1475 = vmatprep.subr.mxu0 0.0
    %1476 = vmatpush1.msra.mxu0 0.0
    %1477 = vmatprep.subr.mxu0 0.0
    %1478 = vmatpush1.msra.mxu0 0.0
    %1479 = vmatprep.subr.mxu0 0.0
    %1480 = vmatpush1.msra.mxu0 0.0
    %1481 = vmatprep.subr.mxu0 0.0
    %1482 = vmatpush1.msra.mxu0 0.0
    %1483 = vmatprep.subr.mxu0 0.0
    %1484 = vmatpush1.msra.mxu0 0.0
    %1485 = vmatprep.subr.mxu0 0.0
    %1486 = vmatpush1.msra.mxu0 0.0
    %1487 = vmatprep.subr.mxu0 0.0
    %1488 = vmatpush1.msra.mxu0 0.0
    %1489 = vmatprep.subr.mxu0 0.0
    %1490 = vmatpush1.msra.mxu0 0.0
    %1491 = vmatprep.subr.mxu0 0.0
    %1492 = vmatpush1.msra.mxu0 0.0
    %1493 = vmatprep.subr.mxu0 0.0
    %1494 = vmatpush1.msra.mxu0 0.0
    %1495 = vmatprep.subr.mxu0 0.0
    %1496 = vmatpush1.msra.mxu0 0.0
    %1497 = vmatprep.subr.mxu0 0.0
    %1498 = vmatpush1.msra.mxu0 0.0
    %1499 = vmatprep.subr.mxu0 0.0
    %1500 = vmatpush1.msra.mxu0 0.0
    %1501 = vmatprep.subr.mxu0 0.0
    %1502 = vmatpush1.msra.mxu0 0.0
    %1503 = vmatprep.mubr.f32.mxu0 0.0
    %1504 = vmatmul.mubr.f32.gmra.mrb[0].mxu0 %v1367
    %v1505 = vpop.f32.mrb[0].mxu0
    %v1506 = vadd.f32 %v511, %v1505
    %v1507 = vpop.f32.mrb[0].mxu0
    %1508 = vdwg.mxu0
    %v1511 = vrot.slane %v1435, 6
    %v1512 = vrot.slane %v1437, 6
    %v1515 = vadd.f32 %v419, %v1511
    %v1516 = vadd.f32 %v421, %v1512
    %v1517 = vxor.u32 %v1515, 2147483648
    %v1518 = vxor.u32 %v1516, 2147483648
    %v1519 = vmul.f32 %v1517, 1.442695
    %v1520 = vpow.pop %v1519
    %v1521 = vmul.f32 %v1518, 1.442695
    %v1522 = vpow.pop %v1521
    %v1523 = vadd.f32 %v1520, 1.0
    %v1524 = vadd.f32 %v1522, 1.0
    %v1525 = vrcp.pop %v1523
    %v1526 = vmul.f32 1.0, %v1525
    %v1527 = vrcp.pop %v1524
    %v1528 = vmul.f32 1.0, %v1527
    %v1530 = vrot.slane %v1506, 6
    %v1532 = vmul.f32 %v1526, %v1530
    %v1533 = vadd.f32 %v495, %v1532
    %v1534 = vtanh.pop %v1533
    %v1535 = vsub.f32 1.0, %v1528
    %v1536 = vmul.f32 %v1535, %v1534
    %v1538 = vrot.slane %v1367, 6
    %v1540 = vmul.f32 %v1528, %v1538
    %v1541 = vadd.f32 %v1536, %v1540
    %v1543 = vrot.slane %v1541, 2
    %1545 = vmatprep.subr.mxu0 %v281
    %1546 = vmatpush1.msra.mxu0 %v280
    %1547 = vmatprep.subr.mxu0 %v284
    %1548 = vmatpush1.msra.mxu0 %v283
    %1549 = vmatprep.subr.mxu0 %v287
    %1550 = vmatpush1.msra.mxu0 %v286
    %1551 = vmatprep.subr.mxu0 %v290
    %1552 = vmatpush1.msra.mxu0 %v289
    %1553 = vmatprep.subr.mxu0 %v293
    %1554 = vmatpush1.msra.mxu0 %v292
    %1555 = vmatprep.subr.mxu0 %v296
    %1556 = vmatpush1.msra.mxu0 %v295
    %1557 = vmatprep.subr.mxu0 %v299
    %1558 = vmatpush1.msra.mxu0 %v298
    %1559 = vmatprep.subr.mxu0 %v302
    %1560 = vmatpush1.msra.mxu0 %v301
    %1561 = vmatprep.subr.mxu0 %v305
    %1562 = vmatpush1.msra.mxu0 %v304
    %1563 = vmatprep.subr.mxu0 %v308
    %1564 = vmatpush1.msra.mxu0 %v307
    %1565 = vmatprep.subr.mxu0 %v311
    %1566 = vmatpush1.msra.mxu0 %v310
    %1567 = vmatprep.subr.mxu0 %v314
    %1568 = vmatpush1.msra.mxu0 %v313
    %1569 = vmatprep.subr.mxu0 %v317
    %1570 = vmatpush1.msra.mxu0 %v316
    %1571 = vmatprep.subr.mxu0 %v320
    %1572 = vmatpush1.msra.mxu0 %v319
    %1573 = vmatprep.subr.mxu0 %v323
    %1574 = vmatpush1.msra.mxu0 %v322
    %1575 = vmatprep.subr.mxu0 %v326
    %1576 = vmatpush1.msra.mxu0 %v325
    %1577 = vmatprep.subr.mxu0 0.0
    %1578 = vmatpush1.msra.mxu0 0.0
    %1579 = vmatprep.subr.mxu0 0.0
    %1580 = vmatpush1.msra.mxu0 0.0
    %1581 = vmatprep.subr.mxu0 0.0
    %1582 = vmatpush1.msra.mxu0 0.0
    %1583 = vmatprep.subr.mxu0 0.0
    %1584 = vmatpush1.msra.mxu0 0.0
    %1585 = vmatprep.subr.mxu0 0.0
    %1586 = vmatpush1.msra.mxu0 0.0
    %1587 = vmatprep.subr.mxu0 0.0
    %1588 = vmatpush1.msra.mxu0 0.0
    %1589 = vmatprep.subr.mxu0 0.0
    %1590 = vmatpush1.msra.mxu0 0.0
    %1591 = vmatprep.subr.mxu0 0.0
    %1592 = vmatpush1.msra.mxu0 0.0
    %1593 = vmatprep.subr.mxu0 0.0
    %1594 = vmatpush1.msra.mxu0 0.0
    %1595 = vmatprep.subr.mxu0 0.0
    %1596 = vmatpush1.msra.mxu0 0.0
    %1597 = vmatprep.subr.mxu0 0.0
    %1598 = vmatpush1.msra.mxu0 0.0
    %1599 = vmatprep.subr.mxu0 0.0
    %1600 = vmatpush1.msra.mxu0 0.0
    %1601 = vmatprep.subr.mxu0 0.0
    %1602 = vmatpush1.msra.mxu0 0.0
    %1603 = vmatprep.subr.mxu0 0.0
    %1604 = vmatpush1.msra.mxu0 0.0
    %1605 = vmatprep.subr.mxu0 0.0
    %1606 = vmatpush1.msra.mxu0 0.0
    %1607 = vmatprep.subr.mxu0 0.0
    %1608 = vmatpush1.msra.mxu0 0.0
    %1609 = vmatprep.mubr.f32.mxu0 0.0
    %1610 = vmatmul.mubr.f32.gmra.mrb[0].mxu0 %v1543
    %v1611 = vpop.f32.mrb[0].mxu0
    %v1612 = vadd.f32 %v503, %v1611
    %v1613 = vpop.f32.mrb[0].mxu0
    %v1614 = vadd.f32 %v507, %v1613
    %1615 = vdwg.mxu0
    %1616 = vmatprep.subr.mxu0 0.0
    %1617 = vmatpush1.msra.mxu0 %v282
    %1618 = vmatprep.subr.mxu0 0.0
    %1619 = vmatpush1.msra.mxu0 %v285
    %1620 = vmatprep.subr.mxu0 0.0
    %1621 = vmatpush1.msra.mxu0 %v288
    %1622 = vmatprep.subr.mxu0 0.0
    %1623 = vmatpush1.msra.mxu0 %v291
    %1624 = vmatprep.subr.mxu0 0.0
    %1625 = vmatpush1.msra.mxu0 %v294
    %1626 = vmatprep.subr.mxu0 0.0
    %1627 = vmatpush1.msra.mxu0 %v297
    %1628 = vmatprep.subr.mxu0 0.0
    %1629 = vmatpush1.msra.mxu0 %v300
    %1630 = vmatprep.subr.mxu0 0.0
    %1631 = vmatpush1.msra.mxu0 %v303
    %1632 = vmatprep.subr.mxu0 0.0
    %1633 = vmatpush1.msra.mxu0 %v306
    %1634 = vmatprep.subr.mxu0 0.0
    %1635 = vmatpush1.msra.mxu0 %v309
    %1636 = vmatprep.subr.mxu0 0.0
    %1637 = vmatpush1.msra.mxu0 %v312
    %1638 = vmatprep.subr.mxu0 0.0
    %1639 = vmatpush1.msra.mxu0 %v315
    %1640 = vmatprep.subr.mxu0 0.0
    %1641 = vmatpush1.msra.mxu0 %v318
    %1642 = vmatprep.subr.mxu0 0.0
    %1643 = vmatpush1.msra.mxu0 %v321
    %1644 = vmatprep.subr.mxu0 0.0
    %1645 = vmatpush1.msra.mxu0 %v324
    %1646 = vmatprep.subr.mxu0 0.0
    %1647 = vmatpush1.msra.mxu0 %v327
    %1648 = vmatprep.subr.mxu0 0.0
    %1649 = vmatpush1.msra.mxu0 0.0
    %1650 = vmatprep.subr.mxu0 0.0
    %1651 = vmatpush1.msra.mxu0 0.0
    %1652 = vmatprep.subr.mxu0 0.0
    %1653 = vmatpush1.msra.mxu0 0.0
    %1654 = vmatprep.subr.mxu0 0.0
    %1655 = vmatpush1.msra.mxu0 0.0
    %1656 = vmatprep.subr.mxu0 0.0
    %1657 = vmatpush1.msra.mxu0 0.0
    %1658 = vmatprep.subr.mxu0 0.0
    %1659 = vmatpush1.msra.mxu0 0.0
    %1660 = vmatprep.subr.mxu0 0.0
    %1661 = vmatpush1.msra.mxu0 0.0
    %1662 = vmatprep.subr.mxu0 0.0
    %1663 = vmatpush1.msra.mxu0 0.0
    %1664 = vmatprep.subr.mxu0 0.0
    %1665 = vmatpush1.msra.mxu0 0.0
    %1666 = vmatprep.subr.mxu0 0.0
    %1667 = vmatpush1.msra.mxu0 0.0
    %1668 = vmatprep.subr.mxu0 0.0
    %1669 = vmatpush1.msra.mxu0 0.0
    %1670 = vmatprep.subr.mxu0 0.0
    %1671 = vmatpush1.msra.mxu0 0.0
    %1672 = vmatprep.subr.mxu0 0.0
    %1673 = vmatpush1.msra.mxu0 0.0
    %1674 = vmatprep.subr.mxu0 0.0
    %1675 = vmatpush1.msra.mxu0 0.0
    %1676 = vmatprep.subr.mxu0 0.0
    %1677 = vmatpush1.msra.mxu0 0.0
    %1678 = vmatprep.subr.mxu0 0.0
    %1679 = vmatpush1.msra.mxu0 0.0
    %1680 = vmatprep.mubr.f32.mxu0 0.0
    %1681 = vmatmul.mubr.f32.gmra.mrb[0].mxu0 %v1543
    %v1682 = vpop.f32.mrb[0].mxu0
    %v1683 = vadd.f32 %v511, %v1682
    %v1684 = vpop.f32.mrb[0].mxu0
    %1685 = vdwg.mxu0
    %v1688 = vrot.slane %v1612, 4
    %v1689 = vrot.slane %v1614, 4
    %v1692 = vadd.f32 %v419, %v1688
    %v1693 = vadd.f32 %v421, %v1689
    %v1694 = vxor.u32 %v1692, 2147483648
    %v1695 = vxor.u32 %v1693, 2147483648
    %v1696 = vmul.f32 %v1694, 1.442695
    %v1697 = vpow.pop %v1696
    %v1698 = vmul.f32 %v1695, 1.442695
    %v1699 = vpow.pop %v1698
    %v1700 = vadd.f32 %v1697, 1.0
    %v1701 = vadd.f32 %v1699, 1.0
    %v1702 = vrcp.pop %v1700
    %v1703 = vmul.f32 1.0, %v1702
    %v1704 = vrcp.pop %v1701
    %v1705 = vmul.f32 1.0, %v1704
    %v1707 = vrot.slane %v1683, 4
    %v1709 = vmul.f32 %v1703, %v1707
    %v1710 = vadd.f32 %v495, %v1709
    %v1711 = vtanh.pop %v1710
    %v1712 = vsub.f32 1.0, %v1705
    %v1713 = vmul.f32 %v1712, %v1711
    %v1714 = vrot.slane %v1541, 6
    %v1716 = vmul.f32 %v1705, %v1714
    %v1717 = vadd.f32 %v1713, %v1716
    %v1719 = vrot.slane %v1717, 4
    %1721 = vmatprep.subr.mxu0 %v281
    %1722 = vmatpush1.msra.mxu0 %v280
    %1723 = vmatprep.subr.mxu0 %v284
    %1724 = vmatpush1.msra.mxu0 %v283
    %1725 = vmatprep.subr.mxu0 %v287
    %1726 = vmatpush1.msra.mxu0 %v286
    %1727 = vmatprep.subr.mxu0 %v290
    %1728 = vmatpush1.msra.mxu0 %v289
    %1729 = vmatprep.subr.mxu0 %v293
    %1730 = vmatpush1.msra.mxu0 %v292
    %1731 = vmatprep.subr.mxu0 %v296
    %1732 = vmatpush1.msra.mxu0 %v295
    %1733 = vmatprep.subr.mxu0 %v299
    %1734 = vmatpush1.msra.mxu0 %v298
    %1735 = vmatprep.subr.mxu0 %v302
    %1736 = vmatpush1.msra.mxu0 %v301
    %1737 = vmatprep.subr.mxu0 %v305
    %1738 = vmatpush1.msra.mxu0 %v304
    %1739 = vmatprep.subr.mxu0 %v308
    %1740 = vmatpush1.msra.mxu0 %v307
    %1741 = vmatprep.subr.mxu0 %v311
    %1742 = vmatpush1.msra.mxu0 %v310
    %1743 = vmatprep.subr.mxu0 %v314
    %1744 = vmatpush1.msra.mxu0 %v313
    %1745 = vmatprep.subr.mxu0 %v317
    %1746 = vmatpush1.msra.mxu0 %v316
    %1747 = vmatprep.subr.mxu0 %v320
    %1748 = vmatpush1.msra.mxu0 %v319
    %1749 = vmatprep.subr.mxu0 %v323
    %1750 = vmatpush1.msra.mxu0 %v322
    %1751 = vmatprep.subr.mxu0 %v326
    %1752 = vmatpush1.msra.mxu0 %v325
    %1753 = vmatprep.subr.mxu0 0.0
    %1754 = vmatpush1.msra.mxu0 0.0
    %1755 = vmatprep.subr.mxu0 0.0
    %1756 = vmatpush1.msra.mxu0 0.0
    %1757 = vmatprep.subr.mxu0 0.0
    %1758 = vmatpush1.msra.mxu0 0.0
    %1759 = vmatprep.subr.mxu0 0.0
    %1760 = vmatpush1.msra.mxu0 0.0
    %1761 = vmatprep.subr.mxu0 0.0
    %1762 = vmatpush1.msra.mxu0 0.0
    %1763 = vmatprep.subr.mxu0 0.0
    %1764 = vmatpush1.msra.mxu0 0.0
    %1765 = vmatprep.subr.mxu0 0.0
    %1766 = vmatpush1.msra.mxu0 0.0
    %1767 = vmatprep.subr.mxu0 0.0
    %1768 = vmatpush1.msra.mxu0 0.0
    %1769 = vmatprep.subr.mxu0 0.0
    %1770 = vmatpush1.msra.mxu0 0.0
    %1771 = vmatprep.subr.mxu0 0.0
    %1772 = vmatpush1.msra.mxu0 0.0
    %1773 = vmatprep.subr.mxu0 0.0
    %1774 = vmatpush1.msra.mxu0 0.0
    %1775 = vmatprep.subr.mxu0 0.0
    %1776 = vmatpush1.msra.mxu0 0.0
    %1777 = vmatprep.subr.mxu0 0.0
    %1778 = vmatpush1.msra.mxu0 0.0
    %1779 = vmatprep.subr.mxu0 0.0
    %1780 = vmatpush1.msra.mxu0 0.0
    %1781 = vmatprep.subr.mxu0 0.0
    %1782 = vmatpush1.msra.mxu0 0.0
    %1783 = vmatprep.subr.mxu0 0.0
    %1784 = vmatpush1.msra.mxu0 0.0
    %1785 = vmatprep.mubr.f32.mxu0 0.0
    %1786 = vmatmul.mubr.f32.gmra.mrb[0].mxu0 %v1719
    %v1787 = vpop.f32.mrb[0].mxu0
    %v1788 = vadd.f32 %v503, %v1787
    %v1789 = vpop.f32.mrb[0].mxu0
    %v1790 = vadd.f32 %v507, %v1789
    %1791 = vdwg.mxu0
    %1792 = vmatprep.subr.mxu0 0.0
    %1793 = vmatpush1.msra.mxu0 %v282
    %1794 = vmatprep.subr.mxu0 0.0
    %1795 = vmatpush1.msra.mxu0 %v285
    %1796 = vmatprep.subr.mxu0 0.0
    %1797 = vmatpush1.msra.mxu0 %v288
    %1798 = vmatprep.subr.mxu0 0.0
    %1799 = vmatpush1.msra.mxu0 %v291
    %1800 = vmatprep.subr.mxu0 0.0
    %1801 = vmatpush1.msra.mxu0 %v294
    %1802 = vmatprep.subr.mxu0 0.0
    %1803 = vmatpush1.msra.mxu0 %v297
    %1804 = vmatprep.subr.mxu0 0.0
    %1805 = vmatpush1.msra.mxu0 %v300
    %1806 = vmatprep.subr.mxu0 0.0
    %1807 = vmatpush1.msra.mxu0 %v303
    %1808 = vmatprep.subr.mxu0 0.0
    %1809 = vmatpush1.msra.mxu0 %v306
    %1810 = vmatprep.subr.mxu0 0.0
    %1811 = vmatpush1.msra.mxu0 %v309
    %1812 = vmatprep.subr.mxu0 0.0
    %1813 = vmatpush1.msra.mxu0 %v312
    %1814 = vmatprep.subr.mxu0 0.0
    %1815 = vmatpush1.msra.mxu0 %v315
    %1816 = vmatprep.subr.mxu0 0.0
    %1817 = vmatpush1.msra.mxu0 %v318
    %1818 = vmatprep.subr.mxu0 0.0
    %1819 = vmatpush1.msra.mxu0 %v321
    %1820 = vmatprep.subr.mxu0 0.0
    %1821 = vmatpush1.msra.mxu0 %v324
    %1822 = vmatprep.subr.mxu0 0.0
    %1823 = vmatpush1.msra.mxu0 %v327
    %1824 = vmatprep.subr.mxu0 0.0
    %1825 = vmatpush1.msra.mxu0 0.0
    %1826 = vmatprep.subr.mxu0 0.0
    %1827 = vmatpush1.msra.mxu0 0.0
    %1828 = vmatprep.subr.mxu0 0.0
    %1829 = vmatpush1.msra.mxu0 0.0
    %1830 = vmatprep.subr.mxu0 0.0
    %1831 = vmatpush1.msra.mxu0 0.0
    %1832 = vmatprep.subr.mxu0 0.0
    %1833 = vmatpush1.msra.mxu0 0.0
    %1834 = vmatprep.subr.mxu0 0.0
    %1835 = vmatpush1.msra.mxu0 0.0
    %1836 = vmatprep.subr.mxu0 0.0
    %1837 = vmatpush1.msra.mxu0 0.0
    %1838 = vmatprep.subr.mxu0 0.0
    %1839 = vmatpush1.msra.mxu0 0.0
    %1840 = vmatprep.subr.mxu0 0.0
    %1841 = vmatpush1.msra.mxu0 0.0
    %1842 = vmatprep.subr.mxu0 0.0
    %1843 = vmatpush1.msra.mxu0 0.0
    %1844 = vmatprep.subr.mxu0 0.0
    %1845 = vmatpush1.msra.mxu0 0.0
    %1846 = vmatprep.subr.mxu0 0.0
    %1847 = vmatpush1.msra.mxu0 0.0
    %1848 = vmatprep.subr.mxu0 0.0
    %1849 = vmatpush1.msra.mxu0 0.0
    %1850 = vmatprep.subr.mxu0 0.0
    %1851 = vmatpush1.msra.mxu0 0.0
    %1852 = vmatprep.subr.mxu0 0.0
    %1853 = vmatpush1.msra.mxu0 0.0
    %1854 = vmatprep.subr.mxu0 0.0
    %1855 = vmatpush1.msra.mxu0 0.0
    %1856 = vmatprep.mubr.f32.mxu0 0.0
    %1857 = vmatmul.mubr.f32.gmra.mrb[0].mxu0 %v1719
    %v1858 = vpop.f32.mrb[0].mxu0
    %v1859 = vadd.f32 %v511, %v1858
    %v1860 = vpop.f32.mrb[0].mxu0
    %1861 = vdwg.mxu0
    %v1864 = vrot.slane %v1788, 2
    %v1865 = vrot.slane %v1790, 2
    %v1868 = vadd.f32 %v419, %v1864
    %v1869 = vadd.f32 %v421, %v1865
    %v1870 = vxor.u32 %v1868, 2147483648
    %v1871 = vxor.u32 %v1869, 2147483648
    %v1872 = vmul.f32 %v1870, 1.442695
    %v1873 = vpow.pop %v1872
    %v1874 = vmul.f32 %v1871, 1.442695
    %v1875 = vpow.pop %v1874
    %v1876 = vadd.f32 %v1873, 1.0
    %v1877 = vadd.f32 %v1875, 1.0
    %v1878 = vrcp.pop %v1876
    %v1879 = vmul.f32 1.0, %v1878
    %v1880 = vrcp.pop %v1877
    %v1881 = vmul.f32 1.0, %v1880
    %v1883 = vrot.slane %v1859, 2
    %v1885 = vmul.f32 %v1879, %v1883
    %v1886 = vadd.f32 %v495, %v1885
    %v1887 = vtanh.pop %v1886
    %v1888 = vsub.f32 1.0, %v1881
    %v1889 = vmul.f32 %v1888, %v1887
    %v1890 = vrot.slane %v1717, 6
    %v1892 = vmul.f32 %v1881, %v1890
    %v1893 = vadd.f32 %v1889, %v1892
    %1894 = vst [vmem:[#allocation15 - $0x6] sm:$0xc0] %v1893
    %vm1895 = vcmask 1041408
    %v1896 = vsel %vm1895, %v676, %v850
    %vm1897 = vcmask 1043456
    %v1898 = vsel %vm1897, %v1896, %v1026
    %vm1899 = vcmask 1045504
    %v1900 = vsel %vm1899, %v1898, %v1202
    %v1901 = vsel %vm1895, %v1367, %v1541
    %v1902 = vsel %vm1897, %v1901, %v1717
    %v1903 = vsel %vm1899, %v1902, %v1893
    %s1904 = scalar_lea.vmem [#allocation7], 384
    %v1905 = vld [vmem:[%s1904] sm:$0xff]
    %v1906 = vld [vmem:[%s1904 + $0x8] sm:$0xff]
    %v1907 = vld [vmem:[%s1904 + $0x10] sm:$0xff]
    %v1908 = vld [vmem:[%s1904 + $0x18] sm:$0xff]
    %v1909 = vld [vmem:[%s1904 + $0x20] sm:$0xff]
    %v1910 = vld [vmem:[%s1904 + $0x28] sm:$0xff]
    %v1911 = vld [vmem:[%s1904 + $0x30] sm:$0xff]
    %v1912 = vld [vmem:[%s1904 + $0x38] sm:$0xff]
    %v1913 = vld [vmem:[%s1904 + $0x40] sm:$0xff]
    %v1914 = vld [vmem:[%s1904 + $0x48] sm:$0xff]
    %v1915 = vld [vmem:[%s1904 + $0x50] sm:$0xff]
    %v1916 = vld [vmem:[%s1904 + $0x58] sm:$0xff]
    %v1917 = vld [vmem:[%s1904 + $0x60] sm:$0xff]
    %v1918 = vld [vmem:[%s1904 + $0x68] sm:$0xff]
    %v1919 = vld [vmem:[%s1904 + $0x70] sm:$0xff]
    %v1920 = vld [vmem:[%s1904 + $0x78] sm:$0xff]
    %v1921 = vld [vmem:[%s1904 + $0x80] sm:$0xff]
    %v1922 = vld [vmem:[%s1904 + $0x88] sm:$0xff]
    %v1923 = vld [vmem:[%s1904 + $0x90] sm:$0xff]
    %v1924 = vld [vmem:[%s1904 + $0x98] sm:$0xff]
    %v1925 = vld [vmem:[%s1904 + $0xa0] sm:$0xff]
    %v1926 = vld [vmem:[%s1904 + $0xa8] sm:$0xff]
    %v1927 = vld [vmem:[%s1904 + $0xb0] sm:$0xff]
    %v1928 = vld [vmem:[%s1904 + $0xb8] sm:$0xff]
    %v1929 = vld [vmem:[%s1904 + $0xc0] sm:$0xff]
    %v1930 = vld [vmem:[%s1904 + $0xc8] sm:$0xff]
    %v1931 = vld [vmem:[%s1904 + $0xd0] sm:$0xff]
    %v1932 = vld [vmem:[%s1904 + $0xd8] sm:$0xff]
    %v1933 = vld [vmem:[%s1904 + $0xe0] sm:$0xff]
    %v1934 = vld [vmem:[%s1904 + $0xe8] sm:$0xff]
    %v1935 = vld [vmem:[%s1904 + $0xf0] sm:$0xff]
    %v1936 = vld [vmem:[%s1904 + $0xf8] sm:$0xff]
    %v1937 = vld [vmem:[%s1904 + $0x100] sm:$0xff]
    %v1938 = vld [vmem:[%s1904 + $0x108] sm:$0xff]
    %v1939 = vld [vmem:[%s1904 + $0x110] sm:$0xff]
    %v1940 = vld [vmem:[%s1904 + $0x118] sm:$0xff]
    %v1941 = vld [vmem:[%s1904 + $0x120] sm:$0xff]
    %v1942 = vld [vmem:[%s1904 + $0x128] sm:$0xff]
    %v1943 = vld [vmem:[%s1904 + $0x130] sm:$0xff]
    %v1944 = vld [vmem:[%s1904 + $0x138] sm:$0xff]
    %v1945 = vld [vmem:[%s1904 + $0x140] sm:$0xff]
    %v1946 = vld [vmem:[%s1904 + $0x148] sm:$0xff]
    %v1947 = vld [vmem:[%s1904 + $0x150] sm:$0xff]
    %v1948 = vld [vmem:[%s1904 + $0x158] sm:$0xff]
    %v1949 = vld [vmem:[%s1904 + $0x160] sm:$0xff]
    %v1950 = vld [vmem:[%s1904 + $0x168] sm:$0xff]
    %v1951 = vld [vmem:[%s1904 + $0x170] sm:$0xff]
    %v1952 = vld [vmem:[%s1904 + $0x178] sm:$0xff]
    %s1953 = scalar_lea.vmem [#allocation8], 384
    %v1954 = vld [vmem:[%s1953] sm:$0xff]
    %v1955 = vld [vmem:[%s1953 + $0x8] sm:$0xff]
    %v1956 = vld [vmem:[%s1953 + $0x10] sm:$0xff]
    %v1957 = vld [vmem:[%s1953 + $0x18] sm:$0xff]
    %v1958 = vld [vmem:[%s1953 + $0x20] sm:$0xff]
    %v1959 = vld [vmem:[%s1953 + $0x28] sm:$0xff]
    %v1960 = vld [vmem:[%s1953 + $0x30] sm:$0xff]
    %v1961 = vld [vmem:[%s1953 + $0x38] sm:$0xff]
    %v1962 = vld [vmem:[%s1953 + $0x40] sm:$0xff]
    %v1963 = vld [vmem:[%s1953 + $0x48] sm:$0xff]
    %v1964 = vld [vmem:[%s1953 + $0x50] sm:$0xff]
    %v1965 = vld [vmem:[%s1953 + $0x58] sm:$0xff]
    %v1966 = vld [vmem:[%s1953 + $0x60] sm:$0xff]
    %v1967 = vld [vmem:[%s1953 + $0x68] sm:$0xff]
    %v1968 = vld [vmem:[%s1953 + $0x70] sm:$0xff]
    %v1969 = vld [vmem:[%s1953 + $0x78] sm:$0xff]
    %v1970 = vld [vmem:[%s1953 + $0x80] sm:$0xff]
    %v1971 = vld [vmem:[%s1953 + $0x88] sm:$0xff]
    %v1972 = vld [vmem:[%s1953 + $0x90] sm:$0xff]
    %v1973 = vld [vmem:[%s1953 + $0x98] sm:$0xff]
    %v1974 = vld [vmem:[%s1953 + $0xa0] sm:$0xff]
    %v1975 = vld [vmem:[%s1953 + $0xa8] sm:$0xff]
    %v1976 = vld [vmem:[%s1953 + $0xb0] sm:$0xff]
    %v1977 = vld [vmem:[%s1953 + $0xb8] sm:$0xff]
    %v1978 = vld [vmem:[%s1953 + $0xc0] sm:$0xff]
    %v1979 = vld [vmem:[%s1953 + $0xc8] sm:$0xff]
    %v1980 = vld [vmem:[%s1953 + $0xd0] sm:$0xff]
    %v1981 = vld [vmem:[%s1953 + $0xd8] sm:$0xff]
    %v1982 = vld [vmem:[%s1953 + $0xe0] sm:$0xff]
    %v1983 = vld [vmem:[%s1953 + $0xe8] sm:$0xff]
    %v1984 = vld [vmem:[%s1953 + $0xf0] sm:$0xff]
    %v1985 = vld [vmem:[%s1953 + $0xf8] sm:$0xff]
    %v1986 = vld [vmem:[%s1953 + $0x100] sm:$0xff]
    %v1987 = vld [vmem:[%s1953 + $0x108] sm:$0xff]
    %v1988 = vld [vmem:[%s1953 + $0x110] sm:$0xff]
    %v1989 = vld [vmem:[%s1953 + $0x118] sm:$0xff]
    %v1990 = vld [vmem:[%s1953 + $0x120] sm:$0xff]
    %v1991 = vld [vmem:[%s1953 + $0x128] sm:$0xff]
    %v1992 = vld [vmem:[%s1953 + $0x130] sm:$0xff]
    %v1993 = vld [vmem:[%s1953 + $0x138] sm:$0xff]
    %v1994 = vld [vmem:[%s1953 + $0x140] sm:$0xff]
    %v1995 = vld [vmem:[%s1953 + $0x148] sm:$0xff]
    %v1996 = vld [vmem:[%s1953 + $0x150] sm:$0xff]
    %v1997 = vld [vmem:[%s1953 + $0x158] sm:$0xff]
    %v1998 = vld [vmem:[%s1953 + $0x160] sm:$0xff]
    %v1999 = vld [vmem:[%s1953 + $0x168] sm:$0xff]
    %v2000 = vld [vmem:[%s1953 + $0x170] sm:$0xff]
    %v2001 = vld [vmem:[%s1953 + $0x178] sm:$0xff]
    %s2002 = scalar_lea.vmem %s5, 1
    %v2003 = vld [vmem:[%s2002] ss:$2 sm:$0x7]
    %s2004 = scalar_lea.vmem %s6, 1
    %v2005 = vld [vmem:[%s2004] ss:$2 sm:$0x7]
    %v2007 = vlaneseq
    %v2008 = vshrl.u32 %v2007, 7
    %v2009 = vsub.s32 0, %v2008
    %v2010 = vrot.slane %v2003, %v2009
    %v2011 = vlaneseq
    %v2012 = vshrl.u32 %v2011, 7
    %v2013 = vsub.s32 1, %v2012
    %v2014 = vrot.slane %v2003, %v2013
    %v2015 = vlaneseq
    %v2016 = vshrl.u32 %v2015, 7
    %v2017 = vsub.s32 2, %v2016
    %v2018 = vrot.slane %v2003, %v2017
    %2022 = vmatprep.subr.mxu0 %v1906
    %2023 = vmatpush1.msra.mxu0 %v1905
    %2024 = vmatprep.subr.mxu0 %v1909
    %2025 = vmatpush1.msra.mxu0 %v1908
    %2026 = vmatprep.subr.mxu0 %v1912
    %2027 = vmatpush1.msra.mxu0 %v1911
    %2028 = vmatprep.subr.mxu0 %v1915
    %2029 = vmatpush1.msra.mxu0 %v1914
    %2030 = vmatprep.subr.mxu0 %v1918
    %2031 = vmatpush1.msra.mxu0 %v1917
    %2032 = vmatprep.subr.mxu0 %v1921
    %2033 = vmatpush1.msra.mxu0 %v1920
    %2034 = vmatprep.subr.mxu0 %v1924
    %2035 = vmatpush1.msra.mxu0 %v1923
    %2036 = vmatprep.subr.mxu0 %v1927
    %2037 = vmatpush1.msra.mxu0 %v1926
    %2038 = vmatprep.subr.mxu0 %v1930
    %2039 = vmatpush1.msra.mxu0 %v1929
    %2040 = vmatprep.subr.mxu0 %v1933
    %2041 = vmatpush1.msra.mxu0 %v1932
    %2042 = vmatprep.subr.mxu0 %v1936
    %2043 = vmatpush1.msra.mxu0 %v1935
    %2044 = vmatprep.subr.mxu0 %v1939
    %2045 = vmatpush1.msra.mxu0 %v1938
    %2046 = vmatprep.subr.mxu0 %v1942
    %2047 = vmatpush1.msra.mxu0 %v1941
    %2048 = vmatprep.subr.mxu0 %v1945
    %2049 = vmatpush1.msra.mxu0 %v1944
    %2050 = vmatprep.subr.mxu0 %v1948
    %2051 = vmatpush1.msra.mxu0 %v1947
    %2052 = vmatprep.subr.mxu0 %v1951
    %2053 = vmatpush1.msra.mxu0 %v1950
    %2054 = vmatprep.subr.mxu0 0.0
    %2055 = vmatpush1.msra.mxu0 0.0
    %2056 = vmatprep.subr.mxu0 0.0
    %2057 = vmatpush1.msra.mxu0 0.0
    %2058 = vmatprep.subr.mxu0 0.0
    %2059 = vmatpush1.msra.mxu0 0.0
    %2060 = vmatprep.subr.mxu0 0.0
    %2061 = vmatpush1.msra.mxu0 0.0
    %2062 = vmatprep.subr.mxu0 0.0
    %2063 = vmatpush1.msra.mxu0 0.0
    %2064 = vmatprep.subr.mxu0 0.0
    %2065 = vmatpush1.msra.mxu0 0.0
    %2066 = vmatprep.subr.mxu0 0.0
    %2067 = vmatpush1.msra.mxu0 0.0
    %2068 = vmatprep.subr.mxu0 0.0
    %2069 = vmatpush1.msra.mxu0 0.0
    %2070 = vmatprep.subr.mxu0 0.0
    %2071 = vmatpush1.msra.mxu0 0.0
    %2072 = vmatprep.subr.mxu0 0.0
    %2073 = vmatpush1.msra.mxu0 0.0
    %2074 = vmatprep.subr.mxu0 0.0
    %2075 = vmatpush1.msra.mxu0 0.0
    %2076 = vmatprep.subr.mxu0 0.0
    %2077 = vmatpush1.msra.mxu0 0.0
    %2078 = vmatprep.subr.mxu0 0.0
    %2079 = vmatpush1.msra.mxu0 0.0
    %2080 = vmatprep.subr.mxu0 0.0
    %2081 = vmatpush1.msra.mxu0 0.0
    %2082 = vmatprep.subr.mxu0 0.0
    %2083 = vmatpush1.msra.mxu0 0.0
    %2084 = vmatprep.subr.mxu0 0.0
    %2085 = vmatpush1.msra.mxu0 0.0
    %2086 = vmatprep.mubr.f32.mxu0 0.0
    %2087 = vmatmul.mubr.f32.gmra.mrb[0].mxu0 %v1900
    %v2088 = vpop.f32.mrb[0].mxu0
    %v2089 = vadd.f32 %v2010, %v2088
    %v2090 = vpop.f32.mrb[0].mxu0
    %v2091 = vadd.f32 %v2014, %v2090
    %2092 = vmatprep.mubr.f32.mxu0 0.0
    %2093 = vmatmul.mubr.f32.gmra.mrb[0].mxu0 %v1903
    %v2094 = vpop.f32.mrb[0].mxu0
    %v2095 = vadd.f32 %v2010, %v2094
    %v2096 = vpop.f32.mrb[0].mxu0
    %v2097 = vadd.f32 %v2014, %v2096
    %2098 = vdwg.mxu0
    %2099 = vmatprep.subr.mxu0 0.0
    %2100 = vmatpush1.msra.mxu0 %v1907
    %2101 = vmatprep.subr.mxu0 0.0
    %2102 = vmatpush1.msra.mxu0 %v1910
    %2103 = vmatprep.subr.mxu0 0.0
    %2104 = vmatpush1.msra.mxu0 %v1913
    %2105 = vmatprep.subr.mxu0 0.0
    %2106 = vmatpush1.msra.mxu0 %v1916
    %2107 = vmatprep.subr.mxu0 0.0
    %2108 = vmatpush1.msra.mxu0 %v1919
    %2109 = vmatprep.subr.mxu0 0.0
    %2110 = vmatpush1.msra.mxu0 %v1922
    %2111 = vmatprep.subr.mxu0 0.0
    %2112 = vmatpush1.msra.mxu0 %v1925
    %2113 = vmatprep.subr.mxu0 0.0
    %2114 = vmatpush1.msra.mxu0 %v1928
    %2115 = vmatprep.subr.mxu0 0.0
    %2116 = vmatpush1.msra.mxu0 %v1931
    %2117 = vmatprep.subr.mxu0 0.0
    %2118 = vmatpush1.msra.mxu0 %v1934
    %2119 = vmatprep.subr.mxu0 0.0
    %2120 = vmatpush1.msra.mxu0 %v1937
    %2121 = vmatprep.subr.mxu0 0.0
    %2122 = vmatpush1.msra.mxu0 %v1940
    %2123 = vmatprep.subr.mxu0 0.0
    %2124 = vmatpush1.msra.mxu0 %v1943
    %2125 = vmatprep.subr.mxu0 0.0
    %2126 = vmatpush1.msra.mxu0 %v1946
    %2127 = vmatprep.subr.mxu0 0.0
    %2128 = vmatpush1.msra.mxu0 %v1949
    %2129 = vmatprep.subr.mxu0 0.0
    %2130 = vmatpush1.msra.mxu0 %v1952
    %2131 = vmatprep.subr.mxu0 0.0
    %2132 = vmatpush1.msra.mxu0 0.0
    %2133 = vmatprep.subr.mxu0 0.0
    %2134 = vmatpush1.msra.mxu0 0.0
    %2135 = vmatprep.subr.mxu0 0.0
    %2136 = vmatpush1.msra.mxu0 0.0
    %2137 = vmatprep.subr.mxu0 0.0
    %2138 = vmatpush1.msra.mxu0 0.0
    %2139 = vmatprep.subr.mxu0 0.0
    %2140 = vmatpush1.msra.mxu0 0.0
    %2141 = vmatprep.subr.mxu0 0.0
    %2142 = vmatpush1.msra.mxu0 0.0
    %2143 = vmatprep.subr.mxu0 0.0
    %2144 = vmatpush1.msra.mxu0 0.0
    %2145 = vmatprep.subr.mxu0 0.0
    %2146 = vmatpush1.msra.mxu0 0.0
    %2147 = vmatprep.subr.mxu0 0.0
    %2148 = vmatpush1.msra.mxu0 0.0
    %2149 = vmatprep.subr.mxu0 0.0
    %2150 = vmatpush1.msra.mxu0 0.0
    %2151 = vmatprep.subr.mxu0 0.0
    %2152 = vmatpush1.msra.mxu0 0.0
    %2153 = vmatprep.subr.mxu0 0.0
    %2154 = vmatpush1.msra.mxu0 0.0
    %2155 = vmatprep.subr.mxu0 0.0
    %2156 = vmatpush1.msra.mxu0 0.0
    %2157 = vmatprep.subr.mxu0 0.0
    %2158 = vmatpush1.msra.mxu0 0.0
    %2159 = vmatprep.subr.mxu0 0.0
    %2160 = vmatpush1.msra.mxu0 0.0
    %2161 = vmatprep.subr.mxu0 0.0
    %2162 = vmatpush1.msra.mxu0 0.0
    %2163 = vmatprep.mubr.f32.mxu0 0.0
    %2164 = vmatmul.mubr.f32.gmra.mrb[0].mxu0 %v1900
    %v2165 = vpop.f32.mrb[0].mxu0
    %v2166 = vadd.f32 %v2018, %v2165
    %v2167 = vpop.f32.mrb[0].mxu0
    %2168 = vmatprep.mubr.f32.mxu0 0.0
    %2169 = vmatmul.mubr.f32.gmra.mrb[0].mxu0 %v1903
    %v2170 = vpop.f32.mrb[0].mxu0
    %v2171 = vadd.f32 %v2018, %v2170
    %v2172 = vpop.f32.mrb[0].mxu0
    %2173 = vdwg.mxu0
    %s2174 = scalar_lea.vmem [#allocation5], 2
    %v2175 = vld [vmem:[%s2174] sm:$0x3]
    %v2177 = vlaneseq
    %v2178 = vshrl.u32 %v2177, 7
    %v2179 = vsub.s32 0, %v2178
    %v2180 = vrot.slane %v2005, %v2179
    %v2181 = vlaneseq
    %v2182 = vshrl.u32 %v2181, 7
    %v2183 = vsub.s32 1, %v2182
    %v2184 = vrot.slane %v2005, %v2183
    %v2185 = vlaneseq
    %v2186 = vshrl.u32 %v2185, 7
    %v2187 = vsub.s32 2, %v2186
    %v2188 = vrot.slane %v2005, %v2187
    %2192 = vmatprep.subr.mxu0 %v1955
    %2193 = vmatpush1.msra.mxu0 %v1954
    %2194 = vmatprep.subr.mxu0 %v1958
    %2195 = vmatpush1.msra.mxu0 %v1957
    %2196 = vmatprep.subr.mxu0 %v1961
    %2197 = vmatpush1.msra.mxu0 %v1960
    %2198 = vmatprep.subr.mxu0 %v1964
    %2199 = vmatpush1.msra.mxu0 %v1963
    %2200 = vmatprep.subr.mxu0 %v1967
    %2201 = vmatpush1.msra.mxu0 %v1966
    %2202 = vmatprep.subr.mxu0 %v1970
    %2203 = vmatpush1.msra.mxu0 %v1969
    %2204 = vmatprep.subr.mxu0 %v1973
    %2205 = vmatpush1.msra.mxu0 %v1972
    %2206 = vmatprep.subr.mxu0 %v1976
    %2207 = vmatpush1.msra.mxu0 %v1975
    %2208 = vmatprep.subr.mxu0 %v1979
    %2209 = vmatpush1.msra.mxu0 %v1978
    %2210 = vmatprep.subr.mxu0 %v1982
    %2211 = vmatpush1.msra.mxu0 %v1981
    %2212 = vmatprep.subr.mxu0 %v1985
    %2213 = vmatpush1.msra.mxu0 %v1984
    %2214 = vmatprep.subr.mxu0 %v1988
    %2215 = vmatpush1.msra.mxu0 %v1987
    %2216 = vmatprep.subr.mxu0 %v1991
    %2217 = vmatpush1.msra.mxu0 %v1990
    %2218 = vmatprep.subr.mxu0 %v1994
    %2219 = vmatpush1.msra.mxu0 %v1993
    %2220 = vmatprep.subr.mxu0 %v1997
    %2221 = vmatpush1.msra.mxu0 %v1996
    %2222 = vmatprep.subr.mxu0 %v2000
    %2223 = vmatpush1.msra.mxu0 %v1999
    %2224 = vmatprep.subr.mxu0 0.0
    %2225 = vmatpush1.msra.mxu0 0.0
    %2226 = vmatprep.subr.mxu0 0.0
    %2227 = vmatpush1.msra.mxu0 0.0
    %2228 = vmatprep.subr.mxu0 0.0
    %2229 = vmatpush1.msra.mxu0 0.0
    %2230 = vmatprep.subr.mxu0 0.0
    %2231 = vmatpush1.msra.mxu0 0.0
    %2232 = vmatprep.subr.mxu0 0.0
    %2233 = vmatpush1.msra.mxu0 0.0
    %2234 = vmatprep.subr.mxu0 0.0
    %2235 = vmatpush1.msra.mxu0 0.0
    %2236 = vmatprep.subr.mxu0 0.0
    %2237 = vmatpush1.msra.mxu0 0.0
    %2238 = vmatprep.subr.mxu0 0.0
    %2239 = vmatpush1.msra.mxu0 0.0
    %2240 = vmatprep.subr.mxu0 0.0
    %2241 = vmatpush1.msra.mxu0 0.0
    %2242 = vmatprep.subr.mxu0 0.0
    %2243 = vmatpush1.msra.mxu0 0.0
    %2244 = vmatprep.subr.mxu0 0.0
    %2245 = vmatpush1.msra.mxu0 0.0
    %2246 = vmatprep.subr.mxu0 0.0
    %2247 = vmatpush1.msra.mxu0 0.0
    %2248 = vmatprep.subr.mxu0 0.0
    %2249 = vmatpush1.msra.mxu0 0.0
    %2250 = vmatprep.subr.mxu0 0.0
    %2251 = vmatpush1.msra.mxu0 0.0
    %2252 = vmatprep.subr.mxu0 0.0
    %2253 = vmatpush1.msra.mxu0 0.0
    %2254 = vmatprep.subr.mxu0 0.0
    %2255 = vmatpush1.msra.mxu0 0.0
    %2256 = vmatprep.mubr.f32.mxu0 0.0
    %2257 = vmatmul.mubr.f32.gmra.mrb[0].mxu0 %v2175
    %v2258 = vpop.f32.mrb[0].mxu0
    %v2259 = vadd.f32 %v2180, %v2258
    %v2260 = vpop.f32.mrb[0].mxu0
    %v2261 = vadd.f32 %v2184, %v2260
    %2262 = vdwg.mxu0
    %2263 = vmatprep.subr.mxu0 0.0
    %2264 = vmatpush1.msra.mxu0 %v1956
    %2265 = vmatprep.subr.mxu0 0.0
    %2266 = vmatpush1.msra.mxu0 %v1959
    %2267 = vmatprep.subr.mxu0 0.0
    %2268 = vmatpush1.msra.mxu0 %v1962
    %2269 = vmatprep.subr.mxu0 0.0
    %2270 = vmatpush1.msra.mxu0 %v1965
    %2271 = vmatprep.subr.mxu0 0.0
    %2272 = vmatpush1.msra.mxu0 %v1968
    %2273 = vmatprep.subr.mxu0 0.0
    %2274 = vmatpush1.msra.mxu0 %v1971
    %2275 = vmatprep.subr.mxu0 0.0
    %2276 = vmatpush1.msra.mxu0 %v1974
    %2277 = vmatprep.subr.mxu0 0.0
    %2278 = vmatpush1.msra.mxu0 %v1977
    %2279 = vmatprep.subr.mxu0 0.0
    %2280 = vmatpush1.msra.mxu0 %v1980
    %2281 = vmatprep.subr.mxu0 0.0
    %2282 = vmatpush1.msra.mxu0 %v1983
    %2283 = vmatprep.subr.mxu0 0.0
    %2284 = vmatpush1.msra.mxu0 %v1986
    %2285 = vmatprep.subr.mxu0 0.0
    %2286 = vmatpush1.msra.mxu0 %v1989
    %2287 = vmatprep.subr.mxu0 0.0
    %2288 = vmatpush1.msra.mxu0 %v1992
    %2289 = vmatprep.subr.mxu0 0.0
    %2290 = vmatpush1.msra.mxu0 %v1995
    %2291 = vmatprep.subr.mxu0 0.0
    %2292 = vmatpush1.msra.mxu0 %v1998
    %2293 = vmatprep.subr.mxu0 0.0
    %2294 = vmatpush1.msra.mxu0 %v2001
    %2295 = vmatprep.subr.mxu0 0.0
    %2296 = vmatpush1.msra.mxu0 0.0
    %2297 = vmatprep.subr.mxu0 0.0
    %2298 = vmatpush1.msra.mxu0 0.0
    %2299 = vmatprep.subr.mxu0 0.0
    %2300 = vmatpush1.msra.mxu0 0.0
    %2301 = vmatprep.subr.mxu0 0.0
    %2302 = vmatpush1.msra.mxu0 0.0
    %2303 = vmatprep.subr.mxu0 0.0
    %2304 = vmatpush1.msra.mxu0 0.0
    %2305 = vmatprep.subr.mxu0 0.0
    %2306 = vmatpush1.msra.mxu0 0.0
    %2307 = vmatprep.subr.mxu0 0.0
    %2308 = vmatpush1.msra.mxu0 0.0
    %2309 = vmatprep.subr.mxu0 0.0
    %2310 = vmatpush1.msra.mxu0 0.0
    %2311 = vmatprep.subr.mxu0 0.0
    %2312 = vmatpush1.msra.mxu0 0.0
    %2313 = vmatprep.subr.mxu0 0.0
    %2314 = vmatpush1.msra.mxu0 0.0
    %2315 = vmatprep.subr.mxu0 0.0
    %2316 = vmatpush1.msra.mxu0 0.0
    %2317 = vmatprep.subr.mxu0 0.0
    %2318 = vmatpush1.msra.mxu0 0.0
    %2319 = vmatprep.subr.mxu0 0.0
    %2320 = vmatpush1.msra.mxu0 0.0
    %2321 = vmatprep.subr.mxu0 0.0
    %2322 = vmatpush1.msra.mxu0 0.0
    %2323 = vmatprep.subr.mxu0 0.0
    %2324 = vmatpush1.msra.mxu0 0.0
    %2325 = vmatprep.subr.mxu0 0.0
    %2326 = vmatpush1.msra.mxu0 0.0
    %2327 = vmatprep.mubr.f32.mxu0 0.0
    %2328 = vmatmul.mubr.f32.gmra.mrb[0].mxu0 %v2175
    %v2329 = vpop.f32.mrb[0].mxu0
    %v2330 = vadd.f32 %v2188, %v2329
    %v2331 = vpop.f32.mrb[0].mxu0
    %2332 = vdwg.mxu0
    %v2333 = vadd.f32 %v2089, %v2259
    %v2334 = vadd.f32 %v2091, %v2261
    %v2335 = vxor.u32 %v2333, 2147483648
    %v2336 = vxor.u32 %v2334, 2147483648
    %v2337 = vmul.f32 %v2335, 1.442695
    %v2338 = vpow.pop %v2337
    %v2339 = vmul.f32 %v2336, 1.442695
    %v2340 = vpow.pop %v2339
    %v2341 = vadd.f32 %v2338, 1.0
    %v2342 = vadd.f32 %v2340, 1.0
    %v2343 = vrcp.pop %v2341
    %v2344 = vmul.f32 1.0, %v2343
    %v2345 = vrcp.pop %v2342
    %v2346 = vmul.f32 1.0, %v2345
    %v2347 = vmul.f32 %v2344, %v2330
    %v2348 = vadd.f32 %v2166, %v2347
    %v2349 = vtanh.pop %v2348
    %v2350 = vsub.f32 1.0, %v2346
    %v2351 = vmul.f32 %v2350, %v2349
    %v2352 = vmul.f32 %v2346, %v2175
    %v2353 = vadd.f32 %v2351, %v2352
    %2354 = vmatprep.subr.mxu0 %v1955
    %2355 = vmatpush1.msra.mxu0 %v1954
    %2356 = vmatprep.subr.mxu0 %v1958
    %2357 = vmatpush1.msra.mxu0 %v1957
    %2358 = vmatprep.subr.mxu0 %v1961
    %2359 = vmatpush1.msra.mxu0 %v1960
    %2360 = vmatprep.subr.mxu0 %v1964
    %2361 = vmatpush1.msra.mxu0 %v1963
    %2362 = vmatprep.subr.mxu0 %v1967
    %2363 = vmatpush1.msra.mxu0 %v1966
    %2364 = vmatprep.subr.mxu0 %v1970
    %2365 = vmatpush1.msra.mxu0 %v1969
    %2366 = vmatprep.subr.mxu0 %v1973
    %2367 = vmatpush1.msra.mxu0 %v1972
    %2368 = vmatprep.subr.mxu0 %v1976
    %2369 = vmatpush1.msra.mxu0 %v1975
    %2370 = vmatprep.subr.mxu0 %v1979
    %2371 = vmatpush1.msra.mxu0 %v1978
    %2372 = vmatprep.subr.mxu0 %v1982
    %2373 = vmatpush1.msra.mxu0 %v1981
    %2374 = vmatprep.subr.mxu0 %v1985
    %2375 = vmatpush1.msra.mxu0 %v1984
    %2376 = vmatprep.subr.mxu0 %v1988
    %2377 = vmatpush1.msra.mxu0 %v1987
    %2378 = vmatprep.subr.mxu0 %v1991
    %2379 = vmatpush1.msra.mxu0 %v1990
    %2380 = vmatprep.subr.mxu0 %v1994
    %2381 = vmatpush1.msra.mxu0 %v1993
    %2382 = vmatprep.subr.mxu0 %v1997
    %2383 = vmatpush1.msra.mxu0 %v1996
    %2384 = vmatprep.subr.mxu0 %v2000
    %2385 = vmatpush1.msra.mxu0 %v1999
    %2386 = vmatprep.subr.mxu0 0.0
    %2387 = vmatpush1.msra.mxu0 0.0
    %2388 = vmatprep.subr.mxu0 0.0
    %2389 = vmatpush1.msra.mxu0 0.0
    %2390 = vmatprep.subr.mxu0 0.0
    %2391 = vmatpush1.msra.mxu0 0.0
    %2392 = vmatprep.subr.mxu0 0.0
    %2393 = vmatpush1.msra.mxu0 0.0
    %2394 = vmatprep.subr.mxu0 0.0
    %2395 = vmatpush1.msra.mxu0 0.0
    %2396 = vmatprep.subr.mxu0 0.0
    %2397 = vmatpush1.msra.mxu0 0.0
    %2398 = vmatprep.subr.mxu0 0.0
    %2399 = vmatpush1.msra.mxu0 0.0
    %2400 = vmatprep.subr.mxu0 0.0
    %2401 = vmatpush1.msra.mxu0 0.0
    %2402 = vmatprep.subr.mxu0 0.0
    %2403 = vmatpush1.msra.mxu0 0.0
    %2404 = vmatprep.subr.mxu0 0.0
    %2405 = vmatpush1.msra.mxu0 0.0
    %2406 = vmatprep.subr.mxu0 0.0
    %2407 = vmatpush1.msra.mxu0 0.0
    %2408 = vmatprep.subr.mxu0 0.0
    %2409 = vmatpush1.msra.mxu0 0.0
    %2410 = vmatprep.subr.mxu0 0.0
    %2411 = vmatpush1.msra.mxu0 0.0
    %2412 = vmatprep.subr.mxu0 0.0
    %2413 = vmatpush1.msra.mxu0 0.0
    %2414 = vmatprep.subr.mxu0 0.0
    %2415 = vmatpush1.msra.mxu0 0.0
    %2416 = vmatprep.subr.mxu0 0.0
    %2417 = vmatpush1.msra.mxu0 0.0
    %2418 = vmatprep.mubr.f32.mxu0 0.0
    %2419 = vmatmul.mubr.f32.gmra.mrb[0].mxu0 %v2353
    %v2420 = vpop.f32.mrb[0].mxu0
    %v2421 = vadd.f32 %v2180, %v2420
    %v2422 = vpop.f32.mrb[0].mxu0
    %v2423 = vadd.f32 %v2184, %v2422
    %2424 = vdwg.mxu0
    %2425 = vmatprep.subr.mxu0 0.0
    %2426 = vmatpush1.msra.mxu0 %v1956
    %2427 = vmatprep.subr.mxu0 0.0
    %2428 = vmatpush1.msra.mxu0 %v1959
    %2429 = vmatprep.subr.mxu0 0.0
    %2430 = vmatpush1.msra.mxu0 %v1962
    %2431 = vmatprep.subr.mxu0 0.0
    %2432 = vmatpush1.msra.mxu0 %v1965
    %2433 = vmatprep.subr.mxu0 0.0
    %2434 = vmatpush1.msra.mxu0 %v1968
    %2435 = vmatprep.subr.mxu0 0.0
    %2436 = vmatpush1.msra.mxu0 %v1971
    %2437 = vmatprep.subr.mxu0 0.0
    %2438 = vmatpush1.msra.mxu0 %v1974
    %2439 = vmatprep.subr.mxu0 0.0
    %2440 = vmatpush1.msra.mxu0 %v1977
    %2441 = vmatprep.subr.mxu0 0.0
    %2442 = vmatpush1.msra.mxu0 %v1980
    %2443 = vmatprep.subr.mxu0 0.0
    %2444 = vmatpush1.msra.mxu0 %v1983
    %2445 = vmatprep.subr.mxu0 0.0
    %2446 = vmatpush1.msra.mxu0 %v1986
    %2447 = vmatprep.subr.mxu0 0.0
    %2448 = vmatpush1.msra.mxu0 %v1989
    %2449 = vmatprep.subr.mxu0 0.0
    %2450 = vmatpush1.msra.mxu0 %v1992
    %2451 = vmatprep.subr.mxu0 0.0
    %2452 = vmatpush1.msra.mxu0 %v1995
    %2453 = vmatprep.subr.mxu0 0.0
    %2454 = vmatpush1.msra.mxu0 %v1998
    %2455 = vmatprep.subr.mxu0 0.0
    %2456 = vmatpush1.msra.mxu0 %v2001
    %2457 = vmatprep.subr.mxu0 0.0
    %2458 = vmatpush1.msra.mxu0 0.0
    %2459 = vmatprep.subr.mxu0 0.0
    %2460 = vmatpush1.msra.mxu0 0.0
    %2461 = vmatprep.subr.mxu0 0.0
    %2462 = vmatpush1.msra.mxu0 0.0
    %2463 = vmatprep.subr.mxu0 0.0
    %2464 = vmatpush1.msra.mxu0 0.0
    %2465 = vmatprep.subr.mxu0 0.0
    %2466 = vmatpush1.msra.mxu0 0.0
    %2467 = vmatprep.subr.mxu0 0.0
    %2468 = vmatpush1.msra.mxu0 0.0
    %2469 = vmatprep.subr.mxu0 0.0
    %2470 = vmatpush1.msra.mxu0 0.0
    %2471 = vmatprep.subr.mxu0 0.0
    %2472 = vmatpush1.msra.mxu0 0.0
    %2473 = vmatprep.subr.mxu0 0.0
    %2474 = vmatpush1.msra.mxu0 0.0
    %2475 = vmatprep.subr.mxu0 0.0
    %2476 = vmatpush1.msra.mxu0 0.0
    %2477 = vmatprep.subr.mxu0 0.0
    %2478 = vmatpush1.msra.mxu0 0.0
    %2479 = vmatprep.subr.mxu0 0.0
    %2480 = vmatpush1.msra.mxu0 0.0
    %2481 = vmatprep.subr.mxu0 0.0
    %2482 = vmatpush1.msra.mxu0 0.0
    %2483 = vmatprep.subr.mxu0 0.0
    %2484 = vmatpush1.msra.mxu0 0.0
    %2485 = vmatprep.subr.mxu0 0.0
    %2486 = vmatpush1.msra.mxu0 0.0
    %2487 = vmatprep.subr.mxu0 0.0
    %2488 = vmatpush1.msra.mxu0 0.0
    %2489 = vmatprep.mubr.f32.mxu0 0.0
    %2490 = vmatmul.mubr.f32.gmra.mrb[0].mxu0 %v2353
    %v2491 = vpop.f32.mrb[0].mxu0
    %v2492 = vadd.f32 %v2188, %v2491
    %v2493 = vpop.f32.mrb[0].mxu0
    %2494 = vdwg.mxu0
    %v2497 = vrot.slane %v2421, 6
    %v2498 = vrot.slane %v2423, 6
    %v2501 = vadd.f32 %v2089, %v2497
    %v2502 = vadd.f32 %v2091, %v2498
    %v2503 = vxor.u32 %v2501, 2147483648
    %v2504 = vxor.u32 %v2502, 2147483648
    %v2505 = vmul.f32 %v2503, 1.442695
    %v2506 = vpow.pop %v2505
    %v2507 = vmul.f32 %v2504, 1.442695
    %v2508 = vpow.pop %v2507
    %v2509 = vadd.f32 %v2506, 1.0
    %v2510 = vadd.f32 %v2508, 1.0
    %v2511 = vrcp.pop %v2509
    %v2512 = vmul.f32 1.0, %v2511
    %v2513 = vrcp.pop %v2510
    %v2514 = vmul.f32 1.0, %v2513
    %v2516 = vrot.slane %v2492, 6
    %v2518 = vmul.f32 %v2512, %v2516
    %v2519 = vadd.f32 %v2166, %v2518
    %v2520 = vtanh.pop %v2519
    %v2521 = vsub.f32 1.0, %v2514
    %v2522 = vmul.f32 %v2521, %v2520
    %v2524 = vrot.slane %v2353, 6
    %v2526 = vmul.f32 %v2514, %v2524
    %v2527 = vadd.f32 %v2522, %v2526
    %v2529 = vrot.slane %v2527, 2
    %2531 = vmatprep.subr.mxu0 %v1955
    %2532 = vmatpush1.msra.mxu0 %v1954
    %2533 = vmatprep.subr.mxu0 %v1958
    %2534 = vmatpush1.msra.mxu0 %v1957
    %2535 = vmatprep.subr.mxu0 %v1961
    %2536 = vmatpush1.msra.mxu0 %v1960
    %2537 = vmatprep.subr.mxu0 %v1964
    %2538 = vmatpush1.msra.mxu0 %v1963
    %2539 = vmatprep.subr.mxu0 %v1967
    %2540 = vmatpush1.msra.mxu0 %v1966
    %2541 = vmatprep.subr.mxu0 %v1970
    %2542 = vmatpush1.msra.mxu0 %v1969
    %2543 = vmatprep.subr.mxu0 %v1973
    %2544 = vmatpush1.msra.mxu0 %v1972
    %2545 = vmatprep.subr.mxu0 %v1976
    %2546 = vmatpush1.msra.mxu0 %v1975
    %2547 = vmatprep.subr.mxu0 %v1979
    %2548 = vmatpush1.msra.mxu0 %v1978
    %2549 = vmatprep.subr.mxu0 %v1982
    %2550 = vmatpush1.msra.mxu0 %v1981
    %2551 = vmatprep.subr.mxu0 %v1985
    %2552 = vmatpush1.msra.mxu0 %v1984
    %2553 = vmatprep.subr.mxu0 %v1988
    %2554 = vmatpush1.msra.mxu0 %v1987
    %2555 = vmatprep.subr.mxu0 %v1991
    %2556 = vmatpush1.msra.mxu0 %v1990
    %2557 = vmatprep.subr.mxu0 %v1994
    %2558 = vmatpush1.msra.mxu0 %v1993
    %2559 = vmatprep.subr.mxu0 %v1997
    %2560 = vmatpush1.msra.mxu0 %v1996
    %2561 = vmatprep.subr.mxu0 %v2000
    %2562 = vmatpush1.msra.mxu0 %v1999
    %2563 = vmatprep.subr.mxu0 0.0
    %2564 = vmatpush1.msra.mxu0 0.0
    %2565 = vmatprep.subr.mxu0 0.0
    %2566 = vmatpush1.msra.mxu0 0.0
    %2567 = vmatprep.subr.mxu0 0.0
    %2568 = vmatpush1.msra.mxu0 0.0
    %2569 = vmatprep.subr.mxu0 0.0
    %2570 = vmatpush1.msra.mxu0 0.0
    %2571 = vmatprep.subr.mxu0 0.0
    %2572 = vmatpush1.msra.mxu0 0.0
    %2573 = vmatprep.subr.mxu0 0.0
    %2574 = vmatpush1.msra.mxu0 0.0
    %2575 = vmatprep.subr.mxu0 0.0
    %2576 = vmatpush1.msra.mxu0 0.0
    %2577 = vmatprep.subr.mxu0 0.0
    %2578 = vmatpush1.msra.mxu0 0.0
    %2579 = vmatprep.subr.mxu0 0.0
    %2580 = vmatpush1.msra.mxu0 0.0
    %2581 = vmatprep.subr.mxu0 0.0
    %2582 = vmatpush1.msra.mxu0 0.0
    %2583 = vmatprep.subr.mxu0 0.0
    %2584 = vmatpush1.msra.mxu0 0.0
    %2585 = vmatprep.subr.mxu0 0.0
    %2586 = vmatpush1.msra.mxu0 0.0
    %2587 = vmatprep.subr.mxu0 0.0
    %2588 = vmatpush1.msra.mxu0 0.0
    %2589 = vmatprep.subr.mxu0 0.0
    %2590 = vmatpush1.msra.mxu0 0.0
    %2591 = vmatprep.subr.mxu0 0.0
    %2592 = vmatpush1.msra.mxu0 0.0
    %2593 = vmatprep.subr.mxu0 0.0
    %2594 = vmatpush1.msra.mxu0 0.0
    %2595 = vmatprep.mubr.f32.mxu0 0.0
    %2596 = vmatmul.mubr.f32.gmra.mrb[0].mxu0 %v2529
    %v2597 = vpop.f32.mrb[0].mxu0
    %v2598 = vadd.f32 %v2180, %v2597
    %v2599 = vpop.f32.mrb[0].mxu0
    %v2600 = vadd.f32 %v2184, %v2599
    %2601 = vdwg.mxu0
    %2602 = vmatprep.subr.mxu0 0.0
    %2603 = vmatpush1.msra.mxu0 %v1956
    %2604 = vmatprep.subr.mxu0 0.0
    %2605 = vmatpush1.msra.mxu0 %v1959
    %2606 = vmatprep.subr.mxu0 0.0
    %2607 = vmatpush1.msra.mxu0 %v1962
    %2608 = vmatprep.subr.mxu0 0.0
    %2609 = vmatpush1.msra.mxu0 %v1965
    %2610 = vmatprep.subr.mxu0 0.0
    %2611 = vmatpush1.msra.mxu0 %v1968
    %2612 = vmatprep.subr.mxu0 0.0
    %2613 = vmatpush1.msra.mxu0 %v1971
    %2614 = vmatprep.subr.mxu0 0.0
    %2615 = vmatpush1.msra.mxu0 %v1974
    %2616 = vmatprep.subr.mxu0 0.0
    %2617 = vmatpush1.msra.mxu0 %v1977
    %2618 = vmatprep.subr.mxu0 0.0
    %2619 = vmatpush1.msra.mxu0 %v1980
    %2620 = vmatprep.subr.mxu0 0.0
    %2621 = vmatpush1.msra.mxu0 %v1983
    %2622 = vmatprep.subr.mxu0 0.0
    %2623 = vmatpush1.msra.mxu0 %v1986
    %2624 = vmatprep.subr.mxu0 0.0
    %2625 = vmatpush1.msra.mxu0 %v1989
    %2626 = vmatprep.subr.mxu0 0.0
    %2627 = vmatpush1.msra.mxu0 %v1992
    %2628 = vmatprep.subr.mxu0 0.0
    %2629 = vmatpush1.msra.mxu0 %v1995
    %2630 = vmatprep.subr.mxu0 0.0
    %2631 = vmatpush1.msra.mxu0 %v1998
    %2632 = vmatprep.subr.mxu0 0.0
    %2633 = vmatpush1.msra.mxu0 %v2001
    %2634 = vmatprep.subr.mxu0 0.0
    %2635 = vmatpush1.msra.mxu0 0.0
    %2636 = vmatprep.subr.mxu0 0.0
    %2637 = vmatpush1.msra.mxu0 0.0
    %2638 = vmatprep.subr.mxu0 0.0
    %2639 = vmatpush1.msra.mxu0 0.0
    %2640 = vmatprep.subr.mxu0 0.0
    %2641 = vmatpush1.msra.mxu0 0.0
    %2642 = vmatprep.subr.mxu0 0.0
    %2643 = vmatpush1.msra.mxu0 0.0
    %2644 = vmatprep.subr.mxu0 0.0
    %2645 = vmatpush1.msra.mxu0 0.0
    %2646 = vmatprep.subr.mxu0 0.0
    %2647 = vmatpush1.msra.mxu0 0.0
    %2648 = vmatprep.subr.mxu0 0.0
    %2649 = vmatpush1.msra.mxu0 0.0
    %2650 = vmatprep.subr.mxu0 0.0
    %2651 = vmatpush1.msra.mxu0 0.0
    %2652 = vmatprep.subr.mxu0 0.0
    %2653 = vmatpush1.msra.mxu0 0.0
    %2654 = vmatprep.subr.mxu0 0.0
    %2655 = vmatpush1.msra.mxu0 0.0
    %2656 = vmatprep.subr.mxu0 0.0
    %2657 = vmatpush1.msra.mxu0 0.0
    %2658 = vmatprep.subr.mxu0 0.0
    %2659 = vmatpush1.msra.mxu0 0.0
    %2660 = vmatprep.subr.mxu0 0.0
    %2661 = vmatpush1.msra.mxu0 0.0
    %2662 = vmatprep.subr.mxu0 0.0
    %2663 = vmatpush1.msra.mxu0 0.0
    %2664 = vmatprep.subr.mxu0 0.0
    %2665 = vmatpush1.msra.mxu0 0.0
    %2666 = vmatprep.mubr.f32.mxu0 0.0
    %2667 = vmatmul.mubr.f32.gmra.mrb[0].mxu0 %v2529
    %v2668 = vpop.f32.mrb[0].mxu0
    %v2669 = vadd.f32 %v2188, %v2668
    %v2670 = vpop.f32.mrb[0].mxu0
    %2671 = vdwg.mxu0
    %v2674 = vrot.slane %v2598, 4
    %v2675 = vrot.slane %v2600, 4
    %v2678 = vadd.f32 %v2089, %v2674
    %v2679 = vadd.f32 %v2091, %v2675
    %v2680 = vxor.u32 %v2678, 2147483648
    %v2681 = vxor.u32 %v2679, 2147483648
    %v2682 = vmul.f32 %v2680, 1.442695
    %v2683 = vpow.pop %v2682
    %v2684 = vmul.f32 %v2681, 1.442695
    %v2685 = vpow.pop %v2684
    %v2686 = vadd.f32 %v2683, 1.0
    %v2687 = vadd.f32 %v2685, 1.0
    %v2688 = vrcp.pop %v2686
    %v2689 = vmul.f32 1.0, %v2688
    %v2690 = vrcp.pop %v2687
    %v2691 = vmul.f32 1.0, %v2690
    %v2693 = vrot.slane %v2669, 4
    %v2695 = vmul.f32 %v2689, %v2693
    %v2696 = vadd.f32 %v2166, %v2695
    %v2697 = vtanh.pop %v2696
    %v2698 = vsub.f32 1.0, %v2691
    %v2699 = vmul.f32 %v2698, %v2697
    %v2700 = vrot.slane %v2527, 6
    %v2702 = vmul.f32 %v2691, %v2700
    %v2703 = vadd.f32 %v2699, %v2702
    %v2705 = vrot.slane %v2703, 4
    %2707 = vmatprep.subr.mxu0 %v1955
    %2708 = vmatpush1.msra.mxu0 %v1954
    %2709 = vmatprep.subr.mxu0 %v1958
    %2710 = vmatpush1.msra.mxu0 %v1957
    %2711 = vmatprep.subr.mxu0 %v1961
    %2712 = vmatpush1.msra.mxu0 %v1960
    %2713 = vmatprep.subr.mxu0 %v1964
    %2714 = vmatpush1.msra.mxu0 %v1963
    %2715 = vmatprep.subr.mxu0 %v1967
    %2716 = vmatpush1.msra.mxu0 %v1966
    %2717 = vmatprep.subr.mxu0 %v1970
    %2718 = vmatpush1.msra.mxu0 %v1969
    %2719 = vmatprep.subr.mxu0 %v1973
    %2720 = vmatpush1.msra.mxu0 %v1972
    %2721 = vmatprep.subr.mxu0 %v1976
    %2722 = vmatpush1.msra.mxu0 %v1975
    %2723 = vmatprep.subr.mxu0 %v1979
    %2724 = vmatpush1.msra.mxu0 %v1978
    %2725 = vmatprep.subr.mxu0 %v1982
    %2726 = vmatpush1.msra.mxu0 %v1981
    %2727 = vmatprep.subr.mxu0 %v1985
    %2728 = vmatpush1.msra.mxu0 %v1984
    %2729 = vmatprep.subr.mxu0 %v1988
    %2730 = vmatpush1.msra.mxu0 %v1987
    %2731 = vmatprep.subr.mxu0 %v1991
    %2732 = vmatpush1.msra.mxu0 %v1990
    %2733 = vmatprep.subr.mxu0 %v1994
    %2734 = vmatpush1.msra.mxu0 %v1993
    %2735 = vmatprep.subr.mxu0 %v1997
    %2736 = vmatpush1.msra.mxu0 %v1996
    %2737 = vmatprep.subr.mxu0 %v2000
    %2738 = vmatpush1.msra.mxu0 %v1999
    %2739 = vmatprep.subr.mxu0 0.0
    %2740 = vmatpush1.msra.mxu0 0.0
    %2741 = vmatprep.subr.mxu0 0.0
    %2742 = vmatpush1.msra.mxu0 0.0
    %2743 = vmatprep.subr.mxu0 0.0
    %2744 = vmatpush1.msra.mxu0 0.0
    %2745 = vmatprep.subr.mxu0 0.0
    %2746 = vmatpush1.msra.mxu0 0.0
    %2747 = vmatprep.subr.mxu0 0.0
    %2748 = vmatpush1.msra.mxu0 0.0
    %2749 = vmatprep.subr.mxu0 0.0
    %2750 = vmatpush1.msra.mxu0 0.0
    %2751 = vmatprep.subr.mxu0 0.0
    %2752 = vmatpush1.msra.mxu0 0.0
    %2753 = vmatprep.subr.mxu0 0.0
    %2754 = vmatpush1.msra.mxu0 0.0
    %2755 = vmatprep.subr.mxu0 0.0
    %2756 = vmatpush1.msra.mxu0 0.0
    %2757 = vmatprep.subr.mxu0 0.0
    %2758 = vmatpush1.msra.mxu0 0.0
    %2759 = vmatprep.subr.mxu0 0.0
    %2760 = vmatpush1.msra.mxu0 0.0
    %2761 = vmatprep.subr.mxu0 0.0
    %2762 = vmatpush1.msra.mxu0 0.0
    %2763 = vmatprep.subr.mxu0 0.0
    %2764 = vmatpush1.msra.mxu0 0.0
    %2765 = vmatprep.subr.mxu0 0.0
    %2766 = vmatpush1.msra.mxu0 0.0
    %2767 = vmatprep.subr.mxu0 0.0
    %2768 = vmatpush1.msra.mxu0 0.0
    %2769 = vmatprep.subr.mxu0 0.0
    %2770 = vmatpush1.msra.mxu0 0.0
    %2771 = vmatprep.mubr.f32.mxu0 0.0
    %2772 = vmatmul.mubr.f32.gmra.mrb[0].mxu0 %v2705
    %v2773 = vpop.f32.mrb[0].mxu0
    %v2774 = vadd.f32 %v2180, %v2773
    %v2775 = vpop.f32.mrb[0].mxu0
    %v2776 = vadd.f32 %v2184, %v2775
    %2777 = vdwg.mxu0
    %2778 = vmatprep.subr.mxu0 0.0
    %2779 = vmatpush1.msra.mxu0 %v1956
    %2780 = vmatprep.subr.mxu0 0.0
    %2781 = vmatpush1.msra.mxu0 %v1959
    %2782 = vmatprep.subr.mxu0 0.0
    %2783 = vmatpush1.msra.mxu0 %v1962
    %2784 = vmatprep.subr.mxu0 0.0
    %2785 = vmatpush1.msra.mxu0 %v1965
    %2786 = vmatprep.subr.mxu0 0.0
    %2787 = vmatpush1.msra.mxu0 %v1968
    %2788 = vmatprep.subr.mxu0 0.0
    %2789 = vmatpush1.msra.mxu0 %v1971
    %2790 = vmatprep.subr.mxu0 0.0
    %2791 = vmatpush1.msra.mxu0 %v1974
    %2792 = vmatprep.subr.mxu0 0.0
    %2793 = vmatpush1.msra.mxu0 %v1977
    %2794 = vmatprep.subr.mxu0 0.0
    %2795 = vmatpush1.msra.mxu0 %v1980
    %2796 = vmatprep.subr.mxu0 0.0
    %2797 = vmatpush1.msra.mxu0 %v1983
    %2798 = vmatprep.subr.mxu0 0.0
    %2799 = vmatpush1.msra.mxu0 %v1986
    %2800 = vmatprep.subr.mxu0 0.0
    %2801 = vmatpush1.msra.mxu0 %v1989
    %2802 = vmatprep.subr.mxu0 0.0
    %2803 = vmatpush1.msra.mxu0 %v1992
    %2804 = vmatprep.subr.mxu0 0.0
    %2805 = vmatpush1.msra.mxu0 %v1995
    %2806 = vmatprep.subr.mxu0 0.0
    %2807 = vmatpush1.msra.mxu0 %v1998
    %2808 = vmatprep.subr.mxu0 0.0
    %2809 = vmatpush1.msra.mxu0 %v2001
    %2810 = vmatprep.subr.mxu0 0.0
    %2811 = vmatpush1.msra.mxu0 0.0
    %2812 = vmatprep.subr.mxu0 0.0
    %2813 = vmatpush1.msra.mxu0 0.0
    %2814 = vmatprep.subr.mxu0 0.0
    %2815 = vmatpush1.msra.mxu0 0.0
    %2816 = vmatprep.subr.mxu0 0.0
    %2817 = vmatpush1.msra.mxu0 0.0
    %2818 = vmatprep.subr.mxu0 0.0
    %2819 = vmatpush1.msra.mxu0 0.0
    %2820 = vmatprep.subr.mxu0 0.0
    %2821 = vmatpush1.msra.mxu0 0.0
    %2822 = vmatprep.subr.mxu0 0.0
    %2823 = vmatpush1.msra.mxu0 0.0
    %2824 = vmatprep.subr.mxu0 0.0
    %2825 = vmatpush1.msra.mxu0 0.0
    %2826 = vmatprep.subr.mxu0 0.0
    %2827 = vmatpush1.msra.mxu0 0.0
    %2828 = vmatprep.subr.mxu0 0.0
    %2829 = vmatpush1.msra.mxu0 0.0
    %2830 = vmatprep.subr.mxu0 0.0
    %2831 = vmatpush1.msra.mxu0 0.0
    %2832 = vmatprep.subr.mxu0 0.0
    %2833 = vmatpush1.msra.mxu0 0.0
    %2834 = vmatprep.subr.mxu0 0.0
    %2835 = vmatpush1.msra.mxu0 0.0
    %2836 = vmatprep.subr.mxu0 0.0
    %2837 = vmatpush1.msra.mxu0 0.0
    %2838 = vmatprep.subr.mxu0 0.0
    %2839 = vmatpush1.msra.mxu0 0.0
    %2840 = vmatprep.subr.mxu0 0.0
    %2841 = vmatpush1.msra.mxu0 0.0
    %2842 = vmatprep.mubr.f32.mxu0 0.0
    %2843 = vmatmul.mubr.f32.gmra.mrb[0].mxu0 %v2705
    %v2844 = vpop.f32.mrb[0].mxu0
    %v2845 = vadd.f32 %v2188, %v2844
    %v2846 = vpop.f32.mrb[0].mxu0
    %2847 = vdwg.mxu0
    %v2850 = vrot.slane %v2774, 2
    %v2851 = vrot.slane %v2776, 2
    %v2854 = vadd.f32 %v2089, %v2850
    %v2855 = vadd.f32 %v2091, %v2851
    %v2856 = vxor.u32 %v2854, 2147483648
    %v2857 = vxor.u32 %v2855, 2147483648
    %v2858 = vmul.f32 %v2856, 1.442695
    %v2859 = vpow.pop %v2858
    %v2860 = vmul.f32 %v2857, 1.442695
    %v2861 = vpow.pop %v2860
    %v2862 = vadd.f32 %v2859, 1.0
    %v2863 = vadd.f32 %v2861, 1.0
    %v2864 = vrcp.pop %v2862
    %v2865 = vmul.f32 1.0, %v2864
    %v2866 = vrcp.pop %v2863
    %v2867 = vmul.f32 1.0, %v2866
    %v2869 = vrot.slane %v2845, 2
    %v2871 = vmul.f32 %v2865, %v2869
    %v2872 = vadd.f32 %v2166, %v2871
    %v2873 = vtanh.pop %v2872
    %v2874 = vsub.f32 1.0, %v2867
    %v2875 = vmul.f32 %v2874, %v2873
    %v2876 = vrot.slane %v2703, 6
    %v2878 = vmul.f32 %v2867, %v2876
    %v2879 = vadd.f32 %v2875, %v2878
    %v2881 = vrot.slane %v2879, 6
    %2883 = vmatprep.subr.mxu0 %v1955
    %2884 = vmatpush1.msra.mxu0 %v1954
    %2885 = vmatprep.subr.mxu0 %v1958
    %2886 = vmatpush1.msra.mxu0 %v1957
    %2887 = vmatprep.subr.mxu0 %v1961
    %2888 = vmatpush1.msra.mxu0 %v1960
    %2889 = vmatprep.subr.mxu0 %v1964
    %2890 = vmatpush1.msra.mxu0 %v1963
    %2891 = vmatprep.subr.mxu0 %v1967
    %2892 = vmatpush1.msra.mxu0 %v1966
    %2893 = vmatprep.subr.mxu0 %v1970
    %2894 = vmatpush1.msra.mxu0 %v1969
    %2895 = vmatprep.subr.mxu0 %v1973
    %2896 = vmatpush1.msra.mxu0 %v1972
    %2897 = vmatprep.subr.mxu0 %v1976
    %2898 = vmatpush1.msra.mxu0 %v1975
    %2899 = vmatprep.subr.mxu0 %v1979
    %2900 = vmatpush1.msra.mxu0 %v1978
    %2901 = vmatprep.subr.mxu0 %v1982
    %2902 = vmatpush1.msra.mxu0 %v1981
    %2903 = vmatprep.subr.mxu0 %v1985
    %2904 = vmatpush1.msra.mxu0 %v1984
    %2905 = vmatprep.subr.mxu0 %v1988
    %2906 = vmatpush1.msra.mxu0 %v1987
    %2907 = vmatprep.subr.mxu0 %v1991
    %2908 = vmatpush1.msra.mxu0 %v1990
    %2909 = vmatprep.subr.mxu0 %v1994
    %2910 = vmatpush1.msra.mxu0 %v1993
    %2911 = vmatprep.subr.mxu0 %v1997
    %2912 = vmatpush1.msra.mxu0 %v1996
    %2913 = vmatprep.subr.mxu0 %v2000
    %2914 = vmatpush1.msra.mxu0 %v1999
    %2915 = vmatprep.subr.mxu0 0.0
    %2916 = vmatpush1.msra.mxu0 0.0
    %2917 = vmatprep.subr.mxu0 0.0
    %2918 = vmatpush1.msra.mxu0 0.0
    %2919 = vmatprep.subr.mxu0 0.0
    %2920 = vmatpush1.msra.mxu0 0.0
    %2921 = vmatprep.subr.mxu0 0.0
    %2922 = vmatpush1.msra.mxu0 0.0
    %2923 = vmatprep.subr.mxu0 0.0
    %2924 = vmatpush1.msra.mxu0 0.0
    %2925 = vmatprep.subr.mxu0 0.0
    %2926 = vmatpush1.msra.mxu0 0.0
    %2927 = vmatprep.subr.mxu0 0.0
    %2928 = vmatpush1.msra.mxu0 0.0
    %2929 = vmatprep.subr.mxu0 0.0
    %2930 = vmatpush1.msra.mxu0 0.0
    %2931 = vmatprep.subr.mxu0 0.0
    %2932 = vmatpush1.msra.mxu0 0.0
    %2933 = vmatprep.subr.mxu0 0.0
    %2934 = vmatpush1.msra.mxu0 0.0
    %2935 = vmatprep.subr.mxu0 0.0
    %2936 = vmatpush1.msra.mxu0 0.0
    %2937 = vmatprep.subr.mxu0 0.0
    %2938 = vmatpush1.msra.mxu0 0.0
    %2939 = vmatprep.subr.mxu0 0.0
    %2940 = vmatpush1.msra.mxu0 0.0
    %2941 = vmatprep.subr.mxu0 0.0
    %2942 = vmatpush1.msra.mxu0 0.0
    %2943 = vmatprep.subr.mxu0 0.0
    %2944 = vmatpush1.msra.mxu0 0.0
    %2945 = vmatprep.subr.mxu0 0.0
    %2946 = vmatpush1.msra.mxu0 0.0
    %2947 = vmatprep.mubr.f32.mxu0 0.0
    %2948 = vmatmul.mubr.f32.gmra.mrb[0].mxu0 %v2881
    %v2949 = vpop.f32.mrb[0].mxu0
    %v2950 = vadd.f32 %v2180, %v2949
    %v2951 = vpop.f32.mrb[0].mxu0
    %v2952 = vadd.f32 %v2184, %v2951
    %2953 = vdwg.mxu0
    %2954 = vmatprep.subr.mxu0 0.0
    %2955 = vmatpush1.msra.mxu0 %v1956
    %2956 = vmatprep.subr.mxu0 0.0
    %2957 = vmatpush1.msra.mxu0 %v1959
    %2958 = vmatprep.subr.mxu0 0.0
    %2959 = vmatpush1.msra.mxu0 %v1962
    %2960 = vmatprep.subr.mxu0 0.0
    %2961 = vmatpush1.msra.mxu0 %v1965
    %2962 = vmatprep.subr.mxu0 0.0
    %2963 = vmatpush1.msra.mxu0 %v1968
    %2964 = vmatprep.subr.mxu0 0.0
    %2965 = vmatpush1.msra.mxu0 %v1971
    %2966 = vmatprep.subr.mxu0 0.0
    %2967 = vmatpush1.msra.mxu0 %v1974
    %2968 = vmatprep.subr.mxu0 0.0
    %2969 = vmatpush1.msra.mxu0 %v1977
    %2970 = vmatprep.subr.mxu0 0.0
    %2971 = vmatpush1.msra.mxu0 %v1980
    %2972 = vmatprep.subr.mxu0 0.0
    %2973 = vmatpush1.msra.mxu0 %v1983
    %2974 = vmatprep.subr.mxu0 0.0
    %2975 = vmatpush1.msra.mxu0 %v1986
    %2976 = vmatprep.subr.mxu0 0.0
    %2977 = vmatpush1.msra.mxu0 %v1989
    %2978 = vmatprep.subr.mxu0 0.0
    %2979 = vmatpush1.msra.mxu0 %v1992
    %2980 = vmatprep.subr.mxu0 0.0
    %2981 = vmatpush1.msra.mxu0 %v1995
    %2982 = vmatprep.subr.mxu0 0.0
    %2983 = vmatpush1.msra.mxu0 %v1998
    %2984 = vmatprep.subr.mxu0 0.0
    %2985 = vmatpush1.msra.mxu0 %v2001
    %2986 = vmatprep.subr.mxu0 0.0
    %2987 = vmatpush1.msra.mxu0 0.0
    %2988 = vmatprep.subr.mxu0 0.0
    %2989 = vmatpush1.msra.mxu0 0.0
    %2990 = vmatprep.subr.mxu0 0.0
    %2991 = vmatpush1.msra.mxu0 0.0
    %2992 = vmatprep.subr.mxu0 0.0
    %2993 = vmatpush1.msra.mxu0 0.0
    %2994 = vmatprep.subr.mxu0 0.0
    %2995 = vmatpush1.msra.mxu0 0.0
    %2996 = vmatprep.subr.mxu0 0.0
    %2997 = vmatpush1.msra.mxu0 0.0
    %2998 = vmatprep.subr.mxu0 0.0
    %2999 = vmatpush1.msra.mxu0 0.0
    %3000 = vmatprep.subr.mxu0 0.0
    %3001 = vmatpush1.msra.mxu0 0.0
    %3002 = vmatprep.subr.mxu0 0.0
    %3003 = vmatpush1.msra.mxu0 0.0
    %3004 = vmatprep.subr.mxu0 0.0
    %3005 = vmatpush1.msra.mxu0 0.0
    %3006 = vmatprep.subr.mxu0 0.0
    %3007 = vmatpush1.msra.mxu0 0.0
    %3008 = vmatprep.subr.mxu0 0.0
    %3009 = vmatpush1.msra.mxu0 0.0
    %3010 = vmatprep.subr.mxu0 0.0
    %3011 = vmatpush1.msra.mxu0 0.0
    %3012 = vmatprep.subr.mxu0 0.0
    %3013 = vmatpush1.msra.mxu0 0.0
    %3014 = vmatprep.subr.mxu0 0.0
    %3015 = vmatpush1.msra.mxu0 0.0
    %3016 = vmatprep.subr.mxu0 0.0
    %3017 = vmatpush1.msra.mxu0 0.0
    %3018 = vmatprep.mubr.f32.mxu0 0.0
    %3019 = vmatmul.mubr.f32.gmra.mrb[0].mxu0 %v2881
    %v3020 = vpop.f32.mrb[0].mxu0
    %v3021 = vadd.f32 %v2188, %v3020
    %v3022 = vpop.f32.mrb[0].mxu0
    %3023 = vdwg.mxu0
    %v3024 = vadd.f32 %v2095, %v2950
    %v3025 = vadd.f32 %v2097, %v2952
    %v3026 = vxor.u32 %v3024, 2147483648
    %v3027 = vxor.u32 %v3025, 2147483648
    %v3028 = vmul.f32 %v3026, 1.442695
    %v3029 = vpow.pop %v3028
    %v3030 = vmul.f32 %v3027, 1.442695
    %v3031 = vpow.pop %v3030
    %v3032 = vadd.f32 %v3029, 1.0
    %v3033 = vadd.f32 %v3031, 1.0
    %v3034 = vrcp.pop %v3032
    %v3035 = vmul.f32 1.0, %v3034
    %v3036 = vrcp.pop %v3033
    %v3037 = vmul.f32 1.0, %v3036
    %v3038 = vmul.f32 %v3035, %v3021
    %v3039 = vadd.f32 %v2171, %v3038
    %v3040 = vtanh.pop %v3039
    %v3041 = vsub.f32 1.0, %v3037
    %v3042 = vmul.f32 %v3041, %v3040
    %v3043 = vmul.f32 %v3037, %v2881
    %v3044 = vadd.f32 %v3042, %v3043
    %3045 = vmatprep.subr.mxu0 %v1955
    %3046 = vmatpush1.msra.mxu0 %v1954
    %3047 = vmatprep.subr.mxu0 %v1958
    %3048 = vmatpush1.msra.mxu0 %v1957
    %3049 = vmatprep.subr.mxu0 %v1961
    %3050 = vmatpush1.msra.mxu0 %v1960
    %3051 = vmatprep.subr.mxu0 %v1964
    %3052 = vmatpush1.msra.mxu0 %v1963
    %3053 = vmatprep.subr.mxu0 %v1967
    %3054 = vmatpush1.msra.mxu0 %v1966
    %3055 = vmatprep.subr.mxu0 %v1970
    %3056 = vmatpush1.msra.mxu0 %v1969
    %3057 = vmatprep.subr.mxu0 %v1973
    %3058 = vmatpush1.msra.mxu0 %v1972
    %3059 = vmatprep.subr.mxu0 %v1976
    %3060 = vmatpush1.msra.mxu0 %v1975
    %3061 = vmatprep.subr.mxu0 %v1979
    %3062 = vmatpush1.msra.mxu0 %v1978
    %3063 = vmatprep.subr.mxu0 %v1982
    %3064 = vmatpush1.msra.mxu0 %v1981
    %3065 = vmatprep.subr.mxu0 %v1985
    %3066 = vmatpush1.msra.mxu0 %v1984
    %3067 = vmatprep.subr.mxu0 %v1988
    %3068 = vmatpush1.msra.mxu0 %v1987
    %3069 = vmatprep.subr.mxu0 %v1991
    %3070 = vmatpush1.msra.mxu0 %v1990
    %3071 = vmatprep.subr.mxu0 %v1994
    %3072 = vmatpush1.msra.mxu0 %v1993
    %3073 = vmatprep.subr.mxu0 %v1997
    %3074 = vmatpush1.msra.mxu0 %v1996
    %3075 = vmatprep.subr.mxu0 %v2000
    %3076 = vmatpush1.msra.mxu0 %v1999
    %3077 = vmatprep.subr.mxu0 0.0
    %3078 = vmatpush1.msra.mxu0 0.0
    %3079 = vmatprep.subr.mxu0 0.0
    %3080 = vmatpush1.msra.mxu0 0.0
    %3081 = vmatprep.subr.mxu0 0.0
    %3082 = vmatpush1.msra.mxu0 0.0
    %3083 = vmatprep.subr.mxu0 0.0
    %3084 = vmatpush1.msra.mxu0 0.0
    %3085 = vmatprep.subr.mxu0 0.0
    %3086 = vmatpush1.msra.mxu0 0.0
    %3087 = vmatprep.subr.mxu0 0.0
    %3088 = vmatpush1.msra.mxu0 0.0
    %3089 = vmatprep.subr.mxu0 0.0
    %3090 = vmatpush1.msra.mxu0 0.0
    %3091 = vmatprep.subr.mxu0 0.0
    %3092 = vmatpush1.msra.mxu0 0.0
    %3093 = vmatprep.subr.mxu0 0.0
    %3094 = vmatpush1.msra.mxu0 0.0
    %3095 = vmatprep.subr.mxu0 0.0
    %3096 = vmatpush1.msra.mxu0 0.0
    %3097 = vmatprep.subr.mxu0 0.0
    %3098 = vmatpush1.msra.mxu0 0.0
    %3099 = vmatprep.subr.mxu0 0.0
    %3100 = vmatpush1.msra.mxu0 0.0
    %3101 = vmatprep.subr.mxu0 0.0
    %3102 = vmatpush1.msra.mxu0 0.0
    %3103 = vmatprep.subr.mxu0 0.0
    %3104 = vmatpush1.msra.mxu0 0.0
    %3105 = vmatprep.subr.mxu0 0.0
    %3106 = vmatpush1.msra.mxu0 0.0
    %3107 = vmatprep.subr.mxu0 0.0
    %3108 = vmatpush1.msra.mxu0 0.0
    %3109 = vmatprep.mubr.f32.mxu0 0.0
    %3110 = vmatmul.mubr.f32.gmra.mrb[0].mxu0 %v3044
    %v3111 = vpop.f32.mrb[0].mxu0
    %v3112 = vadd.f32 %v2180, %v3111
    %v3113 = vpop.f32.mrb[0].mxu0
    %v3114 = vadd.f32 %v2184, %v3113
    %3115 = vdwg.mxu0
    %3116 = vmatprep.subr.mxu0 0.0
    %3117 = vmatpush1.msra.mxu0 %v1956
    %3118 = vmatprep.subr.mxu0 0.0
    %3119 = vmatpush1.msra.mxu0 %v1959
    %3120 = vmatprep.subr.mxu0 0.0
    %3121 = vmatpush1.msra.mxu0 %v1962
    %3122 = vmatprep.subr.mxu0 0.0
    %3123 = vmatpush1.msra.mxu0 %v1965
    %3124 = vmatprep.subr.mxu0 0.0
    %3125 = vmatpush1.msra.mxu0 %v1968
    %3126 = vmatprep.subr.mxu0 0.0
    %3127 = vmatpush1.msra.mxu0 %v1971
    %3128 = vmatprep.subr.mxu0 0.0
    %3129 = vmatpush1.msra.mxu0 %v1974
    %3130 = vmatprep.subr.mxu0 0.0
    %3131 = vmatpush1.msra.mxu0 %v1977
    %3132 = vmatprep.subr.mxu0 0.0
    %3133 = vmatpush1.msra.mxu0 %v1980
    %3134 = vmatprep.subr.mxu0 0.0
    %3135 = vmatpush1.msra.mxu0 %v1983
    %3136 = vmatprep.subr.mxu0 0.0
    %3137 = vmatpush1.msra.mxu0 %v1986
    %3138 = vmatprep.subr.mxu0 0.0
    %3139 = vmatpush1.msra.mxu0 %v1989
    %3140 = vmatprep.subr.mxu0 0.0
    %3141 = vmatpush1.msra.mxu0 %v1992
    %3142 = vmatprep.subr.mxu0 0.0
    %3143 = vmatpush1.msra.mxu0 %v1995
    %3144 = vmatprep.subr.mxu0 0.0
    %3145 = vmatpush1.msra.mxu0 %v1998
    %3146 = vmatprep.subr.mxu0 0.0
    %3147 = vmatpush1.msra.mxu0 %v2001
    %3148 = vmatprep.subr.mxu0 0.0
    %3149 = vmatpush1.msra.mxu0 0.0
    %3150 = vmatprep.subr.mxu0 0.0
    %3151 = vmatpush1.msra.mxu0 0.0
    %3152 = vmatprep.subr.mxu0 0.0
    %3153 = vmatpush1.msra.mxu0 0.0
    %3154 = vmatprep.subr.mxu0 0.0
    %3155 = vmatpush1.msra.mxu0 0.0
    %3156 = vmatprep.subr.mxu0 0.0
    %3157 = vmatpush1.msra.mxu0 0.0
    %3158 = vmatprep.subr.mxu0 0.0
    %3159 = vmatpush1.msra.mxu0 0.0
    %3160 = vmatprep.subr.mxu0 0.0
    %3161 = vmatpush1.msra.mxu0 0.0
    %3162 = vmatprep.subr.mxu0 0.0
    %3163 = vmatpush1.msra.mxu0 0.0
    %3164 = vmatprep.subr.mxu0 0.0
    %3165 = vmatpush1.msra.mxu0 0.0
    %3166 = vmatprep.subr.mxu0 0.0
    %3167 = vmatpush1.msra.mxu0 0.0
    %3168 = vmatprep.subr.mxu0 0.0
    %3169 = vmatpush1.msra.mxu0 0.0
    %3170 = vmatprep.subr.mxu0 0.0
    %3171 = vmatpush1.msra.mxu0 0.0
    %3172 = vmatprep.subr.mxu0 0.0
    %3173 = vmatpush1.msra.mxu0 0.0
    %3174 = vmatprep.subr.mxu0 0.0
    %3175 = vmatpush1.msra.mxu0 0.0
    %3176 = vmatprep.subr.mxu0 0.0
    %3177 = vmatpush1.msra.mxu0 0.0
    %3178 = vmatprep.subr.mxu0 0.0
    %3179 = vmatpush1.msra.mxu0 0.0
    %3180 = vmatprep.mubr.f32.mxu0 0.0
    %3181 = vmatmul.mubr.f32.gmra.mrb[0].mxu0 %v3044
    %v3182 = vpop.f32.mrb[0].mxu0
    %v3183 = vadd.f32 %v2188, %v3182
    %v3184 = vpop.f32.mrb[0].mxu0
    %3185 = vdwg.mxu0
    %v3188 = vrot.slane %v3112, 6
    %v3189 = vrot.slane %v3114, 6
    %v3192 = vadd.f32 %v2095, %v3188
    %v3193 = vadd.f32 %v2097, %v3189
    %v3194 = vxor.u32 %v3192, 2147483648
    %v3195 = vxor.u32 %v3193, 2147483648
    %v3196 = vmul.f32 %v3194, 1.442695
    %v3197 = vpow.pop %v3196
    %v3198 = vmul.f32 %v3195, 1.442695
    %v3199 = vpow.pop %v3198
    %v3200 = vadd.f32 %v3197, 1.0
    %v3201 = vadd.f32 %v3199, 1.0
    %v3202 = vrcp.pop %v3200
    %v3203 = vmul.f32 1.0, %v3202
    %v3204 = vrcp.pop %v3201
    %v3205 = vmul.f32 1.0, %v3204
    %v3207 = vrot.slane %v3183, 6
    %v3209 = vmul.f32 %v3203, %v3207
    %v3210 = vadd.f32 %v2171, %v3209
    %v3211 = vtanh.pop %v3210
    %v3212 = vsub.f32 1.0, %v3205
    %v3213 = vmul.f32 %v3212, %v3211
    %v3215 = vrot.slane %v3044, 6
    %v3217 = vmul.f32 %v3205, %v3215
    %v3218 = vadd.f32 %v3213, %v3217
    %v3220 = vrot.slane %v3218, 2
    %3222 = vmatprep.subr.mxu0 %v1955
    %3223 = vmatpush1.msra.mxu0 %v1954
    %3224 = vmatprep.subr.mxu0 %v1958
    %3225 = vmatpush1.msra.mxu0 %v1957
    %3226 = vmatprep.subr.mxu0 %v1961
    %3227 = vmatpush1.msra.mxu0 %v1960
    %3228 = vmatprep.subr.mxu0 %v1964
    %3229 = vmatpush1.msra.mxu0 %v1963
    %3230 = vmatprep.subr.mxu0 %v1967
    %3231 = vmatpush1.msra.mxu0 %v1966
    %3232 = vmatprep.subr.mxu0 %v1970
    %3233 = vmatpush1.msra.mxu0 %v1969
    %3234 = vmatprep.subr.mxu0 %v1973
    %3235 = vmatpush1.msra.mxu0 %v1972
    %3236 = vmatprep.subr.mxu0 %v1976
    %3237 = vmatpush1.msra.mxu0 %v1975
    %3238 = vmatprep.subr.mxu0 %v1979
    %3239 = vmatpush1.msra.mxu0 %v1978
    %3240 = vmatprep.subr.mxu0 %v1982
    %3241 = vmatpush1.msra.mxu0 %v1981
    %3242 = vmatprep.subr.mxu0 %v1985
    %3243 = vmatpush1.msra.mxu0 %v1984
    %3244 = vmatprep.subr.mxu0 %v1988
    %3245 = vmatpush1.msra.mxu0 %v1987
    %3246 = vmatprep.subr.mxu0 %v1991
    %3247 = vmatpush1.msra.mxu0 %v1990
    %3248 = vmatprep.subr.mxu0 %v1994
    %3249 = vmatpush1.msra.mxu0 %v1993
    %3250 = vmatprep.subr.mxu0 %v1997
    %3251 = vmatpush1.msra.mxu0 %v1996
    %3252 = vmatprep.subr.mxu0 %v2000
    %3253 = vmatpush1.msra.mxu0 %v1999
    %3254 = vmatprep.subr.mxu0 0.0
    %3255 = vmatpush1.msra.mxu0 0.0
    %3256 = vmatprep.subr.mxu0 0.0
    %3257 = vmatpush1.msra.mxu0 0.0
    %3258 = vmatprep.subr.mxu0 0.0
    %3259 = vmatpush1.msra.mxu0 0.0
    %3260 = vmatprep.subr.mxu0 0.0
    %3261 = vmatpush1.msra.mxu0 0.0
    %3262 = vmatprep.subr.mxu0 0.0
    %3263 = vmatpush1.msra.mxu0 0.0
    %3264 = vmatprep.subr.mxu0 0.0
    %3265 = vmatpush1.msra.mxu0 0.0
    %3266 = vmatprep.subr.mxu0 0.0
    %3267 = vmatpush1.msra.mxu0 0.0
    %3268 = vmatprep.subr.mxu0 0.0
    %3269 = vmatpush1.msra.mxu0 0.0
    %3270 = vmatprep.subr.mxu0 0.0
    %3271 = vmatpush1.msra.mxu0 0.0
    %3272 = vmatprep.subr.mxu0 0.0
    %3273 = vmatpush1.msra.mxu0 0.0
    %3274 = vmatprep.subr.mxu0 0.0
    %3275 = vmatpush1.msra.mxu0 0.0
    %3276 = vmatprep.subr.mxu0 0.0
    %3277 = vmatpush1.msra.mxu0 0.0
    %3278 = vmatprep.subr.mxu0 0.0
    %3279 = vmatpush1.msra.mxu0 0.0
    %3280 = vmatprep.subr.mxu0 0.0
    %3281 = vmatpush1.msra.mxu0 0.0
    %3282 = vmatprep.subr.mxu0 0.0
    %3283 = vmatpush1.msra.mxu0 0.0
    %3284 = vmatprep.subr.mxu0 0.0
    %3285 = vmatpush1.msra.mxu0 0.0
    %3286 = vmatprep.mubr.f32.mxu0 0.0
    %3287 = vmatmul.mubr.f32.gmra.mrb[0].mxu0 %v3220
    %v3288 = vpop.f32.mrb[0].mxu0
    %v3289 = vadd.f32 %v2180, %v3288
    %v3290 = vpop.f32.mrb[0].mxu0
    %v3291 = vadd.f32 %v2184, %v3290
    %3292 = vdwg.mxu0
    %3293 = vmatprep.subr.mxu0 0.0
    %3294 = vmatpush1.msra.mxu0 %v1956
    %3295 = vmatprep.subr.mxu0 0.0
    %3296 = vmatpush1.msra.mxu0 %v1959
    %3297 = vmatprep.subr.mxu0 0.0
    %3298 = vmatpush1.msra.mxu0 %v1962
    %3299 = vmatprep.subr.mxu0 0.0
    %3300 = vmatpush1.msra.mxu0 %v1965
    %3301 = vmatprep.subr.mxu0 0.0
    %3302 = vmatpush1.msra.mxu0 %v1968
    %3303 = vmatprep.subr.mxu0 0.0
    %3304 = vmatpush1.msra.mxu0 %v1971
    %3305 = vmatprep.subr.mxu0 0.0
    %3306 = vmatpush1.msra.mxu0 %v1974
    %3307 = vmatprep.subr.mxu0 0.0
    %3308 = vmatpush1.msra.mxu0 %v1977
    %3309 = vmatprep.subr.mxu0 0.0
    %3310 = vmatpush1.msra.mxu0 %v1980
    %3311 = vmatprep.subr.mxu0 0.0
    %3312 = vmatpush1.msra.mxu0 %v1983
    %3313 = vmatprep.subr.mxu0 0.0
    %3314 = vmatpush1.msra.mxu0 %v1986
    %3315 = vmatprep.subr.mxu0 0.0
    %3316 = vmatpush1.msra.mxu0 %v1989
    %3317 = vmatprep.subr.mxu0 0.0
    %3318 = vmatpush1.msra.mxu0 %v1992
    %3319 = vmatprep.subr.mxu0 0.0
    %3320 = vmatpush1.msra.mxu0 %v1995
    %3321 = vmatprep.subr.mxu0 0.0
    %3322 = vmatpush1.msra.mxu0 %v1998
    %3323 = vmatprep.subr.mxu0 0.0
    %3324 = vmatpush1.msra.mxu0 %v2001
    %3325 = vmatprep.subr.mxu0 0.0
    %3326 = vmatpush1.msra.mxu0 0.0
    %3327 = vmatprep.subr.mxu0 0.0
    %3328 = vmatpush1.msra.mxu0 0.0
    %3329 = vmatprep.subr.mxu0 0.0
    %3330 = vmatpush1.msra.mxu0 0.0
    %3331 = vmatprep.subr.mxu0 0.0
    %3332 = vmatpush1.msra.mxu0 0.0
    %3333 = vmatprep.subr.mxu0 0.0
    %3334 = vmatpush1.msra.mxu0 0.0
    %3335 = vmatprep.subr.mxu0 0.0
    %3336 = vmatpush1.msra.mxu0 0.0
    %3337 = vmatprep.subr.mxu0 0.0
    %3338 = vmatpush1.msra.mxu0 0.0
    %3339 = vmatprep.subr.mxu0 0.0
    %3340 = vmatpush1.msra.mxu0 0.0
    %3341 = vmatprep.subr.mxu0 0.0
    %3342 = vmatpush1.msra.mxu0 0.0
    %3343 = vmatprep.subr.mxu0 0.0
    %3344 = vmatpush1.msra.mxu0 0.0
    %3345 = vmatprep.subr.mxu0 0.0
    %3346 = vmatpush1.msra.mxu0 0.0
    %3347 = vmatprep.subr.mxu0 0.0
    %3348 = vmatpush1.msra.mxu0 0.0
    %3349 = vmatprep.subr.mxu0 0.0
    %3350 = vmatpush1.msra.mxu0 0.0
    %3351 = vmatprep.subr.mxu0 0.0
    %3352 = vmatpush1.msra.mxu0 0.0
    %3353 = vmatprep.subr.mxu0 0.0
    %3354 = vmatpush1.msra.mxu0 0.0
    %3355 = vmatprep.subr.mxu0 0.0
    %3356 = vmatpush1.msra.mxu0 0.0
    %3357 = vmatprep.mubr.f32.mxu0 0.0
    %3358 = vmatmul.mubr.f32.gmra.mrb[0].mxu0 %v3220
    %v3359 = vpop.f32.mrb[0].mxu0
    %v3360 = vadd.f32 %v2188, %v3359
    %v3361 = vpop.f32.mrb[0].mxu0
    %3362 = vdwg.mxu0
    %v3365 = vrot.slane %v3289, 4
    %v3366 = vrot.slane %v3291, 4
    %v3369 = vadd.f32 %v2095, %v3365
    %v3370 = vadd.f32 %v2097, %v3366
    %v3371 = vxor.u32 %v3369, 2147483648
    %v3372 = vxor.u32 %v3370, 2147483648
    %v3373 = vmul.f32 %v3371, 1.442695
    %v3374 = vpow.pop %v3373
    %v3375 = vmul.f32 %v3372, 1.442695
    %v3376 = vpow.pop %v3375
    %v3377 = vadd.f32 %v3374, 1.0
    %v3378 = vadd.f32 %v3376, 1.0
    %v3379 = vrcp.pop %v3377
    %v3380 = vmul.f32 1.0, %v3379
    %v3381 = vrcp.pop %v3378
    %v3382 = vmul.f32 1.0, %v3381
    %v3384 = vrot.slane %v3360, 4
    %v3386 = vmul.f32 %v3380, %v3384
    %v3387 = vadd.f32 %v2171, %v3386
    %v3388 = vtanh.pop %v3387
    %v3389 = vsub.f32 1.0, %v3382
    %v3390 = vmul.f32 %v3389, %v3388
    %v3391 = vrot.slane %v3218, 6
    %v3393 = vmul.f32 %v3382, %v3391
    %v3394 = vadd.f32 %v3390, %v3393
    %v3396 = vrot.slane %v3394, 4
    %3398 = vmatprep.subr.mxu0 %v1955
    %3399 = vmatpush1.msra.mxu0 %v1954
    %3400 = vmatprep.subr.mxu0 %v1958
    %3401 = vmatpush1.msra.mxu0 %v1957
    %3402 = vmatprep.subr.mxu0 %v1961
    %3403 = vmatpush1.msra.mxu0 %v1960
    %3404 = vmatprep.subr.mxu0 %v1964
    %3405 = vmatpush1.msra.mxu0 %v1963
    %3406 = vmatprep.subr.mxu0 %v1967
    %3407 = vmatpush1.msra.mxu0 %v1966
    %3408 = vmatprep.subr.mxu0 %v1970
    %3409 = vmatpush1.msra.mxu0 %v1969
    %3410 = vmatprep.subr.mxu0 %v1973
    %3411 = vmatpush1.msra.mxu0 %v1972
    %3412 = vmatprep.subr.mxu0 %v1976
    %3413 = vmatpush1.msra.mxu0 %v1975
    %3414 = vmatprep.subr.mxu0 %v1979
    %3415 = vmatpush1.msra.mxu0 %v1978
    %3416 = vmatprep.subr.mxu0 %v1982
    %3417 = vmatpush1.msra.mxu0 %v1981
    %3418 = vmatprep.subr.mxu0 %v1985
    %3419 = vmatpush1.msra.mxu0 %v1984
    %3420 = vmatprep.subr.mxu0 %v1988
    %3421 = vmatpush1.msra.mxu0 %v1987
    %3422 = vmatprep.subr.mxu0 %v1991
    %3423 = vmatpush1.msra.mxu0 %v1990
    %3424 = vmatprep.subr.mxu0 %v1994
    %3425 = vmatpush1.msra.mxu0 %v1993
    %3426 = vmatprep.subr.mxu0 %v1997
    %3427 = vmatpush1.msra.mxu0 %v1996
    %3428 = vmatprep.subr.mxu0 %v2000
    %3429 = vmatpush1.msra.mxu0 %v1999
    %3430 = vmatprep.subr.mxu0 0.0
    %3431 = vmatpush1.msra.mxu0 0.0
    %3432 = vmatprep.subr.mxu0 0.0
    %3433 = vmatpush1.msra.mxu0 0.0
    %3434 = vmatprep.subr.mxu0 0.0
    %3435 = vmatpush1.msra.mxu0 0.0
    %3436 = vmatprep.subr.mxu0 0.0
    %3437 = vmatpush1.msra.mxu0 0.0
    %3438 = vmatprep.subr.mxu0 0.0
    %3439 = vmatpush1.msra.mxu0 0.0
    %3440 = vmatprep.subr.mxu0 0.0
    %3441 = vmatpush1.msra.mxu0 0.0
    %3442 = vmatprep.subr.mxu0 0.0
    %3443 = vmatpush1.msra.mxu0 0.0
    %3444 = vmatprep.subr.mxu0 0.0
    %3445 = vmatpush1.msra.mxu0 0.0
    %3446 = vmatprep.subr.mxu0 0.0
    %3447 = vmatpush1.msra.mxu0 0.0
    %3448 = vmatprep.subr.mxu0 0.0
    %3449 = vmatpush1.msra.mxu0 0.0
    %3450 = vmatprep.subr.mxu0 0.0
    %3451 = vmatpush1.msra.mxu0 0.0
    %3452 = vmatprep.subr.mxu0 0.0
    %3453 = vmatpush1.msra.mxu0 0.0
    %3454 = vmatprep.subr.mxu0 0.0
    %3455 = vmatpush1.msra.mxu0 0.0
    %3456 = vmatprep.subr.mxu0 0.0
    %3457 = vmatpush1.msra.mxu0 0.0
    %3458 = vmatprep.subr.mxu0 0.0
    %3459 = vmatpush1.msra.mxu0 0.0
    %3460 = vmatprep.subr.mxu0 0.0
    %3461 = vmatpush1.msra.mxu0 0.0
    %3462 = vmatprep.mubr.f32.mxu0 0.0
    %3463 = vmatmul.mubr.f32.gmra.mrb[0].mxu0 %v3396
    %v3464 = vpop.f32.mrb[0].mxu0
    %v3465 = vadd.f32 %v2180, %v3464
    %v3466 = vpop.f32.mrb[0].mxu0
    %v3467 = vadd.f32 %v2184, %v3466
    %3468 = vdwg.mxu0
    %3469 = vmatprep.subr.mxu0 0.0
    %3470 = vmatpush1.msra.mxu0 %v1956
    %3471 = vmatprep.subr.mxu0 0.0
    %3472 = vmatpush1.msra.mxu0 %v1959
    %3473 = vmatprep.subr.mxu0 0.0
    %3474 = vmatpush1.msra.mxu0 %v1962
    %3475 = vmatprep.subr.mxu0 0.0
    %3476 = vmatpush1.msra.mxu0 %v1965
    %3477 = vmatprep.subr.mxu0 0.0
    %3478 = vmatpush1.msra.mxu0 %v1968
    %3479 = vmatprep.subr.mxu0 0.0
    %3480 = vmatpush1.msra.mxu0 %v1971
    %3481 = vmatprep.subr.mxu0 0.0
    %3482 = vmatpush1.msra.mxu0 %v1974
    %3483 = vmatprep.subr.mxu0 0.0
    %3484 = vmatpush1.msra.mxu0 %v1977
    %3485 = vmatprep.subr.mxu0 0.0
    %3486 = vmatpush1.msra.mxu0 %v1980
    %3487 = vmatprep.subr.mxu0 0.0
    %3488 = vmatpush1.msra.mxu0 %v1983
    %3489 = vmatprep.subr.mxu0 0.0
    %3490 = vmatpush1.msra.mxu0 %v1986
    %3491 = vmatprep.subr.mxu0 0.0
    %3492 = vmatpush1.msra.mxu0 %v1989
    %3493 = vmatprep.subr.mxu0 0.0
    %3494 = vmatpush1.msra.mxu0 %v1992
    %3495 = vmatprep.subr.mxu0 0.0
    %3496 = vmatpush1.msra.mxu0 %v1995
    %3497 = vmatprep.subr.mxu0 0.0
    %3498 = vmatpush1.msra.mxu0 %v1998
    %3499 = vmatprep.subr.mxu0 0.0
    %3500 = vmatpush1.msra.mxu0 %v2001
    %3501 = vmatprep.subr.mxu0 0.0
    %3502 = vmatpush1.msra.mxu0 0.0
    %3503 = vmatprep.subr.mxu0 0.0
    %3504 = vmatpush1.msra.mxu0 0.0
    %3505 = vmatprep.subr.mxu0 0.0
    %3506 = vmatpush1.msra.mxu0 0.0
    %3507 = vmatprep.subr.mxu0 0.0
    %3508 = vmatpush1.msra.mxu0 0.0
    %3509 = vmatprep.subr.mxu0 0.0
    %3510 = vmatpush1.msra.mxu0 0.0
    %3511 = vmatprep.subr.mxu0 0.0
    %3512 = vmatpush1.msra.mxu0 0.0
    %3513 = vmatprep.subr.mxu0 0.0
    %3514 = vmatpush1.msra.mxu0 0.0
    %3515 = vmatprep.subr.mxu0 0.0
    %3516 = vmatpush1.msra.mxu0 0.0
    %3517 = vmatprep.subr.mxu0 0.0
    %3518 = vmatpush1.msra.mxu0 0.0
    %3519 = vmatprep.subr.mxu0 0.0
    %3520 = vmatpush1.msra.mxu0 0.0
    %3521 = vmatprep.subr.mxu0 0.0
    %3522 = vmatpush1.msra.mxu0 0.0
    %3523 = vmatprep.subr.mxu0 0.0
    %3524 = vmatpush1.msra.mxu0 0.0
    %3525 = vmatprep.subr.mxu0 0.0
    %3526 = vmatpush1.msra.mxu0 0.0
    %3527 = vmatprep.subr.mxu0 0.0
    %3528 = vmatpush1.msra.mxu0 0.0
    %3529 = vmatprep.subr.mxu0 0.0
    %3530 = vmatpush1.msra.mxu0 0.0
    %3531 = vmatprep.subr.mxu0 0.0
    %3532 = vmatpush1.msra.mxu0 0.0
    %3533 = vmatprep.mubr.f32.mxu0 0.0
    %3534 = vmatmul.mubr.f32.gmra.mrb[0].mxu0 %v3396
    %v3535 = vpop.f32.mrb[0].mxu0
    %v3536 = vadd.f32 %v2188, %v3535
    %v3537 = vpop.f32.mrb[0].mxu0
    %3538 = vdwg.mxu0
    %v3541 = vrot.slane %v3465, 2
    %v3542 = vrot.slane %v3467, 2
    %v3545 = vadd.f32 %v2095, %v3541
    %v3546 = vadd.f32 %v2097, %v3542
    %v3547 = vxor.u32 %v3545, 2147483648
    %v3548 = vxor.u32 %v3546, 2147483648
    %v3549 = vmul.f32 %v3547, 1.442695
    %v3550 = vpow.pop %v3549
    %v3551 = vmul.f32 %v3548, 1.442695
    %v3552 = vpow.pop %v3551
    %v3553 = vadd.f32 %v3550, 1.0
    %v3554 = vadd.f32 %v3552, 1.0
    %v3555 = vrcp.pop %v3553
    %v3556 = vmul.f32 1.0, %v3555
    %v3557 = vrcp.pop %v3554
    %v3558 = vmul.f32 1.0, %v3557
    %v3560 = vrot.slane %v3536, 2
    %v3562 = vmul.f32 %v3556, %v3560
    %v3563 = vadd.f32 %v2171, %v3562
    %v3564 = vtanh.pop %v3563
    %v3565 = vsub.f32 1.0, %v3558
    %v3566 = vmul.f32 %v3565, %v3564
    %v3567 = vrot.slane %v3394, 6
    %v3569 = vmul.f32 %v3558, %v3567
    %v3570 = vadd.f32 %v3566, %v3569
    %3571 = vst [vmem:[#allocation15 - $0x4] sm:$0xc0] %v3570
    %v3572 = vrot.slane %v2527, 1
    %v3574 = vrot.slane %v2703, 2
    %v3576 = vrot.slane %v2879, 3
    %v3578 = vrot.slane %v3044, 4
    %v3580 = vrot.slane %v3218, 5
    %v3583 = vrot.slane %v3570, 7
    %vm3585 = vcmask 1040384
    %v3586 = vsel %vm3585, %v2353, %v3572
    %v3587 = vsel %vm1895, %v3586, %v3574
    %vm3588 = vcmask 1042432
    %v3589 = vsel %vm3588, %v3587, %v3576
    %v3590 = vsel %vm1897, %v3589, %v3578
    %vm3591 = vcmask 1044480
    %v3592 = vsel %vm3591, %v3590, %v3580
    %v3593 = vsel %vm1899, %v3592, %v3567
    %vm3594 = vcmask 1046528
    %v3595 = vsel %vm3594, %v3593, %v3583
    %v3596 = vld [vmem:[#allocation10] sm:$0xff]
    %v3597 = vld [vmem:[#allocation10 + $0x8] sm:$0xff]
    %v3598 = vld [vmem:[#allocation10 + $0x10] sm:$0xff]
    %v3599 = vld [vmem:[#allocation10 + $0x18] sm:$0xff]
    %v3600 = vld [vmem:[#allocation10 + $0x20] sm:$0xff]
    %v3601 = vld [vmem:[#allocation10 + $0x28] sm:$0xff]
    %v3602 = vld [vmem:[#allocation10 + $0x30] sm:$0xff]
    %v3603 = vld [vmem:[#allocation10 + $0x38] sm:$0xff]
    %v3604 = vld [vmem:[#allocation10 + $0x40] sm:$0xff]
    %v3605 = vld [vmem:[#allocation10 + $0x48] sm:$0xff]
    %v3606 = vld [vmem:[#allocation10 + $0x50] sm:$0xff]
    %v3607 = vld [vmem:[#allocation10 + $0x58] sm:$0xff]
    %v3608 = vld [vmem:[#allocation10 + $0x60] sm:$0xff]
    %v3609 = vld [vmem:[#allocation10 + $0x68] sm:$0xff]
    %v3610 = vld [vmem:[#allocation10 + $0x70] sm:$0xff]
    %v3611 = vld [vmem:[#allocation10 + $0x78] sm:$0xff]
    %3612 = vmatprep.subr.mxu0 0.0
    %3613 = vmatpush1.msra.mxu0 %v3596
    %3614 = vmatprep.subr.mxu0 0.0
    %3615 = vmatpush1.msra.mxu0 %v3597
    %3616 = vmatprep.subr.mxu0 0.0
    %3617 = vmatpush1.msra.mxu0 %v3598
    %3618 = vmatprep.subr.mxu0 0.0
    %3619 = vmatpush1.msra.mxu0 %v3599
    %3620 = vmatprep.subr.mxu0 0.0
    %3621 = vmatpush1.msra.mxu0 %v3600
    %3622 = vmatprep.subr.mxu0 0.0
    %3623 = vmatpush1.msra.mxu0 %v3601
    %3624 = vmatprep.subr.mxu0 0.0
    %3625 = vmatpush1.msra.mxu0 %v3602
    %3626 = vmatprep.subr.mxu0 0.0
    %3627 = vmatpush1.msra.mxu0 %v3603
    %3628 = vmatprep.subr.mxu0 0.0
    %3629 = vmatpush1.msra.mxu0 %v3604
    %3630 = vmatprep.subr.mxu0 0.0
    %3631 = vmatpush1.msra.mxu0 %v3605
    %3632 = vmatprep.subr.mxu0 0.0
    %3633 = vmatpush1.msra.mxu0 %v3606
    %3634 = vmatprep.subr.mxu0 0.0
    %3635 = vmatpush1.msra.mxu0 %v3607
    %3636 = vmatprep.subr.mxu0 0.0
    %3637 = vmatpush1.msra.mxu0 %v3608
    %3638 = vmatprep.subr.mxu0 0.0
    %3639 = vmatpush1.msra.mxu0 %v3609
    %3640 = vmatprep.subr.mxu0 0.0
    %3641 = vmatpush1.msra.mxu0 %v3610
    %3642 = vmatprep.subr.mxu0 0.0
    %3643 = vmatpush1.msra.mxu0 %v3611
    %3644 = vmatprep.subr.mxu0 0.0
    %3645 = vmatpush1.msra.mxu0 0.0
    %3646 = vmatprep.subr.mxu0 0.0
    %3647 = vmatpush1.msra.mxu0 0.0
    %3648 = vmatprep.subr.mxu0 0.0
    %3649 = vmatpush1.msra.mxu0 0.0
    %3650 = vmatprep.subr.mxu0 0.0
    %3651 = vmatpush1.msra.mxu0 0.0
    %3652 = vmatprep.subr.mxu0 0.0
    %3653 = vmatpush1.msra.mxu0 0.0
    %3654 = vmatprep.subr.mxu0 0.0
    %3655 = vmatpush1.msra.mxu0 0.0
    %3656 = vmatprep.subr.mxu0 0.0
    %3657 = vmatpush1.msra.mxu0 0.0
    %3658 = vmatprep.subr.mxu0 0.0
    %3659 = vmatpush1.msra.mxu0 0.0
    %3660 = vmatprep.subr.mxu0 0.0
    %3661 = vmatpush1.msra.mxu0 0.0
    %3662 = vmatprep.subr.mxu0 0.0
    %3663 = vmatpush1.msra.mxu0 0.0
    %3664 = vmatprep.subr.mxu0 0.0
    %3665 = vmatpush1.msra.mxu0 0.0
    %3666 = vmatprep.subr.mxu0 0.0
    %3667 = vmatpush1.msra.mxu0 0.0
    %3668 = vmatprep.subr.mxu0 0.0
    %3669 = vmatpush1.msra.mxu0 0.0
    %3670 = vmatprep.subr.mxu0 0.0
    %3671 = vmatpush1.msra.mxu0 0.0
    %3672 = vmatprep.subr.mxu0 0.0
    %3673 = vmatpush1.msra.mxu0 0.0
    %3674 = vmatprep.subr.mxu0 0.0
    %3675 = vmatpush1.msra.mxu0 0.0
    %3676 = vmatprep.mubr.f32.mxu0 0.0
    %3677 = vmatmul.mubr.f32.gmra.mrb[0].mxu0 %v3595
    %v3678 = vpop.f32.mrb[0].mxu0
    %v3679 = vadd.f32 0.0, %v3678
    %v3680 = vpop.f32.mrb[0].mxu0
    %3681 = vdwg.mxu0
    %v3682 = vld [vmem:[#allocation11] sm:$0xff]
    %v3683 = vld [vmem:[#allocation11 + $0x8] sm:$0xff]
    %v3684 = vld [vmem:[#allocation11 + $0x10] sm:$0xff]
    %v3685 = vld [vmem:[#allocation11 + $0x18] sm:$0xff]
    %v3686 = vld [vmem:[#allocation11 + $0x20] sm:$0xff]
    %v3687 = vld [vmem:[#allocation11 + $0x28] sm:$0xff]
    %v3688 = vld [vmem:[#allocation11 + $0x30] sm:$0xff]
    %v3689 = vld [vmem:[#allocation11 + $0x38] sm:$0xff]
    %v3690 = vld [vmem:[#allocation11 + $0x40] sm:$0xff]
    %v3691 = vld [vmem:[#allocation11 + $0x48] sm:$0xff]
    %v3692 = vld [vmem:[#allocation11 + $0x50] sm:$0xff]
    %v3693 = vld [vmem:[#allocation11 + $0x58] sm:$0xff]
    %v3694 = vld [vmem:[#allocation11 + $0x60] sm:$0xff]
    %v3695 = vld [vmem:[#allocation11 + $0x68] sm:$0xff]
    %v3696 = vld [vmem:[#allocation11 + $0x70] sm:$0xff]
    %v3697 = vld [vmem:[#allocation11 + $0x78] sm:$0xff]
    %v3698 = vld [vmem:[%s9] sm:$0x1]
    %v3700 = vlaneseq
    %v3701 = vshrl.u32 %v3700, 7
    %v3702 = vsub.s32 0, %v3701
    %v3703 = vrot.slane %v3698, %v3702
    %3705 = vmatprep.subr.mxu0 0.0
    %3706 = vmatpush1.msra.mxu0 %v3682
    %3707 = vmatprep.subr.mxu0 0.0
    %3708 = vmatpush1.msra.mxu0 %v3683
    %3709 = vmatprep.subr.mxu0 0.0
    %3710 = vmatpush1.msra.mxu0 %v3684
    %3711 = vmatprep.subr.mxu0 0.0
    %3712 = vmatpush1.msra.mxu0 %v3685
    %3713 = vmatprep.subr.mxu0 0.0
    %3714 = vmatpush1.msra.mxu0 %v3686
    %3715 = vmatprep.subr.mxu0 0.0
    %3716 = vmatpush1.msra.mxu0 %v3687
    %3717 = vmatprep.subr.mxu0 0.0
    %3718 = vmatpush1.msra.mxu0 %v3688
    %3719 = vmatprep.subr.mxu0 0.0
    %3720 = vmatpush1.msra.mxu0 %v3689
    %3721 = vmatprep.subr.mxu0 0.0
    %3722 = vmatpush1.msra.mxu0 %v3690
    %3723 = vmatprep.subr.mxu0 0.0
    %3724 = vmatpush1.msra.mxu0 %v3691
    %3725 = vmatprep.subr.mxu0 0.0
    %3726 = vmatpush1.msra.mxu0 %v3692
    %3727 = vmatprep.subr.mxu0 0.0
    %3728 = vmatpush1.msra.mxu0 %v3693
    %3729 = vmatprep.subr.mxu0 0.0
    %3730 = vmatpush1.msra.mxu0 %v3694
    %3731 = vmatprep.subr.mxu0 0.0
    %3732 = vmatpush1.msra.mxu0 %v3695
    %3733 = vmatprep.subr.mxu0 0.0
    %3734 = vmatpush1.msra.mxu0 %v3696
    %3735 = vmatprep.subr.mxu0 0.0
    %3736 = vmatpush1.msra.mxu0 %v3697
    %3737 = vmatprep.subr.mxu0 0.0
    %3738 = vmatpush1.msra.mxu0 0.0
    %3739 = vmatprep.subr.mxu0 0.0
    %3740 = vmatpush1.msra.mxu0 0.0
    %3741 = vmatprep.subr.mxu0 0.0
    %3742 = vmatpush1.msra.mxu0 0.0
    %3743 = vmatprep.subr.mxu0 0.0
    %3744 = vmatpush1.msra.mxu0 0.0
    %3745 = vmatprep.subr.mxu0 0.0
    %3746 = vmatpush1.msra.mxu0 0.0
    %3747 = vmatprep.subr.mxu0 0.0
    %3748 = vmatpush1.msra.mxu0 0.0
    %3749 = vmatprep.subr.mxu0 0.0
    %3750 = vmatpush1.msra.mxu0 0.0
    %3751 = vmatprep.subr.mxu0 0.0
    %3752 = vmatpush1.msra.mxu0 0.0
    %3753 = vmatprep.subr.mxu0 0.0
    %3754 = vmatpush1.msra.mxu0 0.0
    %3755 = vmatprep.subr.mxu0 0.0
    %3756 = vmatpush1.msra.mxu0 0.0
    %3757 = vmatprep.subr.mxu0 0.0
    %3758 = vmatpush1.msra.mxu0 0.0
    %3759 = vmatprep.subr.mxu0 0.0
    %3760 = vmatpush1.msra.mxu0 0.0
    %3761 = vmatprep.subr.mxu0 0.0
    %3762 = vmatpush1.msra.mxu0 0.0
    %3763 = vmatprep.subr.mxu0 0.0
    %3764 = vmatpush1.msra.mxu0 0.0
    %3765 = vmatprep.subr.mxu0 0.0
    %3766 = vmatpush1.msra.mxu0 0.0
    %3767 = vmatprep.subr.mxu0 0.0
    %3768 = vmatpush1.msra.mxu0 0.0
    %3769 = vmatprep.mubr.f32.mxu0 0.0
    %3770 = vmatmul.mubr.f32.gmra.mrb[0].mxu0 %v3679
    %v3771 = vpop.f32.mrb[0].mxu0
    %v3772 = vadd.f32 %v3703, %v3771
    %v3773 = vpop.f32.mrb[0].mxu0
    %3774 = vdwg.mxu0
    %vm3775 = vcmp.gt.f32.partialorder %v3772, 0.0
    %v3776 = vmul.f32 %v3772, 0.01
    %v3777 = vsel %vm3775, %v3772, %v3776
    %v3778 = vld [vmem:[%s10] sm:$0xff]
    %3780 = vset.pattern.permute.xlu0 0
    %3781 = vperm.xlu0 %3780, %v3778
    %v3782 = vpop.permute.xlu0 %3781
    %v3784 = vmul.f32 %v3777, %v3782
    %v3785 = vld [vmem:[%s11] sm:$0xff]
    %3787 = vset.pattern.permute.xlu0 0
    %3788 = vperm.xlu0 %3787, %v3785
    %v3789 = vpop.permute.xlu0 %3788
    %v3791 = vadd.f32 %v3784, %v3789
    %v3792 = vld [vmem:[#allocation13] sm:$0xff]
    %v3793 = vld [vmem:[#allocation13 + $0x8] sm:$0xff]
    %v3794 = vld [vmem:[#allocation13 + $0x10] sm:$0xff]
    %v3795 = vld [vmem:[#allocation13 + $0x18] sm:$0xff]
    %v3796 = vld [vmem:[#allocation13 + $0x20] sm:$0xff]
    %v3797 = vld [vmem:[#allocation13 + $0x28] sm:$0xff]
    %v3798 = vld [vmem:[#allocation13 + $0x30] sm:$0xff]
    %v3799 = vld [vmem:[#allocation13 + $0x38] sm:$0xff]
    %v3800 = vld [vmem:[#allocation13 + $0x40] sm:$0xff]
    %v3801 = vld [vmem:[#allocation13 + $0x48] sm:$0xff]
    %v3802 = vld [vmem:[#allocation13 + $0x50] sm:$0xff]
    %v3803 = vld [vmem:[#allocation13 + $0x58] sm:$0xff]
    %v3804 = vld [vmem:[#allocation13 + $0x60] sm:$0xff]
    %v3805 = vld [vmem:[#allocation13 + $0x68] sm:$0xff]
    %v3806 = vld [vmem:[#allocation13 + $0x70] sm:$0xff]
    %v3807 = vld [vmem:[#allocation13 + $0x78] sm:$0xff]
    %v3808 = vld [vmem:[%s13] sm:$0x1]
    %v3810 = vlaneseq
    %v3811 = vshrl.u32 %v3810, 7
    %v3812 = vsub.s32 0, %v3811
    %v3813 = vrot.slane %v3808, %v3812
    %3815 = vmatprep.subr.mxu0 0.0
    %3816 = vmatpush1.msra.mxu0 %v3792
    %3817 = vmatprep.subr.mxu0 0.0
    %3818 = vmatpush1.msra.mxu0 %v3793
    %3819 = vmatprep.subr.mxu0 0.0
    %3820 = vmatpush1.msra.mxu0 %v3794
    %3821 = vmatprep.subr.mxu0 0.0
    %3822 = vmatpush1.msra.mxu0 %v3795
    %3823 = vmatprep.subr.mxu0 0.0
    %3824 = vmatpush1.msra.mxu0 %v3796
    %3825 = vmatprep.subr.mxu0 0.0
    %3826 = vmatpush1.msra.mxu0 %v3797
    %3827 = vmatprep.subr.mxu0 0.0
    %3828 = vmatpush1.msra.mxu0 %v3798
    %3829 = vmatprep.subr.mxu0 0.0
    %3830 = vmatpush1.msra.mxu0 %v3799
    %3831 = vmatprep.subr.mxu0 0.0
    %3832 = vmatpush1.msra.mxu0 %v3800
    %3833 = vmatprep.subr.mxu0 0.0
    %3834 = vmatpush1.msra.mxu0 %v3801
    %3835 = vmatprep.subr.mxu0 0.0
    %3836 = vmatpush1.msra.mxu0 %v3802
    %3837 = vmatprep.subr.mxu0 0.0
    %3838 = vmatpush1.msra.mxu0 %v3803
    %3839 = vmatprep.subr.mxu0 0.0
    %3840 = vmatpush1.msra.mxu0 %v3804
    %3841 = vmatprep.subr.mxu0 0.0
    %3842 = vmatpush1.msra.mxu0 %v3805
    %3843 = vmatprep.subr.mxu0 0.0
    %3844 = vmatpush1.msra.mxu0 %v3806
    %3845 = vmatprep.subr.mxu0 0.0
    %3846 = vmatpush1.msra.mxu0 %v3807
    %3847 = vmatprep.subr.mxu0 0.0
    %3848 = vmatpush1.msra.mxu0 0.0
    %3849 = vmatprep.subr.mxu0 0.0
    %3850 = vmatpush1.msra.mxu0 0.0
    %3851 = vmatprep.subr.mxu0 0.0
    %3852 = vmatpush1.msra.mxu0 0.0
    %3853 = vmatprep.subr.mxu0 0.0
    %3854 = vmatpush1.msra.mxu0 0.0
    %3855 = vmatprep.subr.mxu0 0.0
    %3856 = vmatpush1.msra.mxu0 0.0
    %3857 = vmatprep.subr.mxu0 0.0
    %3858 = vmatpush1.msra.mxu0 0.0
    %3859 = vmatprep.subr.mxu0 0.0
    %3860 = vmatpush1.msra.mxu0 0.0
    %3861 = vmatprep.subr.mxu0 0.0
    %3862 = vmatpush1.msra.mxu0 0.0
    %3863 = vmatprep.subr.mxu0 0.0
    %3864 = vmatpush1.msra.mxu0 0.0
    %3865 = vmatprep.subr.mxu0 0.0
    %3866 = vmatpush1.msra.mxu0 0.0
    %3867 = vmatprep.subr.mxu0 0.0
    %3868 = vmatpush1.msra.mxu0 0.0
    %3869 = vmatprep.subr.mxu0 0.0
    %3870 = vmatpush1.msra.mxu0 0.0
    %3871 = vmatprep.subr.mxu0 0.0
    %3872 = vmatpush1.msra.mxu0 0.0
    %3873 = vmatprep.subr.mxu0 0.0
    %3874 = vmatpush1.msra.mxu0 0.0
    %3875 = vmatprep.subr.mxu0 0.0
    %3876 = vmatpush1.msra.mxu0 0.0
    %3877 = vmatprep.subr.mxu0 0.0
    %3878 = vmatpush1.msra.mxu0 0.0
    %3879 = vmatprep.mubr.f32.mxu0 0.0
    %3880 = vmatmul.mubr.f32.gmra.mrb[0].mxu0 %v3791
    %v3881 = vpop.f32.mrb[0].mxu0
    %v3882 = vadd.f32 %v3813, %v3881
    %v3883 = vpop.f32.mrb[0].mxu0
    %3884 = vdwg.mxu0
    %3885 = vst [vmem:[#allocation14] sm:$0xff] %v3882
    %v3886 = vrot.slane %v2353, 1
    %v3888 = vrot.slane %v2703, 3
    %v3890 = vrot.slane %v2879, 4
    %v3892 = vrot.slane %v3044, 5
    %v3894 = vrot.slane %v3394, 7
    %v3896 = vsel %vm3585, %v3886, %v2529
    %v3897 = vsel %vm1895, %v3896, %v3888
    %v3898 = vsel %vm3588, %v3897, %v3890
    %v3899 = vsel %vm1897, %v3898, %v3892
    %v3900 = vsel %vm3591, %v3899, %v3391
    %v3901 = vsel %vm1899, %v3900, %v3894
    %v3902 = vsel %vm3594, %v3901, %v3570
    %s3903 = scalar_lea.vmem [#allocation10], 128
    %v3904 = vld [vmem:[%s3903] sm:$0xff]
    %v3905 = vld [vmem:[%s3903 + $0x8] sm:$0xff]
    %v3906 = vld [vmem:[%s3903 + $0x10] sm:$0xff]
    %v3907 = vld [vmem:[%s3903 + $0x18] sm:$0xff]
    %v3908 = vld [vmem:[%s3903 + $0x20] sm:$0xff]
    %v3909 = vld [vmem:[%s3903 + $0x28] sm:$0xff]
    %v3910 = vld [vmem:[%s3903 + $0x30] sm:$0xff]
    %v3911 = vld [vmem:[%s3903 + $0x38] sm:$0xff]
    %v3912 = vld [vmem:[%s3903 + $0x40] sm:$0xff]
    %v3913 = vld [vmem:[%s3903 + $0x48] sm:$0xff]
    %v3914 = vld [vmem:[%s3903 + $0x50] sm:$0xff]
    %v3915 = vld [vmem:[%s3903 + $0x58] sm:$0xff]
    %v3916 = vld [vmem:[%s3903 + $0x60] sm:$0xff]
    %v3917 = vld [vmem:[%s3903 + $0x68] sm:$0xff]
    %v3918 = vld [vmem:[%s3903 + $0x70] sm:$0xff]
    %v3919 = vld [vmem:[%s3903 + $0x78] sm:$0xff]
    %3920 = vmatprep.subr.mxu0 0.0
    %3921 = vmatpush1.msra.mxu0 %v3904
    %3922 = vmatprep.subr.mxu0 0.0
    %3923 = vmatpush1.msra.mxu0 %v3905
    %3924 = vmatprep.subr.mxu0 0.0
    %3925 = vmatpush1.msra.mxu0 %v3906
    %3926 = vmatprep.subr.mxu0 0.0
    %3927 = vmatpush1.msra.mxu0 %v3907
    %3928 = vmatprep.subr.mxu0 0.0
    %3929 = vmatpush1.msra.mxu0 %v3908
    %3930 = vmatprep.subr.mxu0 0.0
    %3931 = vmatpush1.msra.mxu0 %v3909
    %3932 = vmatprep.subr.mxu0 0.0
    %3933 = vmatpush1.msra.mxu0 %v3910
    %3934 = vmatprep.subr.mxu0 0.0
    %3935 = vmatpush1.msra.mxu0 %v3911
    %3936 = vmatprep.subr.mxu0 0.0
    %3937 = vmatpush1.msra.mxu0 %v3912
    %3938 = vmatprep.subr.mxu0 0.0
    %3939 = vmatpush1.msra.mxu0 %v3913
    %3940 = vmatprep.subr.mxu0 0.0
    %3941 = vmatpush1.msra.mxu0 %v3914
    %3942 = vmatprep.subr.mxu0 0.0
    %3943 = vmatpush1.msra.mxu0 %v3915
    %3944 = vmatprep.subr.mxu0 0.0
    %3945 = vmatpush1.msra.mxu0 %v3916
    %3946 = vmatprep.subr.mxu0 0.0
    %3947 = vmatpush1.msra.mxu0 %v3917
    %3948 = vmatprep.subr.mxu0 0.0
    %3949 = vmatpush1.msra.mxu0 %v3918
    %3950 = vmatprep.subr.mxu0 0.0
    %3951 = vmatpush1.msra.mxu0 %v3919
    %3952 = vmatprep.subr.mxu0 0.0
    %3953 = vmatpush1.msra.mxu0 0.0
    %3954 = vmatprep.subr.mxu0 0.0
    %3955 = vmatpush1.msra.mxu0 0.0
    %3956 = vmatprep.subr.mxu0 0.0
    %3957 = vmatpush1.msra.mxu0 0.0
    %3958 = vmatprep.subr.mxu0 0.0
    %3959 = vmatpush1.msra.mxu0 0.0
    %3960 = vmatprep.subr.mxu0 0.0
    %3961 = vmatpush1.msra.mxu0 0.0
    %3962 = vmatprep.subr.mxu0 0.0
    %3963 = vmatpush1.msra.mxu0 0.0
    %3964 = vmatprep.subr.mxu0 0.0
    %3965 = vmatpush1.msra.mxu0 0.0
    %3966 = vmatprep.subr.mxu0 0.0
    %3967 = vmatpush1.msra.mxu0 0.0
    %3968 = vmatprep.subr.mxu0 0.0
    %3969 = vmatpush1.msra.mxu0 0.0
    %3970 = vmatprep.subr.mxu0 0.0
    %3971 = vmatpush1.msra.mxu0 0.0
    %3972 = vmatprep.subr.mxu0 0.0
    %3973 = vmatpush1.msra.mxu0 0.0
    %3974 = vmatprep.subr.mxu0 0.0
    %3975 = vmatpush1.msra.mxu0 0.0
    %3976 = vmatprep.subr.mxu0 0.0
    %3977 = vmatpush1.msra.mxu0 0.0
    %3978 = vmatprep.subr.mxu0 0.0
    %3979 = vmatpush1.msra.mxu0 0.0
    %3980 = vmatprep.subr.mxu0 0.0
    %3981 = vmatpush1.msra.mxu0 0.0
    %3982 = vmatprep.subr.mxu0 0.0
    %3983 = vmatpush1.msra.mxu0 0.0
    %3984 = vmatprep.mubr.f32.mxu0 0.0
    %3985 = vmatmul.mubr.f32.gmra.mrb[0].mxu0 %v3902
    %v3986 = vpop.f32.mrb[0].mxu0
    %v3987 = vadd.f32 0.0, %v3986
    %v3988 = vpop.f32.mrb[0].mxu0
    %3989 = vdwg.mxu0
    %v3990 = vld [vmem:[#allocation11] sm:$0xff]
    %v3991 = vld [vmem:[#allocation11 + $0x8] sm:$0xff]
    %v3992 = vld [vmem:[#allocation11 + $0x10] sm:$0xff]
    %v3993 = vld [vmem:[#allocation11 + $0x18] sm:$0xff]
    %v3994 = vld [vmem:[#allocation11 + $0x20] sm:$0xff]
    %v3995 = vld [vmem:[#allocation11 + $0x28] sm:$0xff]
    %v3996 = vld [vmem:[#allocation11 + $0x30] sm:$0xff]
    %v3997 = vld [vmem:[#allocation11 + $0x38] sm:$0xff]
    %v3998 = vld [vmem:[#allocation11 + $0x40] sm:$0xff]
    %v3999 = vld [vmem:[#allocation11 + $0x48] sm:$0xff]
    %v4000 = vld [vmem:[#allocation11 + $0x50] sm:$0xff]
    %v4001 = vld [vmem:[#allocation11 + $0x58] sm:$0xff]
    %v4002 = vld [vmem:[#allocation11 + $0x60] sm:$0xff]
    %v4003 = vld [vmem:[#allocation11 + $0x68] sm:$0xff]
    %v4004 = vld [vmem:[#allocation11 + $0x70] sm:$0xff]
    %v4005 = vld [vmem:[#allocation11 + $0x78] sm:$0xff]
    %v4006 = vld [vmem:[%s9] sm:$0x1]
    %v4008 = vlaneseq
    %v4009 = vshrl.u32 %v4008, 7
    %v4010 = vsub.s32 0, %v4009
    %v4011 = vrot.slane %v4006, %v4010
    %4013 = vmatprep.subr.mxu0 0.0
    %4014 = vmatpush1.msra.mxu0 %v3990
    %4015 = vmatprep.subr.mxu0 0.0
    %4016 = vmatpush1.msra.mxu0 %v3991
    %4017 = vmatprep.subr.mxu0 0.0
    %4018 = vmatpush1.msra.mxu0 %v3992
    %4019 = vmatprep.subr.mxu0 0.0
    %4020 = vmatpush1.msra.mxu0 %v3993
    %4021 = vmatprep.subr.mxu0 0.0
    %4022 = vmatpush1.msra.mxu0 %v3994
    %4023 = vmatprep.subr.mxu0 0.0
    %4024 = vmatpush1.msra.mxu0 %v3995
    %4025 = vmatprep.subr.mxu0 0.0
    %4026 = vmatpush1.msra.mxu0 %v3996
    %4027 = vmatprep.subr.mxu0 0.0
    %4028 = vmatpush1.msra.mxu0 %v3997
    %4029 = vmatprep.subr.mxu0 0.0
    %4030 = vmatpush1.msra.mxu0 %v3998
    %4031 = vmatprep.subr.mxu0 0.0
    %4032 = vmatpush1.msra.mxu0 %v3999
    %4033 = vmatprep.subr.mxu0 0.0
    %4034 = vmatpush1.msra.mxu0 %v4000
    %4035 = vmatprep.subr.mxu0 0.0
    %4036 = vmatpush1.msra.mxu0 %v4001
    %4037 = vmatprep.subr.mxu0 0.0
    %4038 = vmatpush1.msra.mxu0 %v4002
    %4039 = vmatprep.subr.mxu0 0.0
    %4040 = vmatpush1.msra.mxu0 %v4003
    %4041 = vmatprep.subr.mxu0 0.0
    %4042 = vmatpush1.msra.mxu0 %v4004
    %4043 = vmatprep.subr.mxu0 0.0
    %4044 = vmatpush1.msra.mxu0 %v4005
    %4045 = vmatprep.subr.mxu0 0.0
    %4046 = vmatpush1.msra.mxu0 0.0
    %4047 = vmatprep.subr.mxu0 0.0
    %4048 = vmatpush1.msra.mxu0 0.0
    %4049 = vmatprep.subr.mxu0 0.0
    %4050 = vmatpush1.msra.mxu0 0.0
    %4051 = vmatprep.subr.mxu0 0.0
    %4052 = vmatpush1.msra.mxu0 0.0
    %4053 = vmatprep.subr.mxu0 0.0
    %4054 = vmatpush1.msra.mxu0 0.0
    %4055 = vmatprep.subr.mxu0 0.0
    %4056 = vmatpush1.msra.mxu0 0.0
    %4057 = vmatprep.subr.mxu0 0.0
    %4058 = vmatpush1.msra.mxu0 0.0
    %4059 = vmatprep.subr.mxu0 0.0
    %4060 = vmatpush1.msra.mxu0 0.0
    %4061 = vmatprep.subr.mxu0 0.0
    %4062 = vmatpush1.msra.mxu0 0.0
    %4063 = vmatprep.subr.mxu0 0.0
    %4064 = vmatpush1.msra.mxu0 0.0
    %4065 = vmatprep.subr.mxu0 0.0
    %4066 = vmatpush1.msra.mxu0 0.0
    %4067 = vmatprep.subr.mxu0 0.0
    %4068 = vmatpush1.msra.mxu0 0.0
    %4069 = vmatprep.subr.mxu0 0.0
    %4070 = vmatpush1.msra.mxu0 0.0
    %4071 = vmatprep.subr.mxu0 0.0
    %4072 = vmatpush1.msra.mxu0 0.0
    %4073 = vmatprep.subr.mxu0 0.0
    %4074 = vmatpush1.msra.mxu0 0.0
    %4075 = vmatprep.subr.mxu0 0.0
    %4076 = vmatpush1.msra.mxu0 0.0
    %4077 = vmatprep.mubr.f32.mxu0 0.0
    %4078 = vmatmul.mubr.f32.gmra.mrb[0].mxu0 %v3987
    %v4079 = vpop.f32.mrb[0].mxu0
    %v4080 = vadd.f32 %v4011, %v4079
    %v4081 = vpop.f32.mrb[0].mxu0
    %4082 = vdwg.mxu0
    %vm4083 = vcmp.gt.f32.partialorder %v4080, 0.0
    %v4084 = vmul.f32 %v4080, 0.01
    %v4085 = vsel %vm4083, %v4080, %v4084
    %v4086 = vld [vmem:[%s10] sm:$0xff]
    %4088 = vset.pattern.permute.xlu0 0
    %4089 = vperm.xlu0 %4088, %v4086
    %v4090 = vpop.permute.xlu0 %4089
    %v4092 = vmul.f32 %v4085, %v4090
    %v4093 = vld [vmem:[%s11] sm:$0xff]
    %4095 = vset.pattern.permute.xlu0 0
    %4096 = vperm.xlu0 %4095, %v4093
    %v4097 = vpop.permute.xlu0 %4096
    %v4099 = vadd.f32 %v4092, %v4097
    %v4100 = vld [vmem:[#allocation13] sm:$0xff]
    %v4101 = vld [vmem:[#allocation13 + $0x8] sm:$0xff]
    %v4102 = vld [vmem:[#allocation13 + $0x10] sm:$0xff]
    %v4103 = vld [vmem:[#allocation13 + $0x18] sm:$0xff]
    %v4104 = vld [vmem:[#allocation13 + $0x20] sm:$0xff]
    %v4105 = vld [vmem:[#allocation13 + $0x28] sm:$0xff]
    %v4106 = vld [vmem:[#allocation13 + $0x30] sm:$0xff]
    %v4107 = vld [vmem:[#allocation13 + $0x38] sm:$0xff]
    %v4108 = vld [vmem:[#allocation13 + $0x40] sm:$0xff]
    %v4109 = vld [vmem:[#allocation13 + $0x48] sm:$0xff]
    %v4110 = vld [vmem:[#allocation13 + $0x50] sm:$0xff]
    %v4111 = vld [vmem:[#allocation13 + $0x58] sm:$0xff]
    %v4112 = vld [vmem:[#allocation13 + $0x60] sm:$0xff]
    %v4113 = vld [vmem:[#allocation13 + $0x68] sm:$0xff]
    %v4114 = vld [vmem:[#allocation13 + $0x70] sm:$0xff]
    %v4115 = vld [vmem:[#allocation13 + $0x78] sm:$0xff]
    %v4116 = vld [vmem:[%s13] sm:$0x1]
    %v4118 = vlaneseq
    %v4119 = vshrl.u32 %v4118, 7
    %v4120 = vsub.s32 0, %v4119
    %v4121 = vrot.slane %v4116, %v4120
    %4123 = vmatprep.subr.mxu0 0.0
    %4124 = vmatpush1.msra.mxu0 %v4100
    %4125 = vmatprep.subr.mxu0 0.0
    %4126 = vmatpush1.msra.mxu0 %v4101
    %4127 = vmatprep.subr.mxu0 0.0
    %4128 = vmatpush1.msra.mxu0 %v4102
    %4129 = vmatprep.subr.mxu0 0.0
    %4130 = vmatpush1.msra.mxu0 %v4103
    %4131 = vmatprep.subr.mxu0 0.0
    %4132 = vmatpush1.msra.mxu0 %v4104
    %4133 = vmatprep.subr.mxu0 0.0
    %4134 = vmatpush1.msra.mxu0 %v4105
    %4135 = vmatprep.subr.mxu0 0.0
    %4136 = vmatpush1.msra.mxu0 %v4106
    %4137 = vmatprep.subr.mxu0 0.0
    %4138 = vmatpush1.msra.mxu0 %v4107
    %4139 = vmatprep.subr.mxu0 0.0
    %4140 = vmatpush1.msra.mxu0 %v4108
    %4141 = vmatprep.subr.mxu0 0.0
    %4142 = vmatpush1.msra.mxu0 %v4109
    %4143 = vmatprep.subr.mxu0 0.0
    %4144 = vmatpush1.msra.mxu0 %v4110
    %4145 = vmatprep.subr.mxu0 0.0
    %4146 = vmatpush1.msra.mxu0 %v4111
    %4147 = vmatprep.subr.mxu0 0.0
    %4148 = vmatpush1.msra.mxu0 %v4112
    %4149 = vmatprep.subr.mxu0 0.0
    %4150 = vmatpush1.msra.mxu0 %v4113
    %4151 = vmatprep.subr.mxu0 0.0
    %4152 = vmatpush1.msra.mxu0 %v4114
    %4153 = vmatprep.subr.mxu0 0.0
    %4154 = vmatpush1.msra.mxu0 %v4115
    %4155 = vmatprep.subr.mxu0 0.0
    %4156 = vmatpush1.msra.mxu0 0.0
    %4157 = vmatprep.subr.mxu0 0.0
    %4158 = vmatpush1.msra.mxu0 0.0
    %4159 = vmatprep.subr.mxu0 0.0
    %4160 = vmatpush1.msra.mxu0 0.0
    %4161 = vmatprep.subr.mxu0 0.0
    %4162 = vmatpush1.msra.mxu0 0.0
    %4163 = vmatprep.subr.mxu0 0.0
    %4164 = vmatpush1.msra.mxu0 0.0
    %4165 = vmatprep.subr.mxu0 0.0
    %4166 = vmatpush1.msra.mxu0 0.0
    %4167 = vmatprep.subr.mxu0 0.0
    %4168 = vmatpush1.msra.mxu0 0.0
    %4169 = vmatprep.subr.mxu0 0.0
    %4170 = vmatpush1.msra.mxu0 0.0
    %4171 = vmatprep.subr.mxu0 0.0
    %4172 = vmatpush1.msra.mxu0 0.0
    %4173 = vmatprep.subr.mxu0 0.0
    %4174 = vmatpush1.msra.mxu0 0.0
    %4175 = vmatprep.subr.mxu0 0.0
    %4176 = vmatpush1.msra.mxu0 0.0
    %4177 = vmatprep.subr.mxu0 0.0
    %4178 = vmatpush1.msra.mxu0 0.0
    %4179 = vmatprep.subr.mxu0 0.0
    %4180 = vmatpush1.msra.mxu0 0.0
    %4181 = vmatprep.subr.mxu0 0.0
    %4182 = vmatpush1.msra.mxu0 0.0
    %4183 = vmatprep.subr.mxu0 0.0
    %4184 = vmatpush1.msra.mxu0 0.0
    %4185 = vmatprep.subr.mxu0 0.0
    %4186 = vmatpush1.msra.mxu0 0.0
    %4187 = vmatprep.mubr.f32.mxu0 0.0
    %4188 = vmatmul.mubr.f32.gmra.mrb[0].mxu0 %v4099
    %v4189 = vpop.f32.mrb[0].mxu0
    %v4190 = vadd.f32 %v4121, %v4189
    %v4191 = vpop.f32.mrb[0].mxu0
    %4192 = vdwg.mxu0
    %4193 = vst [vmem:[#allocation14 + $0x8] sm:$0xff] %v4190
    // Predicated region
    $region86: #{tpu_custom_call.1} parent=1 // pred_check
      _
    $region87: #{tpu_custom_call.1} parent=1 // pred_check_branch
      %4195 = sbr.rel (0) target = $region89
    $region88: #{tpu_custom_call.1} parent=1 // pred_region
      %s4197 = ssub.s32 256, 256
      %4198 = vsyncadd [#allocation4], %s4197
      %s4199 = sshll.u32 [#allocation14], 4
      %s4200 = int_to_ptr.vmem [resolvable:$true] %s4199
      %4205 = dma.vmem_to_hbm [thread:$0]  %s4200, 256, %s14, [#allocation4], 128, 128, 8
    $region89: #{tpu_custom_call.1} parent=1 // pred_fallthru
      _
    // Predicated region
    $region90: #{tpu_custom_call.1} parent=1 // pred_check
      _
    $region91: #{tpu_custom_call.1} parent=1 // pred_check_branch
      %4207 = sbr.rel (0) target = $region93
    $region92: #{tpu_custom_call.1} parent=1 // pred_region
      %s4209 = ssub.s32 64, 64
      %4210 = vsyncadd [#allocation16], %s4209
      %s4212 = sshll.u32 [#allocation15], 4
      %s4213 = int_to_ptr.vmem [resolvable:$true] %s4212
      %4215 = dma.vmem_to_hbm [thread:$0]  %s4213, 64, %s15, [#allocation16]
    $region93: #{tpu_custom_call.1} parent=1 // pred_fallthru
      _
    // Predicated region
    $region94: #{tpu_custom_call.1} parent=1 // pred_check
      _
    $region95: #{tpu_custom_call.1} parent=1 // pred_check_branch
      %4217 = sbr.rel (0) target = $region97
    $region96: #{tpu_custom_call.1} parent=1 // pred_region
      %4218 = dma.done [#allocation4], 256
    $region97: #{tpu_custom_call.1} parent=1 // pred_fallthru
      _
    // Predicated region
    $region98: #{tpu_custom_call.1} parent=1 // pred_check
      _
    $region99: #{tpu_custom_call.1} parent=1 // pred_check_branch
      %4220 = sbr.rel (0) target = $region101
    $region100: #{tpu_custom_call.1} parent=1 // pred_region
      %4221 = dma.done [#allocation16], 64
    $region101: #{tpu_custom_call.1} parent=1 // pred_fallthru
      _
    %4222 = vsyncpa [#allocation3], 1
    %4223 = vsyncpa [#allocation6], 1
    %4224 = vsyncpa [#allocation9], 1
    %4225 = vsyncpa [#allocation12], 1
    %4226 = vsyncpa [#allocation4], 1
    %4227 = vsyncpa [#allocation16], 1

</llo_original>
